<compile_context>
chip_gen: v7x
topology: tpu7x:2x2x1
jax: 0.10.0
libtpu: 0.0.40
codegen_flags: <defaults>
</compile_context>

<pallas_src>
import functools
import math

import jax
import jax.numpy as jnp
from jax.experimental import pallas as pl
from jax.experimental.pallas import tpu as pltpu


# MXU operand dtype (accumulation is always f32).
MATMUL_DTYPE = jnp.bfloat16


@functools.lru_cache(maxsize=1)
def _vmem_limit():
    """Per-generation VMEM budget (v7x has 64 MiB physical per TensorCore)."""
    try:
        kind = jax.devices()[0].device_kind.lower()
    except Exception:
        return 48 * 1024 * 1024
    if "v5" in kind or "v6" in kind:
        return 96 * 1024 * 1024
    return 48 * 1024 * 1024


def _pick_tile(dim, preferred, align):
    """Largest preferred tile that divides `dim` (full dim is always legal)."""
    if dim <= preferred[0]:
        return dim
    for t in preferred:
        if t <= dim and dim % t == 0 and t % align == 0:
            return t
    return dim


# --------------------------------------------------------------------------
# Fused linear kernels:  y = [LN(x)] @ w + b  [-> GELU] [+ residual]
# --------------------------------------------------------------------------

def _gelu_exact(y):
    # torch nn.GELU default (exact erf).
    return 0.5 * y * (1.0 + jax.lax.erf(y * (1.0 / math.sqrt(2.0))))


def _make_single_k_kernel(*, fuse_ln, fuse_residual, activation, eps):
    """2-D grid (M tiles, N tiles), full K in one tile, no accumulator.

    With fuse_ln, LN(x) is computed once per M tile (at j == 0), cast to
    bf16 and cached in a (tm, K) VMEM scratch that is reused for all N tiles.
    """
    def kernel(*refs):
        it = iter(refs)
        x_ref = next(it)
        w_ref = next(it)
        b_ref = next(it)
        g_ref = next(it) if fuse_ln else None
        bb_ref = next(it) if fuse_ln else None
        r_ref = next(it) if fuse_residual else None
        o_ref = next(it)
        xln_ref = next(it) if fuse_ln else None

        if fuse_ln:
            @pl.when(pl.program_id(1) == 0)
            def _cache_ln():
                x = x_ref[...].astype(jnp.float32)
                mu = jnp.mean(x, axis=-1, keepdims=True)
                xc = x - mu
                var = jnp.mean(xc * xc, axis=-1, keepdims=True)   # biased (torch)
                xn = xc * jax.lax.rsqrt(var + eps)
                xn = (xn * g_ref[...].astype(jnp.float32)
                      + bb_ref[...].astype(jnp.float32))
                xln_ref[...] = xn.astype(xln_ref.dtype)
            lhs = xln_ref[...]
        else:
            lhs = x_ref[...].astype(MATMUL_DTYPE)

        y = jnp.dot(lhs, w_ref[...].astype(MATMUL_DTYPE),
                    preferred_element_type=jnp.float32)
        y = y + b_ref[...].astype(jnp.float32)
        if activation == "gelu":
            y = _gelu_exact(y)
        if fuse_residual:
            y = y + r_ref[...].astype(jnp.float32)
        o_ref[...] = y.astype(o_ref.dtype)

    return kernel


def _make_ktiled_kernel(*, fuse_residual, activation):
    """3-D grid (M, N, K) with an f32 VMEM accumulator (no LN fusion here)."""
    def kernel(*refs):
        it = iter(refs)
        x_ref = next(it)
        w_ref = next(it)
        b_ref = next(it)
        r_ref = next(it) if fuse_residual else None
        o_ref = next(it)
        acc_ref = next(it)

        k_idx = pl.program_id(2)

        @pl.when(k_idx == 0)
        def _init():
            acc_ref[...] = jnp.zeros_like(acc_ref)

        acc_ref[...] += jnp.dot(
            x_ref[...].astype(MATMUL_DTYPE),
            w_ref[...].astype(MATMUL_DTYPE),
            preferred_element_type=jnp.float32)

        @pl.when(k_idx == pl.num_programs(2) - 1)
        def _finalize():
            y = acc_ref[...] + b_ref[...].astype(jnp.float32)
            if activation == "gelu":
                y = _gelu_exact(y)
            if fuse_residual:
                y = y + r_ref[...].astype(jnp.float32)
            o_ref[...] = y.astype(o_ref.dtype)

    return kernel


def fused_linear(x, w, b, *, ln_g=None, ln_b=None, residual=None,
                 activation=None, eps=1e-5, out_dtype=None, k_tile=None):
    """x: [M, K], w: [K, N] (bf16/f32), b: [N] -> [M, N]."""
    M, K = x.shape
    Kw, N = w.shape
    assert K == Kw
    fuse_ln = ln_g is not None
    fuse_res = residual is not None
    out_dtype = out_dtype or x.dtype

    tm = _pick_tile(M, (512, 256, 128, 64, 32, 16, 8), 8)
    tn = _pick_tile(N, (768, 512, 384, 256, 128), 128)
    if fuse_ln:
        tk = K                                    # LN needs the full row
    elif k_tile is not None:
        tk = k_tile
    else:
        tk = _pick_tile(K, (1024, 768, 512, 384, 256, 128), 128)
    assert K % tk == 0
    kt = K // tk

    b2 = b.reshape(1, N)
    vmem = _vmem_limit()

    if kt == 1:
        # No accumulator pass: compute dot, apply epilogue, store directly.
        in_arrays = [x, w, b2]
        in_specs = [
            pl.BlockSpec((tm, K), lambda i, j: (i, 0)),
            pl.BlockSpec((K, tn), lambda i, j: (0, j)),
            pl.BlockSpec((1, tn), lambda i, j: (0, j)),
        ]
        if fuse_ln:
            in_arrays += [ln_g.reshape(1, K), ln_b.reshape(1, K)]
            in_specs += [pl.BlockSpec((1, K), lambda i, j: (0, 0)),
                         pl.BlockSpec((1, K), lambda i, j: (0, 0))]
        if fuse_res:
            in_arrays.append(residual)
            in_specs.append(pl.BlockSpec((tm, tn), lambda i, j: (i, j)))
        scratch = [pltpu.VMEM((tm, K), MATMUL_DTYPE)] if fuse_ln else []
        # The LN cache is filled at j == 0 and reused for j > 0, so the N
        # axis must stay sequential ("arbitrary") when fuse_ln.
        dims = ("parallel", "arbitrary") if fuse_ln else ("parallel", "parallel")
        kernel = _make_single_k_kernel(fuse_ln=fuse_ln, fuse_residual=fuse_res,
                                       activation=activation, eps=eps)
        return pl.pallas_call(
            kernel,
            out_shape=jax.ShapeDtypeStruct((M, N), out_dtype),
            grid=(M // tm, N // tn),
            in_specs=in_specs,
            out_specs=pl.BlockSpec((tm, tn), lambda i, j: (i, j)),
            scratch_shapes=scratch,
            compiler_params=pltpu.CompilerParams(
                dimension_semantics=dims, vmem_limit_bytes=vmem),
        )(*in_arrays)

    # K-tiled accumulated path.
    assert not fuse_ln
    in_arrays = [x, w, b2]
    in_specs = [
        pl.BlockSpec((tm, tk), lambda i, j, k: (i, k)),
        # TODO(synk): on v5e, sweep pipeline_mode=pl.Buffered(3) on this
        # weight operand to hide weight-tile DMA latency.
        pl.BlockSpec((tk, tn), lambda i, j, k: (k, j)),
        pl.BlockSpec((1, tn), lambda i, j, k: (0, j)),
    ]
    if fuse_res:
        in_arrays.append(residual)
        in_specs.append(pl.BlockSpec((tm, tn), lambda i, j, k: (i, j)))
    kernel = _make_ktiled_kernel(fuse_residual=fuse_res, activation=activation)
    return pl.pallas_call(
        kernel,
        out_shape=jax.ShapeDtypeStruct((M, N), out_dtype),
        grid=(M // tm, N // tn, kt),
        in_specs=in_specs,
        out_specs=pl.BlockSpec((tm, tn), lambda i, j, k: (i, j)),
        scratch_shapes=[pltpu.VMEM((tm, tn), jnp.float32)],
        compiler_params=pltpu.CompilerParams(
            dimension_semantics=("parallel", "parallel", "arbitrary"),
            vmem_limit_bytes=vmem),
    )(*in_arrays)


# --------------------------------------------------------------------------
# Attention kernel: one batch item per grid step.
# Input is the head-major qkv projection [B, Sp, H*3D] (per head h the
# columns [h*3D : (h+1)*3D] are [q_h | k_h | v_h]); the softmax scale is
# pre-folded into the q columns.  Output is a single lane-dense [B, Sp, E]
# bf16 store (head results concatenated in registers).
# --------------------------------------------------------------------------

def _attn_kernel(qkv_ref, o_ref, *, num_heads, head_dim, seq_len):
    D = head_dim
    Sp = qkv_ref.shape[1]

    need_mask = seq_len < Sp
    if need_mask:
        kmask = jax.lax.broadcasted_iota(jnp.int32, (Sp, Sp), 1) < seq_len

    outs = []
    for h in range(num_heads):                    # static unroll
        base = 3 * D * h
        # Slice per-head operands directly from the ref (already bf16):
        # only one head's (Sp, D) operands are live at a time.
        q = qkv_ref[0, :, base:base + D]          # scale already folded in
        k = qkv_ref[0, :, base + D:base + 2 * D]
        v = qkv_ref[0, :, base + 2 * D:base + 3 * D]

        # Q . K contracting the last dim (no explicit transpose of K).
        s = jax.lax.dot_general(q, k, (((1,), (1,)), ((), ())),
                                preferred_element_type=jnp.float32)
        if need_mask:
            s = jnp.where(kmask, s, -1e30)        # mask padded key positions

        m = jnp.max(s, axis=-1, keepdims=True)
        e = jnp.exp(s - m)
        p = e * pl.reciprocal(jnp.sum(e, axis=-1, keepdims=True), approx=True)

        outs.append(jnp.dot(p.astype(MATMUL_DTYPE), v,
                            preferred_element_type=jnp.float32))

    # Single lane-dense (Sp, E) store.
    o_ref[0] = jnp.concatenate(outs, axis=-1).astype(o_ref.dtype)


def attention(qkv, *, num_heads, seq_len):
    """qkv: [B, Sp, 3E] (head-major columns) -> [B, Sp, E] bf16."""
    B, Sp, threeE = qkv.shape
    E = threeE // 3
    D = E // num_heads
    return pl.pallas_call(
        functools.partial(_attn_kernel, num_heads=num_heads, head_dim=D,
                          seq_len=seq_len),
        out_shape=jax.ShapeDtypeStruct((B, Sp, E), MATMUL_DTYPE),
        grid=(B,),
        in_specs=[pl.BlockSpec((1, Sp, threeE), lambda b: (b, 0, 0))],
        out_specs=pl.BlockSpec((1, Sp, E), lambda b: (b, 0, 0)),
        compiler_params=pltpu.CompilerParams(
            dimension_semantics=("parallel",),
            vmem_limit_bytes=_vmem_limit()),
    )(qkv)


# --------------------------------------------------------------------------
# Parameter construction (deterministic, synthetic)
# --------------------------------------------------------------------------

def _headmajor_perm(embed_dim, num_heads):
    """Column permutation nn.Linear [q|k|v] -> per-head [q_h|k_h|v_h]."""
    D = embed_dim // num_heads
    idx = []
    for h in range(num_heads):
        for part in range(3):
            start = part * embed_dim + h * D
            idx.extend(range(start, start + D))
    return jnp.asarray(idx, dtype=jnp.int32)


def init_params(key, *, img_size, patch_size, in_chans, num_classes,
                embed_dim, depth, num_heads, mlp_ratio):
    assert embed_dim % num_heads == 0
    num_patches = (img_size // patch_size) ** 2
    hidden = int(embed_dim * mlp_ratio)
    head_dim = embed_dim // num_heads
    scale = head_dim ** (-0.5)
    perm = _headmajor_perm(embed_dim, num_heads)

    def nrm(k, shape, std=0.02):
        return jax.random.normal(k, shape, jnp.float32) * std

    def w_mm(k, shape):                       # matmul weights stored in bf16
        return nrm(k, shape).astype(MATMUL_DTYPE)

    keys = jax.random.split(key, 4 + depth)
    params = {
        # Conv2d(in_chans, embed_dim, k=p, s=p) expressed as matmul [C*p*p, E]
        "patch_w": w_mm(keys[0], (in_chans * patch_size * patch_size, embed_dim)),
        "patch_b": jnp.zeros((embed_dim,), jnp.float32),
        "cls_token": nrm(keys[1], (1, 1, embed_dim)),
        "pos_embed": nrm(keys[2], (1, 1 + num_patches, embed_dim)),
        "norm_g": jnp.ones((embed_dim,), jnp.float32),
        "norm_b": jnp.zeros((embed_dim,), jnp.float32),
        "head_w": w_mm(keys[3], (embed_dim, num_classes)),
        "head_b": jnp.zeros((num_classes,), jnp.float32),
        "blocks": [],
    }
    for d in range(depth):
        bk = jax.random.split(keys[4 + d], 4)
        # qkv weight in f32: fold the softmax scale into the q columns, then
        # permute the columns to the head-major [q_h|k_h|v_h] layout (free).
        qkv_w = nrm(bk[0], (embed_dim, 3 * embed_dim))
        qkv_w = qkv_w.at[:, :embed_dim].multiply(scale)
        qkv_b = jnp.zeros((3 * embed_dim,), jnp.float32)
        qkv_b = qkv_b.at[:embed_dim].multiply(scale)
        params["blocks"].append({
            "ln1_g": jnp.ones((embed_dim,), jnp.float32),
            "ln1_b": jnp.zeros((embed_dim,), jnp.float32),
            "qkv_w": qkv_w[:, perm].astype(MATMUL_DTYPE),
            "qkv_b": qkv_b[perm],
            "proj_w": w_mm(bk[1], (embed_dim, embed_dim)),
            "proj_b": jnp.zeros((embed_dim,), jnp.float32),
            "ln2_g": jnp.ones((embed_dim,), jnp.float32),
            "ln2_b": jnp.zeros((embed_dim,), jnp.float32),
            "fc1_w": w_mm(bk[2], (embed_dim, hidden)),
            "fc1_b": jnp.zeros((hidden,), jnp.float32),
            "fc2_w": w_mm(bk[3], (hidden, embed_dim)),
            "fc2_b": jnp.zeros((embed_dim,), jnp.float32),
        })
    return params


# --------------------------------------------------------------------------
# Forward pass (glue in JAX, compute in Pallas)
# --------------------------------------------------------------------------

def patchify(x, p):
    """NCHW -> [B, num_patches, C*p*p]; patch order row-major over (H/p, W/p),
    feature order (C, p, p) to match Conv2d weight flattening."""
    B, C, H, W = x.shape
    hp, wp = H // p, W // p
    x = x.reshape(B, C, hp, p, wp, p)
    x = x.transpose(0, 2, 4, 1, 3, 5)            # [B, hp, wp, C, p, p]
    return x.reshape(B, hp * wp, C * p * p)


def vit_forward(params, x, *, patch_size, embed_dim, num_heads):
    B = x.shape[0]
    E = embed_dim
    H = num_heads
    assert E % H == 0

    # Patch embedding (conv-as-matmul).
    patches = patchify(x, patch_size)                               # [B, NP, C*p*p]
    NP = patches.shape[1]
    tok = fused_linear(patches.reshape(B * NP, -1),
                       params["patch_w"], params["patch_b"],
                       out_dtype=jnp.float32)
    tok = tok.reshape(B, NP, E)

    # cls token + positional embedding (dropout p=0.0 -> identity).
    cls = jnp.broadcast_to(params["cls_token"], (B, 1, E))
    h = jnp.concatenate([cls, tok], axis=1) + params["pos_embed"]   # [B, S, E]
    S = h.shape[1]
    Sp = ((S + 7) // 8) * 8                                         # pad to x8
    if Sp != S:
        h = jnp.pad(h, ((0, 0), (0, Sp - S), (0, 0)))
    hf = h.reshape(B * Sp, E)                                       # residual stream (f32)

    for blk in params["blocks"]:
        # ---- attention sub-block: (LN1 + QKV) -> attention -> (proj + residual)
        qkv = fused_linear(hf, blk["qkv_w"], blk["qkv_b"],
                           ln_g=blk["ln1_g"], ln_b=blk["ln1_b"],
                           out_dtype=MATMUL_DTYPE)                  # [B*Sp, 3E] bf16
        attn = attention(qkv.reshape(B, Sp, 3 * E),
                         num_heads=H, seq_len=S)                    # [B, Sp, E] bf16
        hf = fused_linear(attn.reshape(B * Sp, E),
                          blk["proj_w"], blk["proj_b"],
                          residual=hf, out_dtype=jnp.float32)       # x + attn(...)

        # ---- MLP sub-block: (LN2 + FC1 + GELU) -> (FC2 + residual)
        m = fused_linear(hf, blk["fc1_w"], blk["fc1_b"],
                         ln_g=blk["ln2_g"], ln_b=blk["ln2_b"],
                         activation="gelu",
                         out_dtype=MATMUL_DTYPE)                    # [B*Sp, hidden] bf16
        hf = fused_linear(m, blk["fc2_w"], blk["fc2_b"],
                          residual=hf, out_dtype=jnp.float32)       # x + mlp(...)

    # final norm fused into the classification head, cls token only.
    cls_feat = hf.reshape(B, Sp, E)[:, 0]                           # [B, E]
    logits = fused_linear(cls_feat, params["head_w"], params["head_b"],
                          ln_g=params["norm_g"], ln_b=params["norm_b"],
                          out_dtype=jnp.float32)
    return logits


# --------------------------------------------------------------------------
# Driver
# --------------------------------------------------------------------------

if __name__ == "__main__":
    cfg = dict(img_size=16, patch_size=4, in_chans=3, num_classes=16,
               embed_dim=64, depth=2, num_heads=4, mlp_ratio=4.0)

    key = jax.random.PRNGKey(0)
    pkey, xkey, tkey = jax.random.split(key, 3)
    params = init_params(pkey, **cfg)

    B = 2
    x = jax.random.normal(
        xkey, (B, cfg["in_chans"], cfg["img_size"], cfg["img_size"]), jnp.float32)

    fwd = jax.jit(functools.partial(vit_forward,
                                    patch_size=cfg["patch_size"],
                                    embed_dim=cfg["embed_dim"],
                                    num_heads=cfg["num_heads"]))
    logits = fwd(params, x)
    jax.block_until_ready(logits)
    assert logits.shape == (B, cfg["num_classes"])
    assert bool(jnp.all(jnp.isfinite(logits)))

    # Also exercise the K-tiled accumulator path once and sanity-check it
    # (the small ViT config above fits every K in a single tile).
    k1, k2 = jax.random.split(tkey)
    xt = jax.random.normal(k1, (16, 256), jnp.float32)
    wt = (jax.random.normal(k2, (256, 128), jnp.float32) * 0.05).astype(MATMUL_DTYPE)
    bt = jnp.zeros((128,), jnp.float32)
    yt = fused_linear(xt, wt, bt, k_tile=128)
    jax.block_until_ready(yt)
    ref = jnp.dot(xt.astype(MATMUL_DTYPE), wt, preferred_element_type=jnp.float32)
    assert bool(jnp.allclose(yt, ref, rtol=2e-2, atol=2e-2))

    print("KERNEL_OK")
</pallas_src>

<mosaic_0001>
module attributes {stable_mosaic.version = 11 : i64} {
  func.func @kernel(%arg0: i32, %arg1: i32, %arg2: memref<32x48xf32, #tpu.memory_space<vmem>>, %arg3: memref<48x64xbf16, #tpu.memory_space<vmem>>, %arg4: memref<1x64xf32, #tpu.memory_space<vmem>>, %arg5: memref<32x64xf32, #tpu.memory_space<vmem>>) attributes {dimension_semantics = [#tpu.dimension_semantics<parallel>, #tpu.dimension_semantics<parallel>], iteration_bounds = array<i64: 1, 1>, scalar_prefetch = 0 : i64, scratch_operands = 0 : i64, tpu.core_type = #tpu.core_type<tc>, window_params = [{transform_indices = @transform_0, window_bounds = array<i64: 32, 48>}, {transform_indices = @transform_1, window_bounds = array<i64: 48, 64>}, {transform_indices = @transform_2, window_bounds = array<i64: 1, 64>}, {transform_indices = @transform_3, window_bounds = array<i64: 32, 64>}]} {
    %c0 = arith.constant 0 : index
    %c0_0 = arith.constant 0 : index
    %0 = vector.load %arg2[%c0, %c0_0] : memref<32x48xf32, #tpu.memory_space<vmem>>, vector<32x48xf32>
    %1 = arith.truncf %0 : vector<32x48xf32> to vector<32x48xbf16>
    %c0_1 = arith.constant 0 : index
    %c0_2 = arith.constant 0 : index
    %2 = vector.load %arg3[%c0_1, %c0_2] : memref<48x64xbf16, #tpu.memory_space<vmem>>, vector<48x64xbf16>
    %cst = arith.constant dense<0.000000e+00> : vector<32x64xf32>
    %3 = tpu.matmul %1, %2, %cst {dimension_numbers = #tpu.dot_dimension_numbers<[1], [0], [0], [1], [0, 0, 1, 1], [], []>} : vector<32x48xbf16>, vector<48x64xbf16>, vector<32x64xf32> -> vector<32x64xf32>
    %c0_3 = arith.constant 0 : index
    %c0_4 = arith.constant 0 : index
    %4 = vector.load %arg4[%c0_3, %c0_4] : memref<1x64xf32, #tpu.memory_space<vmem>>, vector<1x64xf32>
    %5 = vector.broadcast %4 : vector<1x64xf32> to vector<32x64xf32>
    %6 = arith.addf %3, %5 : vector<32x64xf32>
    %c0_5 = arith.constant 0 : index
    %c0_6 = arith.constant 0 : index
    %7 = vector.load %arg5[%c0_5, %c0_6] : memref<32x64xf32, #tpu.memory_space<vmem>>, vector<32x64xf32>
    tpu.vector_store %arg5[%c0_5, %c0_6], %6 {strides = array<i32>} : memref<32x64xf32, #tpu.memory_space<vmem>>, vector<32x64xf32>,
    return
  }
  func.func @transform_0(%arg0: i32, %arg1: i32) -> (i32, i32) {
    %c0_i32 = arith.constant 0 : i32
    %c0_i32_0 = arith.constant 0 : i32
    return %arg0, %c0_i32 : i32, i32
  }
  func.func @transform_1(%arg0: i32, %arg1: i32) -> (i32, i32) {
    %c0_i32 = arith.constant 0 : i32
    %c0_i32_0 = arith.constant 0 : i32
    return %c0_i32, %arg1 : i32, i32
  }
  func.func @transform_2(%arg0: i32, %arg1: i32) -> (i32, i32) {
    %c0_i32 = arith.constant 0 : i32
    %c0_i32_0 = arith.constant 0 : i32
    return %c0_i32, %arg1 : i32, i32
  }
  func.func @transform_3(%arg0: i32, %arg1: i32) -> (i32, i32) {
    %c0_i32 = arith.constant 0 : i32
    return %arg0, %arg1 : i32, i32
  }
}

module attributes {stable_mosaic.version = 11 : i64} {
  func.func @kernel(%arg0: i32, %arg1: i32, %arg2: memref<48x64xbf16, #tpu.memory_space<vmem>>, %arg3: memref<64x64xbf16, #tpu.memory_space<vmem>>, %arg4: memref<1x64xf32, #tpu.memory_space<vmem>>, %arg5: memref<48x64xf32, #tpu.memory_space<vmem>>, %arg6: memref<48x64xf32, #tpu.memory_space<vmem>>) attributes {dimension_semantics = [#tpu.dimension_semantics<parallel>, #tpu.dimension_semantics<parallel>], iteration_bounds = array<i64: 1, 1>, scalar_prefetch = 0 : i64, scratch_operands = 0 : i64, tpu.core_type = #tpu.core_type<tc>, window_params = [{transform_indices = @transform_0, window_bounds = array<i64: 48, 64>}, {transform_indices = @transform_1, window_bounds = array<i64: 64, 64>}, {transform_indices = @transform_2, window_bounds = array<i64: 1, 64>}, {transform_indices = @transform_3, window_bounds = array<i64: 48, 64>}, {transform_indices = @transform_4, window_bounds = array<i64: 48, 64>}]} {
    %c0 = arith.constant 0 : index
    %c0_0 = arith.constant 0 : index
    %0 = vector.load %arg2[%c0, %c0_0] : memref<48x64xbf16, #tpu.memory_space<vmem>>, vector<48x64xbf16>
    %c0_1 = arith.constant 0 : index
    %c0_2 = arith.constant 0 : index
    %1 = vector.load %arg3[%c0_1, %c0_2] : memref<64x64xbf16, #tpu.memory_space<vmem>>, vector<64x64xbf16>
    %cst = arith.constant dense<0.000000e+00> : vector<48x64xf32>
    %2 = tpu.matmul %0, %1, %cst {dimension_numbers = #tpu.dot_dimension_numbers<[1], [0], [0], [1], [0, 0, 1, 1], [], []>} : vector<48x64xbf16>, vector<64x64xbf16>, vector<48x64xf32> -> vector<48x64xf32>
    %c0_3 = arith.constant 0 : index
    %c0_4 = arith.constant 0 : index
    %3 = vector.load %arg4[%c0_3, %c0_4] : memref<1x64xf32, #tpu.memory_space<vmem>>, vector<1x64xf32>
    %4 = vector.broadcast %3 : vector<1x64xf32> to vector<48x64xf32>
    %5 = arith.addf %2, %4 : vector<48x64xf32>
    %c0_5 = arith.constant 0 : index
    %c0_6 = arith.constant 0 : index
    %6 = vector.load %arg5[%c0_5, %c0_6] : memref<48x64xf32, #tpu.memory_space<vmem>>, vector<48x64xf32>
    %7 = arith.addf %5, %6 : vector<48x64xf32>
    %c0_7 = arith.constant 0 : index
    %c0_8 = arith.constant 0 : index
    %8 = vector.load %arg6[%c0_7, %c0_8] : memref<48x64xf32, #tpu.memory_space<vmem>>, vector<48x64xf32>
    tpu.vector_store %arg6[%c0_7, %c0_8], %7 {strides = array<i32>} : memref<48x64xf32, #tpu.memory_space<vmem>>, vector<48x64xf32>,
    return
  }
  func.func @transform_0(%arg0: i32, %arg1: i32) -> (i32, i32) {
    %c0_i32 = arith.constant 0 : i32
    %c0_i32_0 = arith.constant 0 : i32
    return %arg0, %c0_i32 : i32, i32
  }
  func.func @transform_1(%arg0: i32, %arg1: i32) -> (i32, i32) {
    %c0_i32 = arith.constant 0 : i32
    %c0_i32_0 = arith.constant 0 : i32
    return %c0_i32, %arg1 : i32, i32
  }
  func.func @transform_2(%arg0: i32, %arg1: i32) -> (i32, i32) {
    %c0_i32 = arith.constant 0 : i32
    %c0_i32_0 = arith.constant 0 : i32
    return %c0_i32, %arg1 : i32, i32
  }
  func.func @transform_3(%arg0: i32, %arg1: i32) -> (i32, i32) {
    %c0_i32 = arith.constant 0 : i32
    return %arg0, %arg1 : i32, i32
  }
  func.func @transform_4(%arg0: i32, %arg1: i32) -> (i32, i32) {
    %c0_i32 = arith.constant 0 : i32
    return %arg0, %arg1 : i32, i32
  }
}

module attributes {stable_mosaic.version = 11 : i64} {
  func.func @_attn_kernel(%arg0: i32, %arg1: memref<1x24x192xbf16, #tpu.memory_space<vmem>>, %arg2: memref<1x24x64xbf16, #tpu.memory_space<vmem>>) attributes {dimension_semantics = [#tpu.dimension_semantics<parallel>], iteration_bounds = array<i64: 2>, scalar_prefetch = 0 : i64, scratch_operands = 0 : i64, tpu.core_type = #tpu.core_type<tc>, window_params = [{transform_indices = @transform_0, window_bounds = array<i64: 1, 24, 192>}, {transform_indices = @transform_1, window_bounds = array<i64: 1, 24, 64>}]} {
    %0 = tpu.iota {dimensions = array<i32: 1>} : vector<24x24xi32>
    %c17_i32 = arith.constant 17 : i32
    %1 = vector.broadcast %c17_i32 : i32 to vector<24x24xi32>
    %2 = arith.cmpi slt, %0, %1 : vector<24x24xi32>
    %c0 = arith.constant 0 : index
    %c0_0 = arith.constant 0 : index
    %c0_1 = arith.constant 0 : index
    %3 = vector.load %arg1[%c0, %c0_0, %c0_1] : memref<1x24x192xbf16, #tpu.memory_space<vmem>>, vector<1x24x16xbf16>
    %4 = vector.shape_cast %3 : vector<1x24x16xbf16> to vector<24x16xbf16>
    %c0_2 = arith.constant 0 : index
    %c0_3 = arith.constant 0 : index
    %c16 = arith.constant 16 : index
    %5 = vector.load %arg1[%c0_2, %c0_3, %c16] : memref<1x24x192xbf16, #tpu.memory_space<vmem>>, vector<1x24x16xbf16>
    %6 = vector.shape_cast %5 : vector<1x24x16xbf16> to vector<24x16xbf16>
    %c0_4 = arith.constant 0 : index
    %c0_5 = arith.constant 0 : index
    %c32 = arith.constant 32 : index
    %7 = vector.load %arg1[%c0_4, %c0_5, %c32] : memref<1x24x192xbf16, #tpu.memory_space<vmem>>, vector<1x24x16xbf16>
    %8 = vector.shape_cast %7 : vector<1x24x16xbf16> to vector<24x16xbf16>
    %cst = arith.constant dense<0.000000e+00> : vector<24x24xf32>
    %9 = tpu.matmul %4, %6, %cst {dimension_numbers = #tpu.dot_dimension_numbers<[1], [1], [0], [0], [0, 0, 1, 0], [], []>} : vector<24x16xbf16>, vector<24x16xbf16>, vector<24x24xf32> -> vector<24x24xf32>
    %cst_6 = arith.constant -1.000000e+30 : f32
    %10 = vector.broadcast %cst_6 : f32 to vector<24x24xf32>
    %11 = arith.select %2, %9, %10 : vector<24x24xi1>, vector<24x24xf32>
    %cst_7 = arith.constant dense<0xFF800000> : vector<24xf32>
    %12 = vector.multi_reduction <maximumf>, %11, %cst_7 [1] : vector<24x24xf32> to vector<24xf32>
    %13 = vector.shape_cast %12 : vector<24xf32> to vector<24x1xf32>
    %14 = vector.broadcast %13 : vector<24x1xf32> to vector<24x24xf32>
    %15 = arith.subf %11, %14 : vector<24x24xf32>
    %16 = math.exp %15 : vector<24x24xf32>
    %cst_8 = arith.constant dense<0.000000e+00> : vector<24xf32>
    %17 = vector.multi_reduction <add>, %16, %cst_8 [1] : vector<24x24xf32> to vector<24xf32>
    %18 = vector.shape_cast %17 : vector<24xf32> to vector<24x1xf32>
    %19 = tpu.reciprocal %18 {approx = true} : vector<24x1xf32> -> vector<24x1xf32>
    %20 = vector.broadcast %19 : vector<24x1xf32> to vector<24x24xf32>
    %21 = arith.mulf %16, %20 : vector<24x24xf32>
    %22 = arith.truncf %21 : vector<24x24xf32> to vector<24x24xbf16>
    %cst_9 = arith.constant dense<0.000000e+00> : vector<24x16xf32>
    %23 = tpu.matmul %22, %8, %cst_9 {dimension_numbers = #tpu.dot_dimension_numbers<[1], [0], [0], [1], [0, 0, 1, 1], [], []>} : vector<24x24xbf16>, vector<24x16xbf16>, vector<24x16xf32> -> vector<24x16xf32>
    %c0_10 = arith.constant 0 : index
    %c0_11 = arith.constant 0 : index
    %c48 = arith.constant 48 : index
    %24 = vector.load %arg1[%c0_10, %c0_11, %c48] : memref<1x24x192xbf16, #tpu.memory_space<vmem>>, vector<1x24x16xbf16>
    %25 = vector.shape_cast %24 : vector<1x24x16xbf16> to vector<24x16xbf16>
    %c0_12 = arith.constant 0 : index
    %c0_13 = arith.constant 0 : index
    %c64 = arith.constant 64 : index
    %26 = vector.load %arg1[%c0_12, %c0_13, %c64] : memref<1x24x192xbf16, #tpu.memory_space<vmem>>, vector<1x24x16xbf16>
    %27 = vector.shape_cast %26 : vector<1x24x16xbf16> to vector<24x16xbf16>
    %c0_14 = arith.constant 0 : index
    %c0_15 = arith.constant 0 : index
    %c80 = arith.constant 80 : index
    %28 = vector.load %arg1[%c0_14, %c0_15, %c80] : memref<1x24x192xbf16, #tpu.memory_space<vmem>>, vector<1x24x16xbf16>
    %29 = vector.shape_cast %28 : vector<1x24x16xbf16> to vector<24x16xbf16>
    %cst_16 = arith.constant dense<0.000000e+00> : vector<24x24xf32>
    %30 = tpu.matmul %25, %27, %cst_16 {dimension_numbers = #tpu.dot_dimension_numbers<[1], [1], [0], [0], [0, 0, 1, 0], [], []>} : vector<24x16xbf16>, vector<24x16xbf16>, vector<24x24xf32> -> vector<24x24xf32>
    %cst_17 = arith.constant -1.000000e+30 : f32
    %31 = vector.broadcast %cst_17 : f32 to vector<24x24xf32>
    %32 = arith.select %2, %30, %31 : vector<24x24xi1>, vector<24x24xf32>
    %cst_18 = arith.constant dense<0xFF800000> : vector<24xf32>
    %33 = vector.multi_reduction <maximumf>, %32, %cst_18 [1] : vector<24x24xf32> to vector<24xf32>
    %34 = vector.shape_cast %33 : vector<24xf32> to vector<24x1xf32>
    %35 = vector.broadcast %34 : vector<24x1xf32> to vector<24x24xf32>
    %36 = arith.subf %32, %35 : vector<24x24xf32>
    %37 = math.exp %36 : vector<24x24xf32>
    %cst_19 = arith.constant dense<0.000000e+00> : vector<24xf32>
    %38 = vector.multi_reduction <add>, %37, %cst_19 [1] : vector<24x24xf32> to vector<24xf32>
    %39 = vector.shape_cast %38 : vector<24xf32> to vector<24x1xf32>
    %40 = tpu.reciprocal %39 {approx = true} : vector<24x1xf32> -> vector<24x1xf32>
    %41 = vector.broadcast %40 : vector<24x1xf32> to vector<24x24xf32>
    %42 = arith.mulf %37, %41 : vector<24x24xf32>
    %43 = arith.truncf %42 : vector<24x24xf32> to vector<24x24xbf16>
    %cst_20 = arith.constant dense<0.000000e+00> : vector<24x16xf32>
    %44 = tpu.matmul %43, %29, %cst_20 {dimension_numbers = #tpu.dot_dimension_numbers<[1], [0], [0], [1], [0, 0, 1, 1], [], []>} : vector<24x24xbf16>, vector<24x16xbf16>, vector<24x16xf32> -> vector<24x16xf32>
    %c0_21 = arith.constant 0 : index
    %c0_22 = arith.constant 0 : index
    %c96 = arith.constant 96 : index
    %45 = vector.load %arg1[%c0_21, %c0_22, %c96] : memref<1x24x192xbf16, #tpu.memory_space<vmem>>, vector<1x24x16xbf16>
    %46 = vector.shape_cast %45 : vector<1x24x16xbf16> to vector<24x16xbf16>
    %c0_23 = arith.constant 0 : index
    %c0_24 = arith.constant 0 : index
    %c112 = arith.constant 112 : index
    %47 = vector.load %arg1[%c0_23, %c0_24, %c112] : memref<1x24x192xbf16, #tpu.memory_space<vmem>>, vector<1x24x16xbf16>
    %48 = vector.shape_cast %47 : vector<1x24x16xbf16> to vector<24x16xbf16>
    %c0_25 = arith.constant 0 : index
    %c0_26 = arith.constant 0 : index
    %c128 = arith.constant 128 : index
    %49 = vector.load %arg1[%c0_25, %c0_26, %c128] : memref<1x24x192xbf16, #tpu.memory_space<vmem>>, vector<1x24x16xbf16>
    %50 = vector.shape_cast %49 : vector<1x24x16xbf16> to vector<24x16xbf16>
    %cst_27 = arith.constant dense<0.000000e+00> : vector<24x24xf32>
    %51 = tpu.matmul %46, %48, %cst_27 {dimension_numbers = #tpu.dot_dimension_numbers<[1], [1], [0], [0], [0, 0, 1, 0], [], []>} : vector<24x16xbf16>, vector<24x16xbf16>, vector<24x24xf32> -> vector<24x24xf32>
    %cst_28 = arith.constant -1.000000e+30 : f32
    %52 = vector.broadcast %cst_28 : f32 to vector<24x24xf32>
    %53 = arith.select %2, %51, %52 : vector<24x24xi1>, vector<24x24xf32>
    %cst_29 = arith.constant dense<0xFF800000> : vector<24xf32>
    %54 = vector.multi_reduction <maximumf>, %53, %cst_29 [1] : vector<24x24xf32> to vector<24xf32>
    %55 = vector.shape_cast %54 : vector<24xf32> to vector<24x1xf32>
    %56 = vector.broadcast %55 : vector<24x1xf32> to vector<24x24xf32>
    %57 = arith.subf %53, %56 : vector<24x24xf32>
    %58 = math.exp %57 : vector<24x24xf32>
    %cst_30 = arith.constant dense<0.000000e+00> : vector<24xf32>
    %59 = vector.multi_reduction <add>, %58, %cst_30 [1] : vector<24x24xf32> to vector<24xf32>
    %60 = vector.shape_cast %59 : vector<24xf32> to vector<24x1xf32>
    %61 = tpu.reciprocal %60 {approx = true} : vector<24x1xf32> -> vector<24x1xf32>
    %62 = vector.broadcast %61 : vector<24x1xf32> to vector<24x24xf32>
    %63 = arith.mulf %58, %62 : vector<24x24xf32>
    %64 = arith.truncf %63 : vector<24x24xf32> to vector<24x24xbf16>
    %cst_31 = arith.constant dense<0.000000e+00> : vector<24x16xf32>
    %65 = tpu.matmul %64, %50, %cst_31 {dimension_numbers = #tpu.dot_dimension_numbers<[1], [0], [0], [1], [0, 0, 1, 1], [], []>} : vector<24x24xbf16>, vector<24x16xbf16>, vector<24x16xf32> -> vector<24x16xf32>
    %c0_32 = arith.constant 0 : index
    %c0_33 = arith.constant 0 : index
    %c144 = arith.constant 144 : index
    %66 = vector.load %arg1[%c0_32, %c0_33, %c144] : memref<1x24x192xbf16, #tpu.memory_space<vmem>>, vector<1x24x16xbf16>
    %67 = vector.shape_cast %66 : vector<1x24x16xbf16> to vector<24x16xbf16>
    %c0_34 = arith.constant 0 : index
    %c0_35 = arith.constant 0 : index
    %c160 = arith.constant 160 : index
    %68 = vector.load %arg1[%c0_34, %c0_35, %c160] : memref<1x24x192xbf16, #tpu.memory_space<vmem>>, vector<1x24x16xbf16>
    %69 = vector.shape_cast %68 : vector<1x24x16xbf16> to vector<24x16xbf16>
    %c0_36 = arith.constant 0 : index
    %c0_37 = arith.constant 0 : index
    %c176 = arith.constant 176 : index
    %70 = vector.load %arg1[%c0_36, %c0_37, %c176] : memref<1x24x192xbf16, #tpu.memory_space<vmem>>, vector<1x24x16xbf16>
    %71 = vector.shape_cast %70 : vector<1x24x16xbf16> to vector<24x16xbf16>
    %cst_38 = arith.constant dense<0.000000e+00> : vector<24x24xf32>
    %72 = tpu.matmul %67, %69, %cst_38 {dimension_numbers = #tpu.dot_dimension_numbers<[1], [1], [0], [0], [0, 0, 1, 0], [], []>} : vector<24x16xbf16>, vector<24x16xbf16>, vector<24x24xf32> -> vector<24x24xf32>
    %cst_39 = arith.constant -1.000000e+30 : f32
    %73 = vector.broadcast %cst_39 : f32 to vector<24x24xf32>
    %74 = arith.select %2, %72, %73 : vector<24x24xi1>, vector<24x24xf32>
    %cst_40 = arith.constant dense<0xFF800000> : vector<24xf32>
    %75 = vector.multi_reduction <maximumf>, %74, %cst_40 [1] : vector<24x24xf32> to vector<24xf32>
    %76 = vector.shape_cast %75 : vector<24xf32> to vector<24x1xf32>
    %77 = vector.broadcast %76 : vector<24x1xf32> to vector<24x24xf32>
    %78 = arith.subf %74, %77 : vector<24x24xf32>
    %79 = math.exp %78 : vector<24x24xf32>
    %cst_41 = arith.constant dense<0.000000e+00> : vector<24xf32>
    %80 = vector.multi_reduction <add>, %79, %cst_41 [1] : vector<24x24xf32> to vector<24xf32>
    %81 = vector.shape_cast %80 : vector<24xf32> to vector<24x1xf32>
    %82 = tpu.reciprocal %81 {approx = true} : vector<24x1xf32> -> vector<24x1xf32>
    %83 = vector.broadcast %82 : vector<24x1xf32> to vector<24x24xf32>
    %84 = arith.mulf %79, %83 : vector<24x24xf32>
    %85 = arith.truncf %84 : vector<24x24xf32> to vector<24x24xbf16>
    %cst_42 = arith.constant dense<0.000000e+00> : vector<24x16xf32>
    %86 = tpu.matmul %85, %71, %cst_42 {dimension_numbers = #tpu.dot_dimension_numbers<[1], [0], [0], [1], [0, 0, 1, 1], [], []>} : vector<24x24xbf16>, vector<24x16xbf16>, vector<24x16xf32> -> vector<24x16xf32>
    %87 = tpu.concatenate %23, %44, %65, %86 in 1 : vector<24x16xf32>, vector<24x16xf32>, vector<24x16xf32>, vector<24x16xf32> -> vector<24x64xf32>
    %88 = arith.truncf %87 : vector<24x64xf32> to vector<24x64xbf16>
    %c0_43 = arith.constant 0 : index
    %c0_44 = arith.constant 0 : index
    %c0_45 = arith.constant 0 : index
    %89 = vector.load %arg2[%c0_43, %c0_44, %c0_45] : memref<1x24x64xbf16, #tpu.memory_space<vmem>>, vector<1x24x64xbf16>
    %90 = vector.shape_cast %89 : vector<1x24x64xbf16> to vector<24x64xbf16>
    %91 = vector.shape_cast %88 : vector<24x64xbf16> to vector<1x24x64xbf16>
    tpu.vector_store %arg2[%c0_43, %c0_44, %c0_45], %91 {strides = array<i32>} : memref<1x24x64xbf16, #tpu.memory_space<vmem>>, vector<1x24x64xbf16>,
    return
  }
  func.func @transform_0(%arg0: i32) -> (i32, i32, i32) {
    %c0_i32 = arith.constant 0 : i32
    %c0_i32_0 = arith.constant 0 : i32
    %c0_i32_1 = arith.constant 0 : i32
    return %arg0, %c0_i32, %c0_i32_0 : i32, i32, i32
  }
  func.func @transform_1(%arg0: i32) -> (i32, i32, i32) {
    %c0_i32 = arith.constant 0 : i32
    %c0_i32_0 = arith.constant 0 : i32
    %c0_i32_1 = arith.constant 0 : i32
    return %arg0, %c0_i32, %c0_i32_0 : i32, i32, i32
  }
}

module attributes {stable_mosaic.version = 11 : i64} {
  func.func @kernel(%arg0: i32, %arg1: i32, %arg2: memref<48x64xf32, #tpu.memory_space<vmem>>, %arg3: memref<64x192xbf16, #tpu.memory_space<vmem>>, %arg4: memref<1x192xf32, #tpu.memory_space<vmem>>, %arg5: memref<1x64xf32, #tpu.memory_space<vmem>>, %arg6: memref<1x64xf32, #tpu.memory_space<vmem>>, %arg7: memref<48x192xbf16, #tpu.memory_space<vmem>>, %arg8: memref<48x64xbf16, #tpu.memory_space<vmem>>) attributes {dimension_semantics = [#tpu.dimension_semantics<parallel>, #tpu.dimension_semantics<arbitrary>], iteration_bounds = array<i64: 1, 1>, scalar_prefetch = 0 : i64, scratch_operands = 1 : i64, tpu.core_type = #tpu.core_type<tc>, window_params = [{transform_indices = @transform_0, window_bounds = array<i64: 48, 64>}, {transform_indices = @transform_1, window_bounds = array<i64: 64, 192>}, {transform_indices = @transform_2, window_bounds = array<i64: 1, 192>}, {pipeline_mode = #tpu.pipeline_mode<synchronous>, transform_indices = @transform_3, window_bounds = array<i64: 1, 64>}, {pipeline_mode = #tpu.pipeline_mode<synchronous>, transform_indices = @transform_4, window_bounds = array<i64: 1, 64>}, {transform_indices = @transform_5, window_bounds = array<i64: 48, 192>}]} {
    %c0_i32 = arith.constant 0 : i32
    %0 = arith.cmpi eq, %arg1, %c0_i32 : i32
    %1 = arith.extui %0 : i1 to i32
    %c0_i32_0 = arith.constant 0 : i32
    %2 = arith.cmpi ne, %1, %c0_i32_0 : i32
    scf.if %2 {
      %c0_8 = arith.constant 0 : index
      %c0_9 = arith.constant 0 : index
      %11 = vector.load %arg2[%c0_8, %c0_9] : memref<48x64xf32, #tpu.memory_space<vmem>>, vector<48x64xf32>
      %cst_10 = arith.constant dense<0.000000e+00> : vector<48xf32>
      %12 = vector.multi_reduction <add>, %11, %cst_10 [1] : vector<48x64xf32> to vector<48xf32>
      %13 = vector.shape_cast %12 : vector<48xf32> to vector<48x1xf32>
      %cst_11 = arith.constant 6.400000e+01 : f32
      %14 = vector.broadcast %cst_11 : f32 to vector<48x1xf32>
      %15 = arith.divf %13, %14 : vector<48x1xf32>
      %16 = vector.broadcast %15 : vector<48x1xf32> to vector<48x64xf32>
      %17 = arith.subf %11, %16 : vector<48x64xf32>
      %18 = arith.mulf %17, %17 : vector<48x64xf32>
      %cst_12 = arith.constant dense<0.000000e+00> : vector<48xf32>
      %19 = vector.multi_reduction <add>, %18, %cst_12 [1] : vector<48x64xf32> to vector<48xf32>
      %20 = vector.shape_cast %19 : vector<48xf32> to vector<48x1xf32>
      %cst_13 = arith.constant 6.400000e+01 : f32
      %21 = vector.broadcast %cst_13 : f32 to vector<48x1xf32>
      %22 = arith.divf %20, %21 : vector<48x1xf32>
      %cst_14 = arith.constant 9.99999974E-6 : f32
      %23 = vector.broadcast %cst_14 : f32 to vector<48x1xf32>
      %24 = arith.addf %22, %23 : vector<48x1xf32>
      %25 = math.rsqrt %24 : vector<48x1xf32>
      %26 = vector.broadcast %25 : vector<48x1xf32> to vector<48x64xf32>
      %27 = arith.mulf %17, %26 : vector<48x64xf32>
      %c0_15 = arith.constant 0 : index
      %c0_16 = arith.constant 0 : index
      %28 = vector.load %arg5[%c0_15, %c0_16] : memref<1x64xf32, #tpu.memory_space<vmem>>, vector<1x64xf32>
      %29 = vector.broadcast %28 : vector<1x64xf32> to vector<48x64xf32>
      %30 = arith.mulf %27, %29 : vector<48x64xf32>
      %c0_17 = arith.constant 0 : index
      %c0_18 = arith.constant 0 : index
      %31 = vector.load %arg6[%c0_17, %c0_18] : memref<1x64xf32, #tpu.memory_space<vmem>>, vector<1x64xf32>
      %32 = vector.broadcast %31 : vector<1x64xf32> to vector<48x64xf32>
      %33 = arith.addf %30, %32 : vector<48x64xf32>
      %34 = arith.truncf %33 : vector<48x64xf32> to vector<48x64xbf16>
      %c0_19 = arith.constant 0 : index
      %c0_20 = arith.constant 0 : index
      %35 = vector.load %arg8[%c0_19, %c0_20] : memref<48x64xbf16, #tpu.memory_space<vmem>>, vector<48x64xbf16>
      tpu.vector_store %arg8[%c0_19, %c0_20], %34 {strides = array<i32>} : memref<48x64xbf16, #tpu.memory_space<vmem>>, vector<48x64xbf16>,
    } else {
    }
    %c0 = arith.constant 0 : index
    %c0_1 = arith.constant 0 : index
    %3 = vector.load %arg8[%c0, %c0_1] : memref<48x64xbf16, #tpu.memory_space<vmem>>, vector<48x64xbf16>
    %c0_2 = arith.constant 0 : index
    %c0_3 = arith.constant 0 : index
    %4 = vector.load %arg3[%c0_2, %c0_3] : memref<64x192xbf16, #tpu.memory_space<vmem>>, vector<64x192xbf16>
    %cst = arith.constant dense<0.000000e+00> : vector<48x192xf32>
    %5 = tpu.matmul %3, %4, %cst {dimension_numbers = #tpu.dot_dimension_numbers<[1], [0], [0], [1], [0, 0, 1, 1], [], []>} : vector<48x64xbf16>, vector<64x192xbf16>, vector<48x192xf32> -> vector<48x192xf32>
    %c0_4 = arith.constant 0 : index
    %c0_5 = arith.constant 0 : index
    %6 = vector.load %arg4[%c0_4, %c0_5] : memref<1x192xf32, #tpu.memory_space<vmem>>, vector<1x192xf32>
    %7 = vector.broadcast %6 : vector<1x192xf32> to vector<48x192xf32>
    %8 = arith.addf %5, %7 : vector<48x192xf32>
    %9 = arith.truncf %8 : vector<48x192xf32> to vector<48x192xbf16>
    %c0_6 = arith.constant 0 : index
    %c0_7 = arith.constant 0 : index
    %10 = vector.load %arg7[%c0_6, %c0_7] : memref<48x192xbf16, #tpu.memory_space<vmem>>, vector<48x192xbf16>
    tpu.vector_store %arg7[%c0_6, %c0_7], %9 {strides = array<i32>} : memref<48x192xbf16, #tpu.memory_space<vmem>>, vector<48x192xbf16>,
    return
  }
  func.func @transform_0(%arg0: i32, %arg1: i32) -> (i32, i32) {
    %c0_i32 = arith.constant 0 : i32
    %c0_i32_0 = arith.constant 0 : i32
    return %arg0, %c0_i32 : i32, i32
  }
  func.func @transform_1(%arg0: i32, %arg1: i32) -> (i32, i32) {
    %c0_i32 = arith.constant 0 : i32
    %c0_i32_0 = arith.constant 0 : i32
    return %c0_i32, %arg1 : i32, i32
  }
  func.func @transform_2(%arg0: i32, %arg1: i32) -> (i32, i32) {
    %c0_i32 = arith.constant 0 : i32
    %c0_i32_0 = arith.constant 0 : i32
    return %c0_i32, %arg1 : i32, i32
  }
  func.func @transform_3(%arg0: i32, %arg1: i32) -> (i32, i32) {
    %c0_i32 = arith.constant 0 : i32
    %c0_i32_0 = arith.constant 0 : i32
    %c0_i32_1 = arith.constant 0 : i32
    return %c0_i32, %c0_i32_0 : i32, i32
  }
  func.func @transform_4(%arg0: i32, %arg1: i32) -> (i32, i32) {
    %c0_i32 = arith.constant 0 : i32
    %c0_i32_0 = arith.constant 0 : i32
    %c0_i32_1 = arith.constant 0 : i32
    return %c0_i32, %c0_i32_0 : i32, i32
  }
  func.func @transform_5(%arg0: i32, %arg1: i32) -> (i32, i32) {
    %c0_i32 = arith.constant 0 : i32
    return %arg0, %arg1 : i32, i32
  }
}

module attributes {stable_mosaic.version = 11 : i64} {
  func.func @kernel(%arg0: i32, %arg1: i32, %arg2: memref<48x64xf32, #tpu.memory_space<vmem>>, %arg3: memref<64x256xbf16, #tpu.memory_space<vmem>>, %arg4: memref<1x256xf32, #tpu.memory_space<vmem>>, %arg5: memref<1x64xf32, #tpu.memory_space<vmem>>, %arg6: memref<1x64xf32, #tpu.memory_space<vmem>>, %arg7: memref<48x256xbf16, #tpu.memory_space<vmem>>, %arg8: memref<48x64xbf16, #tpu.memory_space<vmem>>) attributes {dimension_semantics = [#tpu.dimension_semantics<parallel>, #tpu.dimension_semantics<arbitrary>], iteration_bounds = array<i64: 1, 1>, scalar_prefetch = 0 : i64, scratch_operands = 1 : i64, tpu.core_type = #tpu.core_type<tc>, window_params = [{transform_indices = @transform_0, window_bounds = array<i64: 48, 64>}, {transform_indices = @transform_1, window_bounds = array<i64: 64, 256>}, {transform_indices = @transform_2, window_bounds = array<i64: 1, 256>}, {pipeline_mode = #tpu.pipeline_mode<synchronous>, transform_indices = @transform_3, window_bounds = array<i64: 1, 64>}, {pipeline_mode = #tpu.pipeline_mode<synchronous>, transform_indices = @transform_4, window_bounds = array<i64: 1, 64>}, {transform_indices = @transform_5, window_bounds = array<i64: 48, 256>}]} {
    %c0_i32 = arith.constant 0 : i32
    %0 = arith.cmpi eq, %arg1, %c0_i32 : i32
    %1 = arith.extui %0 : i1 to i32
    %c0_i32_0 = arith.constant 0 : i32
    %2 = arith.cmpi ne, %1, %c0_i32_0 : i32
    scf.if %2 {
      %c0_11 = arith.constant 0 : index
      %c0_12 = arith.constant 0 : index
      %19 = vector.load %arg2[%c0_11, %c0_12] : memref<48x64xf32, #tpu.memory_space<vmem>>, vector<48x64xf32>
      %cst_13 = arith.constant dense<0.000000e+00> : vector<48xf32>
      %20 = vector.multi_reduction <add>, %19, %cst_13 [1] : vector<48x64xf32> to vector<48xf32>
      %21 = vector.shape_cast %20 : vector<48xf32> to vector<48x1xf32>
      %cst_14 = arith.constant 6.400000e+01 : f32
      %22 = vector.broadcast %cst_14 : f32 to vector<48x1xf32>
      %23 = arith.divf %21, %22 : vector<48x1xf32>
      %24 = vector.broadcast %23 : vector<48x1xf32> to vector<48x64xf32>
      %25 = arith.subf %19, %24 : vector<48x64xf32>
      %26 = arith.mulf %25, %25 : vector<48x64xf32>
      %cst_15 = arith.constant dense<0.000000e+00> : vector<48xf32>
      %27 = vector.multi_reduction <add>, %26, %cst_15 [1] : vector<48x64xf32> to vector<48xf32>
      %28 = vector.shape_cast %27 : vector<48xf32> to vector<48x1xf32>
      %cst_16 = arith.constant 6.400000e+01 : f32
      %29 = vector.broadcast %cst_16 : f32 to vector<48x1xf32>
      %30 = arith.divf %28, %29 : vector<48x1xf32>
      %cst_17 = arith.constant 9.99999974E-6 : f32
      %31 = vector.broadcast %cst_17 : f32 to vector<48x1xf32>
      %32 = arith.addf %30, %31 : vector<48x1xf32>
      %33 = math.rsqrt %32 : vector<48x1xf32>
      %34 = vector.broadcast %33 : vector<48x1xf32> to vector<48x64xf32>
      %35 = arith.mulf %25, %34 : vector<48x64xf32>
      %c0_18 = arith.constant 0 : index
      %c0_19 = arith.constant 0 : index
      %36 = vector.load %arg5[%c0_18, %c0_19] : memref<1x64xf32, #tpu.memory_space<vmem>>, vector<1x64xf32>
      %37 = vector.broadcast %36 : vector<1x64xf32> to vector<48x64xf32>
      %38 = arith.mulf %35, %37 : vector<48x64xf32>
      %c0_20 = arith.constant 0 : index
      %c0_21 = arith.constant 0 : index
      %39 = vector.load %arg6[%c0_20, %c0_21] : memref<1x64xf32, #tpu.memory_space<vmem>>, vector<1x64xf32>
      %40 = vector.broadcast %39 : vector<1x64xf32> to vector<48x64xf32>
      %41 = arith.addf %38, %40 : vector<48x64xf32>
      %42 = arith.truncf %41 : vector<48x64xf32> to vector<48x64xbf16>
      %c0_22 = arith.constant 0 : index
      %c0_23 = arith.constant 0 : index
      %43 = vector.load %arg8[%c0_22, %c0_23] : memref<48x64xbf16, #tpu.memory_space<vmem>>, vector<48x64xbf16>
      tpu.vector_store %arg8[%c0_22, %c0_23], %42 {strides = array<i32>} : memref<48x64xbf16, #tpu.memory_space<vmem>>, vector<48x64xbf16>,
    } else {
    }
    %c0 = arith.constant 0 : index
    %c0_1 = arith.constant 0 : index
    %3 = vector.load %arg8[%c0, %c0_1] : memref<48x64xbf16, #tpu.memory_space<vmem>>, vector<48x64xbf16>
    %c0_2 = arith.constant 0 : index
    %c0_3 = arith.constant 0 : index
    %4 = vector.load %arg3[%c0_2, %c0_3] : memref<64x256xbf16, #tpu.memory_space<vmem>>, vector<64x256xbf16>
    %cst = arith.constant dense<0.000000e+00> : vector<48x256xf32>
    %5 = tpu.matmul %3, %4, %cst {dimension_numbers = #tpu.dot_dimension_numbers<[1], [0], [0], [1], [0, 0, 1, 1], [], []>} : vector<48x64xbf16>, vector<64x256xbf16>, vector<48x256xf32> -> vector<48x256xf32>
    %c0_4 = arith.constant 0 : index
    %c0_5 = arith.constant 0 : index
    %6 = vector.load %arg4[%c0_4, %c0_5] : memref<1x256xf32, #tpu.memory_space<vmem>>, vector<1x256xf32>
    %7 = vector.broadcast %6 : vector<1x256xf32> to vector<48x256xf32>
    %8 = arith.addf %5, %7 : vector<48x256xf32>
    %cst_6 = arith.constant 5.000000e-01 : f32
    %9 = vector.broadcast %cst_6 : f32 to vector<48x256xf32>
    %10 = arith.mulf %9, %8 : vector<48x256xf32>
    %cst_7 = arith.constant 0.707106769 : f32
    %11 = vector.broadcast %cst_7 : f32 to vector<48x256xf32>
    %12 = arith.mulf %8, %11 : vector<48x256xf32>
    %13 = math.erf %12 : vector<48x256xf32>
    %cst_8 = arith.constant 1.000000e+00 : f32
    %14 = vector.broadcast %cst_8 : f32 to vector<48x256xf32>
    %15 = arith.addf %14, %13 : vector<48x256xf32>
    %16 = arith.mulf %10, %15 : vector<48x256xf32>
    %17 = arith.truncf %16 : vector<48x256xf32> to vector<48x256xbf16>
    %c0_9 = arith.constant 0 : index
    %c0_10 = arith.constant 0 : index
    %18 = vector.load %arg7[%c0_9, %c0_10] : memref<48x256xbf16, #tpu.memory_space<vmem>>, vector<48x256xbf16>
    tpu.vector_store %arg7[%c0_9, %c0_10], %17 {strides = array<i32>} : memref<48x256xbf16, #tpu.memory_space<vmem>>, vector<48x256xbf16>,
    return
  }
  func.func @transform_0(%arg0: i32, %arg1: i32) -> (i32, i32) {
    %c0_i32 = arith.constant 0 : i32
    %c0_i32_0 = arith.constant 0 : i32
    return %arg0, %c0_i32 : i32, i32
  }
  func.func @transform_1(%arg0: i32, %arg1: i32) -> (i32, i32) {
    %c0_i32 = arith.constant 0 : i32
    %c0_i32_0 = arith.constant 0 : i32
    return %c0_i32, %arg1 : i32, i32
  }
  func.func @transform_2(%arg0: i32, %arg1: i32) -> (i32, i32) {
    %c0_i32 = arith.constant 0 : i32
    %c0_i32_0 = arith.constant 0 : i32
    return %c0_i32, %arg1 : i32, i32
  }
  func.func @transform_3(%arg0: i32, %arg1: i32) -> (i32, i32) {
    %c0_i32 = arith.constant 0 : i32
    %c0_i32_0 = arith.constant 0 : i32
    %c0_i32_1 = arith.constant 0 : i32
    return %c0_i32, %c0_i32_0 : i32, i32
  }
  func.func @transform_4(%arg0: i32, %arg1: i32) -> (i32, i32) {
    %c0_i32 = arith.constant 0 : i32
    %c0_i32_0 = arith.constant 0 : i32
    %c0_i32_1 = arith.constant 0 : i32
    return %c0_i32, %c0_i32_0 : i32, i32
  }
  func.func @transform_5(%arg0: i32, %arg1: i32) -> (i32, i32) {
    %c0_i32 = arith.constant 0 : i32
    return %arg0, %arg1 : i32, i32
  }
}

module attributes {stable_mosaic.version = 11 : i64} {
  func.func @kernel(%arg0: i32, %arg1: i32, %arg2: memref<48x256xbf16, #tpu.memory_space<vmem>>, %arg3: memref<256x64xbf16, #tpu.memory_space<vmem>>, %arg4: memref<1x64xf32, #tpu.memory_space<vmem>>, %arg5: memref<48x64xf32, #tpu.memory_space<vmem>>, %arg6: memref<48x64xf32, #tpu.memory_space<vmem>>) attributes {dimension_semantics = [#tpu.dimension_semantics<parallel>, #tpu.dimension_semantics<parallel>], iteration_bounds = array<i64: 1, 1>, scalar_prefetch = 0 : i64, scratch_operands = 0 : i64, tpu.core_type = #tpu.core_type<tc>, window_params = [{transform_indices = @transform_0, window_bounds = array<i64: 48, 256>}, {transform_indices = @transform_1, window_bounds = array<i64: 256, 64>}, {transform_indices = @transform_2, window_bounds = array<i64: 1, 64>}, {transform_indices = @transform_3, window_bounds = array<i64: 48, 64>}, {transform_indices = @transform_4, window_bounds = array<i64: 48, 64>}]} {
    %c0 = arith.constant 0 : index
    %c0_0 = arith.constant 0 : index
    %0 = vector.load %arg2[%c0, %c0_0] : memref<48x256xbf16, #tpu.memory_space<vmem>>, vector<48x256xbf16>
    %c0_1 = arith.constant 0 : index
    %c0_2 = arith.constant 0 : index
    %1 = vector.load %arg3[%c0_1, %c0_2] : memref<256x64xbf16, #tpu.memory_space<vmem>>, vector<256x64xbf16>
    %cst = arith.constant dense<0.000000e+00> : vector<48x64xf32>
    %2 = tpu.matmul %0, %1, %cst {dimension_numbers = #tpu.dot_dimension_numbers<[1], [0], [0], [1], [0, 0, 1, 1], [], []>} : vector<48x256xbf16>, vector<256x64xbf16>, vector<48x64xf32> -> vector<48x64xf32>
    %c0_3 = arith.constant 0 : index
    %c0_4 = arith.constant 0 : index
    %3 = vector.load %arg4[%c0_3, %c0_4] : memref<1x64xf32, #tpu.memory_space<vmem>>, vector<1x64xf32>
    %4 = vector.broadcast %3 : vector<1x64xf32> to vector<48x64xf32>
    %5 = arith.addf %2, %4 : vector<48x64xf32>
    %c0_5 = arith.constant 0 : index
    %c0_6 = arith.constant 0 : index
    %6 = vector.load %arg5[%c0_5, %c0_6] : memref<48x64xf32, #tpu.memory_space<vmem>>, vector<48x64xf32>
    %7 = arith.addf %5, %6 : vector<48x64xf32>
    %c0_7 = arith.constant 0 : index
    %c0_8 = arith.constant 0 : index
    %8 = vector.load %arg6[%c0_7, %c0_8] : memref<48x64xf32, #tpu.memory_space<vmem>>, vector<48x64xf32>
    tpu.vector_store %arg6[%c0_7, %c0_8], %7 {strides = array<i32>} : memref<48x64xf32, #tpu.memory_space<vmem>>, vector<48x64xf32>,
    return
  }
  func.func @transform_0(%arg0: i32, %arg1: i32) -> (i32, i32) {
    %c0_i32 = arith.constant 0 : i32
    %c0_i32_0 = arith.constant 0 : i32
    return %arg0, %c0_i32 : i32, i32
  }
  func.func @transform_1(%arg0: i32, %arg1: i32) -> (i32, i32) {
    %c0_i32 = arith.constant 0 : i32
    %c0_i32_0 = arith.constant 0 : i32
    return %c0_i32, %arg1 : i32, i32
  }
  func.func @transform_2(%arg0: i32, %arg1: i32) -> (i32, i32) {
    %c0_i32 = arith.constant 0 : i32
    %c0_i32_0 = arith.constant 0 : i32
    return %c0_i32, %arg1 : i32, i32
  }
  func.func @transform_3(%arg0: i32, %arg1: i32) -> (i32, i32) {
    %c0_i32 = arith.constant 0 : i32
    return %arg0, %arg1 : i32, i32
  }
  func.func @transform_4(%arg0: i32, %arg1: i32) -> (i32, i32) {
    %c0_i32 = arith.constant 0 : i32
    return %arg0, %arg1 : i32, i32
  }
}

module attributes {stable_mosaic.version = 11 : i64} {
  func.func @kernel(%arg0: i32, %arg1: i32, %arg2: memref<2x64xf32, #tpu.memory_space<vmem>>, %arg3: memref<64x16xbf16, #tpu.memory_space<vmem>>, %arg4: memref<1x16xf32, #tpu.memory_space<vmem>>, %arg5: memref<1x64xf32, #tpu.memory_space<vmem>>, %arg6: memref<1x64xf32, #tpu.memory_space<vmem>>, %arg7: memref<2x16xf32, #tpu.memory_space<vmem>>, %arg8: memref<2x64xbf16, #tpu.memory_space<vmem>>) attributes {dimension_semantics = [#tpu.dimension_semantics<parallel>, #tpu.dimension_semantics<arbitrary>], iteration_bounds = array<i64: 1, 1>, scalar_prefetch = 0 : i64, scratch_operands = 1 : i64, tpu.core_type = #tpu.core_type<tc>, window_params = [{transform_indices = @transform_0, window_bounds = array<i64: 2, 64>}, {transform_indices = @transform_1, window_bounds = array<i64: 64, 16>}, {transform_indices = @transform_2, window_bounds = array<i64: 1, 16>}, {pipeline_mode = #tpu.pipeline_mode<synchronous>, transform_indices = @transform_3, window_bounds = array<i64: 1, 64>}, {pipeline_mode = #tpu.pipeline_mode<synchronous>, transform_indices = @transform_4, window_bounds = array<i64: 1, 64>}, {transform_indices = @transform_5, window_bounds = array<i64: 2, 16>}]} {
    %c0_i32 = arith.constant 0 : i32
    %0 = arith.cmpi eq, %arg1, %c0_i32 : i32
    %1 = arith.extui %0 : i1 to i32
    %c0_i32_0 = arith.constant 0 : i32
    %2 = arith.cmpi ne, %1, %c0_i32_0 : i32
    scf.if %2 {
      %c0_8 = arith.constant 0 : index
      %c0_9 = arith.constant 0 : index
      %10 = vector.load %arg2[%c0_8, %c0_9] : memref<2x64xf32, #tpu.memory_space<vmem>>, vector<2x64xf32>
      %cst_10 = arith.constant dense<0.000000e+00> : vector<2xf32>
      %11 = vector.multi_reduction <add>, %10, %cst_10 [1] : vector<2x64xf32> to vector<2xf32>
      %12 = vector.shape_cast %11 : vector<2xf32> to vector<2x1xf32>
      %cst_11 = arith.constant 6.400000e+01 : f32
      %13 = vector.broadcast %cst_11 : f32 to vector<2x1xf32>
      %14 = arith.divf %12, %13 : vector<2x1xf32>
      %15 = vector.broadcast %14 : vector<2x1xf32> to vector<2x64xf32>
      %16 = arith.subf %10, %15 : vector<2x64xf32>
      %17 = arith.mulf %16, %16 : vector<2x64xf32>
      %cst_12 = arith.constant dense<0.000000e+00> : vector<2xf32>
      %18 = vector.multi_reduction <add>, %17, %cst_12 [1] : vector<2x64xf32> to vector<2xf32>
      %19 = vector.shape_cast %18 : vector<2xf32> to vector<2x1xf32>
      %cst_13 = arith.constant 6.400000e+01 : f32
      %20 = vector.broadcast %cst_13 : f32 to vector<2x1xf32>
      %21 = arith.divf %19, %20 : vector<2x1xf32>
      %cst_14 = arith.constant 9.99999974E-6 : f32
      %22 = vector.broadcast %cst_14 : f32 to vector<2x1xf32>
      %23 = arith.addf %21, %22 : vector<2x1xf32>
      %24 = math.rsqrt %23 : vector<2x1xf32>
      %25 = vector.broadcast %24 : vector<2x1xf32> to vector<2x64xf32>
      %26 = arith.mulf %16, %25 : vector<2x64xf32>
      %c0_15 = arith.constant 0 : index
      %c0_16 = arith.constant 0 : index
      %27 = vector.load %arg5[%c0_15, %c0_16] : memref<1x64xf32, #tpu.memory_space<vmem>>, vector<1x64xf32>
      %28 = vector.broadcast %27 : vector<1x64xf32> to vector<2x64xf32>
      %29 = arith.mulf %26, %28 : vector<2x64xf32>
      %c0_17 = arith.constant 0 : index
      %c0_18 = arith.constant 0 : index
      %30 = vector.load %arg6[%c0_17, %c0_18] : memref<1x64xf32, #tpu.memory_space<vmem>>, vector<1x64xf32>
      %31 = vector.broadcast %30 : vector<1x64xf32> to vector<2x64xf32>
      %32 = arith.addf %29, %31 : vector<2x64xf32>
      %33 = arith.truncf %32 : vector<2x64xf32> to vector<2x64xbf16>
      %c0_19 = arith.constant 0 : index
      %c0_20 = arith.constant 0 : index
      %34 = vector.load %arg8[%c0_19, %c0_20] : memref<2x64xbf16, #tpu.memory_space<vmem>>, vector<2x64xbf16>
      tpu.vector_store %arg8[%c0_19, %c0_20], %33 {strides = array<i32>} : memref<2x64xbf16, #tpu.memory_space<vmem>>, vector<2x64xbf16>,
    } else {
    }
    %c0 = arith.constant 0 : index
    %c0_1 = arith.constant 0 : index
    %3 = vector.load %arg8[%c0, %c0_1] : memref<2x64xbf16, #tpu.memory_space<vmem>>, vector<2x64xbf16>
    %c0_2 = arith.constant 0 : index
    %c0_3 = arith.constant 0 : index
    %4 = vector.load %arg3[%c0_2, %c0_3] : memref<64x16xbf16, #tpu.memory_space<vmem>>, vector<64x16xbf16>
    %cst = arith.constant dense<0.000000e+00> : vector<2x16xf32>
    %5 = tpu.matmul %3, %4, %cst {dimension_numbers = #tpu.dot_dimension_numbers<[1], [0], [0], [1], [0, 0, 1, 1], [], []>} : vector<2x64xbf16>, vector<64x16xbf16>, vector<2x16xf32> -> vector<2x16xf32>
    %c0_4 = arith.constant 0 : index
    %c0_5 = arith.constant 0 : index
    %6 = vector.load %arg4[%c0_4, %c0_5] : memref<1x16xf32, #tpu.memory_space<vmem>>, vector<1x16xf32>
    %7 = vector.broadcast %6 : vector<1x16xf32> to vector<2x16xf32>
    %8 = arith.addf %5, %7 : vector<2x16xf32>
    %c0_6 = arith.constant 0 : index
    %c0_7 = arith.constant 0 : index
    %9 = vector.load %arg7[%c0_6, %c0_7] : memref<2x16xf32, #tpu.memory_space<vmem>>, vector<2x16xf32>
    tpu.vector_store %arg7[%c0_6, %c0_7], %8 {strides = array<i32>} : memref<2x16xf32, #tpu.memory_space<vmem>>, vector<2x16xf32>,
    return
  }
  func.func @transform_0(%arg0: i32, %arg1: i32) -> (i32, i32) {
    %c0_i32 = arith.constant 0 : i32
    %c0_i32_0 = arith.constant 0 : i32
    return %arg0, %c0_i32 : i32, i32
  }
  func.func @transform_1(%arg0: i32, %arg1: i32) -> (i32, i32) {
    %c0_i32 = arith.constant 0 : i32
    %c0_i32_0 = arith.constant 0 : i32
    return %c0_i32, %arg1 : i32, i32
  }
  func.func @transform_2(%arg0: i32, %arg1: i32) -> (i32, i32) {
    %c0_i32 = arith.constant 0 : i32
    %c0_i32_0 = arith.constant 0 : i32
    return %c0_i32, %arg1 : i32, i32
  }
  func.func @transform_3(%arg0: i32, %arg1: i32) -> (i32, i32) {
    %c0_i32 = arith.constant 0 : i32
    %c0_i32_0 = arith.constant 0 : i32
    %c0_i32_1 = arith.constant 0 : i32
    return %c0_i32, %c0_i32_0 : i32, i32
  }
  func.func @transform_4(%arg0: i32, %arg1: i32) -> (i32, i32) {
    %c0_i32 = arith.constant 0 : i32
    %c0_i32_0 = arith.constant 0 : i32
    %c0_i32_1 = arith.constant 0 : i32
    return %c0_i32, %c0_i32_0 : i32, i32
  }
  func.func @transform_5(%arg0: i32, %arg1: i32) -> (i32, i32) {
    %c0_i32 = arith.constant 0 : i32
    return %arg0, %arg1 : i32, i32
  }
}

</mosaic_0001>

<llo_original>
// kernel: vit_forward.12
$region0: #{vit_forward.12}
  #allocation0 [shape = 'u32[]', space=smem, size = 0x4, offset = 0x4, fixed_abs, tag = 'smem constant byte address 0x4 - core index']
  #allocation1 [shape = 'u32[144,128]{1,0:T(1,128)}', space=vmem, size = 0x12000, scoped, tag = 'internal scratch']
  %s0 = inlined_call_operand.vmem [shape: f32[32,48], index: 0, kind: input, shape index: {}]
  %s1 = inlined_call_operand.vmem [shape: bf16[48,64], index: 1, kind: input, shape index: {}]
  %s2 = inlined_call_operand.vmem [shape: f32[1,64], index: 2, kind: input, shape index: {}]
  %s3 = inlined_call_operand.vmem [shape: f32[32,64], index: 3, kind: output, shape index: {}]
  %s4 = sld [smem:[#allocation0]]
  $region22: #{vit_forward.12} parent=0
    _
  %s6 = ssub.s32 1, %s4
  %s7 = scalar_select 0, %s6, %s4
  // Predicated region
  $region2: #{vit_forward.12} parent=0 // pred_check
    _
  $region3: #{vit_forward.12} parent=0 // pred_check_branch
    %9 = sbr.rel (0) target = $region5
  $region4: #{vit_forward.12} parent=0 // pred_region
    _
  $region5: #{vit_forward.12} parent=0 // pred_fallthru
    _
  // Predicated region
  $region6: #{vit_forward.12} parent=0 // pred_check
    _
  $region7: #{vit_forward.12} parent=0 // pred_check_branch
    %11 = sbr.rel (0) target = $region9
  $region8: #{vit_forward.12} parent=0 // pred_region
    _
  $region9: #{vit_forward.12} parent=0 // pred_fallthru
    _
  // Predicated region
  $region10: #{vit_forward.12} parent=0 // pred_check
    _
  $region11: #{vit_forward.12} parent=0 // pred_check_branch
    %13 = sbr.rel (0) target = $region13
  $region12: #{vit_forward.12} parent=0 // pred_region
    _
  $region13: #{vit_forward.12} parent=0 // pred_fallthru
    _
  %v15 = vld [vmem:[%s0] sm:$0xff]
  %v16 = vld [vmem:[%s0 + $0x8] sm:$0xff]
  %v17 = vld [vmem:[%s0 + $0x10] sm:$0xff]
  %v18 = vld [vmem:[%s0 + $0x18] sm:$0xff]
  %v19 = vpack.c.bf16 %v16, %v15
  %v20 = vpack.c.bf16 %v18, %v17
  %v21 = vld [vmem:[%s1] sm:$0xf]
  %v22 = vld [vmem:[%s1 + $0x4] sm:$0xf]
  %v23 = vld [vmem:[%s1 + $0x8] sm:$0xf]
  %v24 = vld [vmem:[%s1 + $0xc] sm:$0xf]
  %v25 = vld [vmem:[%s1 + $0x10] sm:$0xf]
  %v26 = vld [vmem:[%s1 + $0x14] sm:$0xf]
  %v27 = vld [vmem:[%s2] sm:$0x1]
  %v29 = vlaneseq
  %v30 = vshrl.u32 %v29, 7
  %v31 = vsub.s32 0, %v30
  %v32 = vrot.slane %v27, %v31
  %v40 = vunpack.c.l.b16 %v21
  %v41 = vunpack.c.l.b16 %v22
  %v42 = vunpack.c.l.b16 %v23
  %v43 = vunpack.c.l.b16 %v24
  %v44 = vunpack.c.l.b16 %v25
  %v45 = vunpack.c.l.b16 %v26
  %v46 = vpack.c.b16 %v41, %v40
  %v47 = vpack.c.b16 %v43, %v42
  %v48 = vpack.c.b16 %v45, %v44
  %vm52 = vcmask 392192
  %v54 = vsel %vm52, %v19, 0
  %v57 = vsel %vm52, %v20, 0
  %59 = vmatprep.subr.bf16.mxu0 0
  %60 = vmatpush1.bf16.msra.mxu0 %v46
  %61 = vmatprep.subr.bf16.mxu0 0
  %62 = vmatpush1.bf16.msra.mxu0 %v47
  %63 = vmatprep.subr.bf16.mxu0 0
  %64 = vmatpush1.bf16.msra.mxu0 %v48
  %65 = vmatprep.subr.bf16.mxu0 0
  %66 = vmatpush1.bf16.msra.mxu0 0
  %67 = vmatprep.subr.bf16.mxu0 0
  %68 = vmatpush1.bf16.msra.mxu0 0
  %69 = vmatprep.subr.bf16.mxu0 0
  %70 = vmatpush1.bf16.msra.mxu0 0
  %71 = vmatprep.subr.bf16.mxu0 0
  %72 = vmatpush1.bf16.msra.mxu0 0
  %73 = vmatprep.subr.bf16.mxu0 0
  %74 = vmatpush1.bf16.msra.mxu0 0
  %75 = vmatprep.subr.bf16.mxu0 0
  %76 = vmatpush1.bf16.msra.mxu0 0
  %77 = vmatprep.subr.bf16.mxu0 0
  %78 = vmatpush1.bf16.msra.mxu0 0
  %79 = vmatprep.subr.bf16.mxu0 0
  %80 = vmatpush1.bf16.msra.mxu0 0
  %81 = vmatprep.subr.bf16.mxu0 0
  %82 = vmatpush1.bf16.msra.mxu0 0
  %83 = vmatprep.subr.bf16.mxu0 0
  %84 = vmatpush1.bf16.msra.mxu0 0
  %85 = vmatprep.subr.bf16.mxu0 0
  %86 = vmatpush1.bf16.msra.mxu0 0
  %87 = vmatprep.subr.bf16.mxu0 0
  %88 = vmatpush1.bf16.msra.mxu0 0
  %89 = vmatprep.subr.bf16.mxu0 0
  %90 = vmatpush1.bf16.msra.mxu0 0
  %91 = vmatprep.mubr.bf16.mxu0 0
  %92 = vmatmul.mubr.bf16.gmra.mrb[0].mxu0 %v54
  %v93 = vpop.f32.mrb[0].mxu0
  %v94 = vadd.f32 %v32, %v93
  %v95 = vpop.f32.mrb[0].mxu0
  %v96 = vpop.f32.mrb[0].mxu0
  %v97 = vadd.f32 %v32, %v96
  %v98 = vpop.f32.mrb[0].mxu0
  %99 = vmatprep.mubr.bf16.mxu0 0
  %100 = vmatmul.mubr.bf16.gmra.mrb[0].mxu0 %v57
  %v101 = vpop.f32.mrb[0].mxu0
  %v102 = vadd.f32 %v32, %v101
  %v103 = vpop.f32.mrb[0].mxu0
  %v104 = vpop.f32.mrb[0].mxu0
  %v105 = vadd.f32 %v32, %v104
  %v106 = vpop.f32.mrb[0].mxu0
  %107 = vdwg.mxu0
  %vm108 = vcmask 523264
  %109 = vst.msk [vmem:[%s3] sm:$0xff] %vm108, %v94
  %110 = vst.msk [vmem:[%s3 + $0x8] sm:$0xff] %vm108, %v97
  %111 = vst.msk [vmem:[%s3 + $0x10] sm:$0xff] %vm108, %v102
  %112 = vst.msk [vmem:[%s3 + $0x18] sm:$0xff] %vm108, %v105
  // Predicated region
  $region14: #{vit_forward.12} parent=0 // pred_check
    _
  $region15: #{vit_forward.12} parent=0 // pred_check_branch
    %114 = sbr.rel (0) target = $region17
  $region16: #{vit_forward.12} parent=0 // pred_region
    _
  $region17: #{vit_forward.12} parent=0 // pred_fallthru
    _
  // Predicated region
  $region18: #{vit_forward.12} parent=0 // pred_check
    _
  $region19: #{vit_forward.12} parent=0 // pred_check_branch
    %116 = sbr.rel (0) target = $region21
  $region20: #{vit_forward.12} parent=0 // pred_region
    _
  $region21: #{vit_forward.12} parent=0 // pred_fallthru
    _

// kernel: vit_forward.15
$region0: #{vit_forward.15}
  #allocation0 [shape = 'u32[]', space=smem, size = 0x4, offset = 0x4, fixed_abs, tag = 'smem constant byte address 0x4 - core index']
  #allocation1 [shape = 'u32[144,128]{1,0:T(1,128)}', space=vmem, size = 0x12000, scoped, tag = 'internal scratch']
  %s0 = inlined_call_operand.vmem [shape: bf16[48,64], index: 0, kind: input, shape index: {}]
  %s1 = inlined_call_operand.vmem [shape: bf16[64,64], index: 1, kind: input, shape index: {}]
  %s2 = inlined_call_operand.vmem [shape: f32[1,64], index: 2, kind: input, shape index: {}]
  %s3 = inlined_call_operand.vmem [shape: f32[48,64], index: 3, kind: input, shape index: {}]
  %s4 = inlined_call_operand.vmem [shape: f32[48,64], index: 4, kind: output, shape index: {}]
  %s5 = sld [smem:[#allocation0]]
  $region26: #{vit_forward.15} parent=0
    _
  %s7 = ssub.s32 1, %s5
  %s8 = scalar_select 0, %s7, %s5
  // Predicated region
  $region2: #{vit_forward.15} parent=0 // pred_check
    _
  $region3: #{vit_forward.15} parent=0 // pred_check_branch
    %10 = sbr.rel (0) target = $region5
  $region4: #{vit_forward.15} parent=0 // pred_region
    _
  $region5: #{vit_forward.15} parent=0 // pred_fallthru
    _
  // Predicated region
  $region6: #{vit_forward.15} parent=0 // pred_check
    _
  $region7: #{vit_forward.15} parent=0 // pred_check_branch
    %12 = sbr.rel (0) target = $region9
  $region8: #{vit_forward.15} parent=0 // pred_region
    _
  $region9: #{vit_forward.15} parent=0 // pred_fallthru
    _
  // Predicated region
  $region10: #{vit_forward.15} parent=0 // pred_check
    _
  $region11: #{vit_forward.15} parent=0 // pred_check_branch
    %14 = sbr.rel (0) target = $region13
  $region12: #{vit_forward.15} parent=0 // pred_region
    _
  $region13: #{vit_forward.15} parent=0 // pred_fallthru
    _
  // Predicated region
  $region14: #{vit_forward.15} parent=0 // pred_check
    _
  $region15: #{vit_forward.15} parent=0 // pred_check_branch
    %16 = sbr.rel (0) target = $region17
  $region16: #{vit_forward.15} parent=0 // pred_region
    _
  $region17: #{vit_forward.15} parent=0 // pred_fallthru
    _
  %v18 = vld [vmem:[%s0] sm:$0xf]
  %v19 = vld [vmem:[%s0 + $0x4] sm:$0xf]
  %v20 = vld [vmem:[%s0 + $0x8] sm:$0xf]
  %v21 = vld [vmem:[%s0 + $0xc] sm:$0xf]
  %v22 = vld [vmem:[%s0 + $0x10] sm:$0xf]
  %v23 = vld [vmem:[%s0 + $0x14] sm:$0xf]
  %v24 = vld [vmem:[%s1] sm:$0xf]
  %v25 = vld [vmem:[%s1 + $0x4] sm:$0xf]
  %v26 = vld [vmem:[%s1 + $0x8] sm:$0xf]
  %v27 = vld [vmem:[%s1 + $0xc] sm:$0xf]
  %v28 = vld [vmem:[%s1 + $0x10] sm:$0xf]
  %v29 = vld [vmem:[%s1 + $0x14] sm:$0xf]
  %v30 = vld [vmem:[%s1 + $0x18] sm:$0xf]
  %v31 = vld [vmem:[%s1 + $0x1c] sm:$0xf]
  %v32 = vld [vmem:[%s2] sm:$0x1]
  %v34 = vlaneseq
  %v35 = vshrl.u32 %v34, 7
  %v36 = vsub.s32 0, %v35
  %v37 = vrot.slane %v32, %v36
  %v45 = vunpack.c.l.b16 %v18
  %v46 = vunpack.c.l.b16 %v19
  %v47 = vunpack.c.l.b16 %v20
  %v48 = vunpack.c.l.b16 %v21
  %v49 = vunpack.c.l.b16 %v22
  %v50 = vunpack.c.l.b16 %v23
  %v51 = vpack.c.b16 %v46, %v45
  %v52 = vpack.c.b16 %v48, %v47
  %v53 = vpack.c.b16 %v50, %v49
  %v62 = vunpack.c.l.b16 %v24
  %v63 = vunpack.c.l.b16 %v25
  %v64 = vunpack.c.l.b16 %v26
  %v65 = vunpack.c.l.b16 %v27
  %v66 = vunpack.c.l.b16 %v28
  %v67 = vunpack.c.l.b16 %v29
  %v68 = vunpack.c.l.b16 %v30
  %v69 = vunpack.c.l.b16 %v31
  %v70 = vpack.c.b16 %v63, %v62
  %v71 = vpack.c.b16 %v65, %v64
  %v72 = vpack.c.b16 %v67, %v66
  %v73 = vpack.c.b16 %v69, %v68
  %vm78 = vcmask 523264
  %v80 = vsel %vm78, %v51, 0
  %v83 = vsel %vm78, %v52, 0
  %v86 = vsel %vm78, %v53, 0
  %88 = vmatprep.subr.bf16.mxu0 0
  %89 = vmatpush1.bf16.msra.mxu0 %v70
  %90 = vmatprep.subr.bf16.mxu0 0
  %91 = vmatpush1.bf16.msra.mxu0 %v71
  %92 = vmatprep.subr.bf16.mxu0 0
  %93 = vmatpush1.bf16.msra.mxu0 %v72
  %94 = vmatprep.subr.bf16.mxu0 0
  %95 = vmatpush1.bf16.msra.mxu0 %v73
  %96 = vmatprep.subr.bf16.mxu0 0
  %97 = vmatpush1.bf16.msra.mxu0 0
  %98 = vmatprep.subr.bf16.mxu0 0
  %99 = vmatpush1.bf16.msra.mxu0 0
  %100 = vmatprep.subr.bf16.mxu0 0
  %101 = vmatpush1.bf16.msra.mxu0 0
  %102 = vmatprep.subr.bf16.mxu0 0
  %103 = vmatpush1.bf16.msra.mxu0 0
  %104 = vmatprep.subr.bf16.mxu0 0
  %105 = vmatpush1.bf16.msra.mxu0 0
  %106 = vmatprep.subr.bf16.mxu0 0
  %107 = vmatpush1.bf16.msra.mxu0 0
  %108 = vmatprep.subr.bf16.mxu0 0
  %109 = vmatpush1.bf16.msra.mxu0 0
  %110 = vmatprep.subr.bf16.mxu0 0
  %111 = vmatpush1.bf16.msra.mxu0 0
  %112 = vmatprep.subr.bf16.mxu0 0
  %113 = vmatpush1.bf16.msra.mxu0 0
  %114 = vmatprep.subr.bf16.mxu0 0
  %115 = vmatpush1.bf16.msra.mxu0 0
  %116 = vmatprep.subr.bf16.mxu0 0
  %117 = vmatpush1.bf16.msra.mxu0 0
  %118 = vmatprep.subr.bf16.mxu0 0
  %119 = vmatpush1.bf16.msra.mxu0 0
  %120 = vmatprep.mubr.bf16.mxu0 0
  %121 = vmatmul.mubr.bf16.gmra.mrb[0].mxu0 %v80
  %v122 = vpop.f32.mrb[0].mxu0
  %v123 = vadd.f32 %v37, %v122
  %v124 = vpop.f32.mrb[0].mxu0
  %v125 = vpop.f32.mrb[0].mxu0
  %v126 = vadd.f32 %v37, %v125
  %v127 = vpop.f32.mrb[0].mxu0
  %128 = vmatprep.mubr.bf16.mxu0 0
  %129 = vmatmul.mubr.bf16.gmra.mrb[0].mxu0 %v83
  %v130 = vpop.f32.mrb[0].mxu0
  %v131 = vadd.f32 %v37, %v130
  %v132 = vpop.f32.mrb[0].mxu0
  %v133 = vpop.f32.mrb[0].mxu0
  %v134 = vadd.f32 %v37, %v133
  %v135 = vpop.f32.mrb[0].mxu0
  %136 = vmatprep.mubr.bf16.mxu0 0
  %137 = vmatmul.mubr.bf16.gmra.mrb[0].mxu0 %v86
  %v138 = vpop.f32.mrb[0].mxu0
  %v139 = vadd.f32 %v37, %v138
  %v140 = vpop.f32.mrb[0].mxu0
  %v141 = vpop.f32.mrb[0].mxu0
  %v142 = vadd.f32 %v37, %v141
  %v143 = vpop.f32.mrb[0].mxu0
  %144 = vdwg.mxu0
  %v145 = vld [vmem:[%s3] sm:$0xff]
  %v146 = vld [vmem:[%s3 + $0x8] sm:$0xff]
  %v147 = vld [vmem:[%s3 + $0x10] sm:$0xff]
  %v148 = vld [vmem:[%s3 + $0x18] sm:$0xff]
  %v149 = vld [vmem:[%s3 + $0x20] sm:$0xff]
  %v150 = vld [vmem:[%s3 + $0x28] sm:$0xff]
  %v151 = vadd.f32 %v123, %v145
  %v152 = vadd.f32 %v126, %v146
  %v153 = vadd.f32 %v131, %v147
  %v154 = vadd.f32 %v134, %v148
  %v155 = vadd.f32 %v139, %v149
  %v156 = vadd.f32 %v142, %v150
  %157 = vst.msk [vmem:[%s4] sm:$0xff] %vm78, %v151
  %158 = vst.msk [vmem:[%s4 + $0x8] sm:$0xff] %vm78, %v152
  %159 = vst.msk [vmem:[%s4 + $0x10] sm:$0xff] %vm78, %v153
  %160 = vst.msk [vmem:[%s4 + $0x18] sm:$0xff] %vm78, %v154
  %161 = vst.msk [vmem:[%s4 + $0x20] sm:$0xff] %vm78, %v155
  %162 = vst.msk [vmem:[%s4 + $0x28] sm:$0xff] %vm78, %v156
  // Predicated region
  $region18: #{vit_forward.15} parent=0 // pred_check
    _
  $region19: #{vit_forward.15} parent=0 // pred_check_branch
    %164 = sbr.rel (0) target = $region21
  $region20: #{vit_forward.15} parent=0 // pred_region
    _
  $region21: #{vit_forward.15} parent=0 // pred_fallthru
    _
  // Predicated region
  $region22: #{vit_forward.15} parent=0 // pred_check
    _
  $region23: #{vit_forward.15} parent=0 // pred_check_branch
    %166 = sbr.rel (0) target = $region25
  $region24: #{vit_forward.15} parent=0 // pred_region
    _
  $region25: #{vit_forward.15} parent=0 // pred_fallthru
    _

// kernel: vit_forward.13
$region0: #{vit_forward.13}
  #allocation0 [shape = 'u32[]', space=smem, size = 0x4, offset = 0x4, fixed_abs, tag = 'smem constant byte address 0x4 - core index']
  #allocation1 [shape = 'u32[144,128]{1,0:T(1,128)}', space=vmem, size = 0x12000, scoped, tag = 'internal scratch']
  #allocation2 [shape = 'bf16[48,64]{1,0:T(16,128)(2,1)}', space=vmem, size = 0x3000, scoped, tag = 'scratch operand']
  %s0 = inlined_call_operand.vmem [shape: f32[48,64], index: 0, kind: input, shape index: {}]
  %s1 = inlined_call_operand.vmem [shape: bf16[64,192], index: 1, kind: input, shape index: {}]
  %s2 = inlined_call_operand.vmem [shape: f32[1,192], index: 2, kind: input, shape index: {}]
  %s3 = inlined_call_operand.vmem [shape: f32[1,64], index: 3, kind: input, shape index: {}]
  %s4 = inlined_call_operand.vmem [shape: f32[1,64], index: 4, kind: input, shape index: {}]
  %s5 = inlined_call_operand.vmem [shape: bf16[48,192], index: 5, kind: output, shape index: {}]
  %s6 = sld [smem:[#allocation0]]
  $region34: #{vit_forward.13} parent=0
    _
  %s8 = ssub.s32 1, %s6
  %s9 = scalar_select 0, %s8, %s6
  // Predicated region
  $region2: #{vit_forward.13} parent=0 // pred_check
    _
  $region3: #{vit_forward.13} parent=0 // pred_check_branch
    %11 = sbr.rel (0) target = $region5
  $region4: #{vit_forward.13} parent=0 // pred_region
    _
  $region5: #{vit_forward.13} parent=0 // pred_fallthru
    _
  // Predicated region
  $region6: #{vit_forward.13} parent=0 // pred_check
    _
  $region7: #{vit_forward.13} parent=0 // pred_check_branch
    %13 = sbr.rel (0) target = $region9
  $region8: #{vit_forward.13} parent=0 // pred_region
    _
  $region9: #{vit_forward.13} parent=0 // pred_fallthru
    _
  // Predicated region
  $region10: #{vit_forward.13} parent=0 // pred_check
    _
  $region11: #{vit_forward.13} parent=0 // pred_check_branch
    %15 = sbr.rel (0) target = $region13
  $region12: #{vit_forward.13} parent=0 // pred_region
    _
  $region13: #{vit_forward.13} parent=0 // pred_fallthru
    _
  // Predicated region
  $region14: #{vit_forward.13} parent=0 // pred_check
    _
  $region15: #{vit_forward.13} parent=0 // pred_check_branch
    %17 = sbr.rel (0) target = $region17
  $region16: #{vit_forward.13} parent=0 // pred_region
    _
  $region17: #{vit_forward.13} parent=0 // pred_fallthru
    _
  // Predicated region
  $region18: #{vit_forward.13} parent=0 // pred_check
    _
  $region19: #{vit_forward.13} parent=0 // pred_check_branch
    %19 = sbr.rel (0) target = $region21
  $region20: #{vit_forward.13} parent=0 // pred_region
    _
  $region21: #{vit_forward.13} parent=0 // pred_fallthru
    _
  %p21 = scmp.eq.s32.totalorder 0, 0
  // Predicated region
  $region22: #{vit_forward.13} parent=0 // pred_check
    %p22 = pneg %p21
  $region23: #{vit_forward.13} parent=0 // pred_check_branch
    %24 = sbr.rel (%p22) target = $region25
  $region24: #{vit_forward.13} parent=0 // pred_region
    %v25 = vld [vmem:[%s0] sm:$0xff]
    %v26 = vld [vmem:[%s0 + $0x8] sm:$0xff]
    %v27 = vld [vmem:[%s0 + $0x10] sm:$0xff]
    %v28 = vld [vmem:[%s0 + $0x18] sm:$0xff]
    %v29 = vld [vmem:[%s0 + $0x20] sm:$0xff]
    %v30 = vld [vmem:[%s0 + $0x28] sm:$0xff]
    %vm31 = vcmask 523264
    %v32 = vsel %vm31, %v25, 0.0
    %33 = vadd.xlane.f32.xlu0 %v32
    %v34 = vpop.xlane.xlu0 %33
    %v35 = vsel %vm31, %v26, 0.0
    %36 = vadd.xlane.f32.xlu0 %v35
    %v37 = vpop.xlane.xlu0 %36
    %v38 = vsel %vm31, %v27, 0.0
    %39 = vadd.xlane.f32.xlu0 %v38
    %v40 = vpop.xlane.xlu0 %39
    %v41 = vsel %vm31, %v28, 0.0
    %42 = vadd.xlane.f32.xlu0 %v41
    %v43 = vpop.xlane.xlu0 %42
    %v44 = vsel %vm31, %v29, 0.0
    %45 = vadd.xlane.f32.xlu0 %v44
    %v46 = vpop.xlane.xlu0 %45
    %v47 = vsel %vm31, %v30, 0.0
    %48 = vadd.xlane.f32.xlu0 %v47
    %v49 = vpop.xlane.xlu0 %48
    %v50 = vrcp.pop 64.0
    %v51 = vmul.f32 %v34, %v50
    %v52 = vmul.f32 %v37, %v50
    %v53 = vmul.f32 %v40, %v50
    %v54 = vmul.f32 %v43, %v50
    %v55 = vmul.f32 %v46, %v50
    %v56 = vmul.f32 %v49, %v50
    %v57 = vsub.f32 %v25, %v51
    %v58 = vsub.f32 %v26, %v52
    %v59 = vsub.f32 %v27, %v53
    %v60 = vsub.f32 %v28, %v54
    %v61 = vsub.f32 %v29, %v55
    %v62 = vsub.f32 %v30, %v56
    %v63 = vmul.f32 %v57, %v57
    %v64 = vmul.f32 %v58, %v58
    %v65 = vmul.f32 %v59, %v59
    %v66 = vmul.f32 %v60, %v60
    %v67 = vmul.f32 %v61, %v61
    %v68 = vmul.f32 %v62, %v62
    %v69 = vsel %vm31, %v63, 0.0
    %70 = vadd.xlane.f32.xlu0 %v69
    %v71 = vpop.xlane.xlu0 %70
    %v72 = vsel %vm31, %v64, 0.0
    %73 = vadd.xlane.f32.xlu0 %v72
    %v74 = vpop.xlane.xlu0 %73
    %v75 = vsel %vm31, %v65, 0.0
    %76 = vadd.xlane.f32.xlu0 %v75
    %v77 = vpop.xlane.xlu0 %76
    %v78 = vsel %vm31, %v66, 0.0
    %79 = vadd.xlane.f32.xlu0 %v78
    %v80 = vpop.xlane.xlu0 %79
    %v81 = vsel %vm31, %v67, 0.0
    %82 = vadd.xlane.f32.xlu0 %v81
    %v83 = vpop.xlane.xlu0 %82
    %v84 = vsel %vm31, %v68, 0.0
    %85 = vadd.xlane.f32.xlu0 %v84
    %v86 = vpop.xlane.xlu0 %85
    %v87 = vmul.f32 %v71, %v50
    %v88 = vmul.f32 %v74, %v50
    %v89 = vmul.f32 %v77, %v50
    %v90 = vmul.f32 %v80, %v50
    %v91 = vmul.f32 %v83, %v50
    %v92 = vmul.f32 %v86, %v50
    %v93 = vadd.f32 %v87, 1e-05
    %v94 = vadd.f32 %v88, 1e-05
    %v95 = vadd.f32 %v89, 1e-05
    %v96 = vadd.f32 %v90, 1e-05
    %v97 = vadd.f32 %v91, 1e-05
    %v98 = vadd.f32 %v92, 1e-05
    %v99 = vrsqrt.pop %v93
    %v100 = vrsqrt.pop %v94
    %v101 = vrsqrt.pop %v95
    %v102 = vrsqrt.pop %v96
    %v103 = vrsqrt.pop %v97
    %v104 = vrsqrt.pop %v98
    %v105 = vmul.f32 %v57, %v99
    %v106 = vmul.f32 %v58, %v100
    %v107 = vmul.f32 %v59, %v101
    %v108 = vmul.f32 %v60, %v102
    %v109 = vmul.f32 %v61, %v103
    %v110 = vmul.f32 %v62, %v104
    %v111 = vld [vmem:[%s3] sm:$0x1]
    %v113 = vlaneseq
    %v114 = vshrl.u32 %v113, 7
    %v115 = vsub.s32 0, %v114
    %v116 = vrot.slane %v111, %v115
    %v118 = vmul.f32 %v105, %v116
    %v119 = vmul.f32 %v106, %v116
    %v120 = vmul.f32 %v107, %v116
    %v121 = vmul.f32 %v108, %v116
    %v122 = vmul.f32 %v109, %v116
    %v123 = vmul.f32 %v110, %v116
    %v124 = vld [vmem:[%s4] sm:$0x1]
    %v126 = vlaneseq
    %v127 = vshrl.u32 %v126, 7
    %v128 = vsub.s32 0, %v127
    %v129 = vrot.slane %v124, %v128
    %v131 = vadd.f32 %v118, %v129
    %v132 = vadd.f32 %v119, %v129
    %v133 = vadd.f32 %v120, %v129
    %v134 = vadd.f32 %v121, %v129
    %v135 = vadd.f32 %v122, %v129
    %v136 = vadd.f32 %v123, %v129
    %v137 = vpack.c.bf16 %v132, %v131
    %v138 = vpack.c.bf16 %v134, %v133
    %v139 = vpack.c.bf16 %v136, %v135
    %140 = vst.msk [vmem:[#allocation2] sm:$0xff] %vm31, %v137
    %141 = vst.msk [vmem:[#allocation2 + $0x8] sm:$0xff] %vm31, %v138
    %142 = vst.msk [vmem:[#allocation2 + $0x10] sm:$0xff] %vm31, %v139
  $region25: #{vit_forward.13} parent=0 // pred_fallthru
    _
  %v143 = vld [vmem:[#allocation2] sm:$0xff]
  %v144 = vld [vmem:[#allocation2 + $0x8] sm:$0xff]
  %v145 = vld [vmem:[#allocation2 + $0x10] sm:$0xff]
  %v146 = vld [vmem:[%s1] sm:$0xff]
  %v147 = vld [vmem:[%s1 + $0x8] sm:$0xff]
  %v148 = vld [vmem:[%s1 + $0x10] sm:$0xff]
  %v149 = vld [vmem:[%s1 + $0x18] sm:$0xff]
  %v150 = vld [vmem:[%s1 + $0x20] sm:$0xff]
  %v151 = vld [vmem:[%s1 + $0x28] sm:$0xff]
  %v152 = vld [vmem:[%s1 + $0x30] sm:$0xff]
  %v153 = vld [vmem:[%s1 + $0x38] sm:$0xff]
  %v154 = vld [vmem:[%s2] sm:$0x3]
  %v156 = vlaneseq
  %v157 = vshrl.u32 %v156, 7
  %v158 = vsub.s32 0, %v157
  %v159 = vrot.slane %v154, %v158
  %v160 = vlaneseq
  %v161 = vshrl.u32 %v160, 7
  %v162 = vsub.s32 1, %v161
  %v163 = vrot.slane %v154, %v162
  %v174 = vunpack.c.l.b16 %v146
  %v175 = vunpack.c.h.b16 %v146
  %v176 = vunpack.c.l.b16 %v147
  %v177 = vunpack.c.h.b16 %v147
  %v178 = vunpack.c.l.b16 %v148
  %v179 = vunpack.c.h.b16 %v148
  %v180 = vunpack.c.l.b16 %v149
  %v181 = vunpack.c.h.b16 %v149
  %v182 = vunpack.c.l.b16 %v150
  %v183 = vunpack.c.h.b16 %v150
  %v184 = vunpack.c.l.b16 %v151
  %v185 = vunpack.c.h.b16 %v151
  %v186 = vunpack.c.l.b16 %v152
  %v187 = vunpack.c.h.b16 %v152
  %v188 = vunpack.c.l.b16 %v153
  %v189 = vunpack.c.h.b16 %v153
  %v190 = vpack.c.b16 %v176, %v174
  %v191 = vpack.c.b16 %v177, %v175
  %v192 = vpack.c.b16 %v180, %v178
  %v193 = vpack.c.b16 %v181, %v179
  %v194 = vpack.c.b16 %v184, %v182
  %v195 = vpack.c.b16 %v185, %v183
  %v196 = vpack.c.b16 %v188, %v186
  %v197 = vpack.c.b16 %v189, %v187
  %vm206 = vcmask 523264
  %v208 = vsel %vm206, %v143, 0
  %v211 = vsel %vm206, %v144, 0
  %v214 = vsel %vm206, %v145, 0
  %216 = vmatprep.subr.bf16.mxu0 %v191
  %217 = vmatpush1.bf16.msra.mxu0 %v190
  %218 = vmatprep.subr.bf16.mxu0 %v193
  %219 = vmatpush1.bf16.msra.mxu0 %v192
  %220 = vmatprep.subr.bf16.mxu0 %v195
  %221 = vmatpush1.bf16.msra.mxu0 %v194
  %222 = vmatprep.subr.bf16.mxu0 %v197
  %223 = vmatpush1.bf16.msra.mxu0 %v196
  %224 = vmatprep.subr.bf16.mxu0 0
  %225 = vmatpush1.bf16.msra.mxu0 0
  %226 = vmatprep.subr.bf16.mxu0 0
  %227 = vmatpush1.bf16.msra.mxu0 0
  %228 = vmatprep.subr.bf16.mxu0 0
  %229 = vmatpush1.bf16.msra.mxu0 0
  %230 = vmatprep.subr.bf16.mxu0 0
  %231 = vmatpush1.bf16.msra.mxu0 0
  %232 = vmatprep.subr.bf16.mxu0 0
  %233 = vmatpush1.bf16.msra.mxu0 0
  %234 = vmatprep.subr.bf16.mxu0 0
  %235 = vmatpush1.bf16.msra.mxu0 0
  %236 = vmatprep.subr.bf16.mxu0 0
  %237 = vmatpush1.bf16.msra.mxu0 0
  %238 = vmatprep.subr.bf16.mxu0 0
  %239 = vmatpush1.bf16.msra.mxu0 0
  %240 = vmatprep.subr.bf16.mxu0 0
  %241 = vmatpush1.bf16.msra.mxu0 0
  %242 = vmatprep.subr.bf16.mxu0 0
  %243 = vmatpush1.bf16.msra.mxu0 0
  %244 = vmatprep.subr.bf16.mxu0 0
  %245 = vmatpush1.bf16.msra.mxu0 0
  %246 = vmatprep.subr.bf16.mxu0 0
  %247 = vmatpush1.bf16.msra.mxu0 0
  %248 = vmatprep.mubr.bf16.mxu0 0
  %249 = vmatmul.mubr.bf16.gmra.mrb[0].mxu0 %v208
  %v250 = vpop.f32.mrb[0].mxu0
  %v251 = vadd.f32 %v159, %v250
  %v252 = vpop.f32.mrb[0].mxu0
  %v253 = vadd.f32 %v163, %v252
  %v254 = vpop.f32.mrb[0].mxu0
  %v255 = vadd.f32 %v159, %v254
  %v256 = vpop.f32.mrb[0].mxu0
  %v257 = vadd.f32 %v163, %v256
  %258 = vmatprep.mubr.bf16.mxu0 0
  %259 = vmatmul.mubr.bf16.gmra.mrb[0].mxu0 %v211
  %v260 = vpop.f32.mrb[0].mxu0
  %v261 = vadd.f32 %v159, %v260
  %v262 = vpop.f32.mrb[0].mxu0
  %v263 = vadd.f32 %v163, %v262
  %v264 = vpop.f32.mrb[0].mxu0
  %v265 = vadd.f32 %v159, %v264
  %v266 = vpop.f32.mrb[0].mxu0
  %v267 = vadd.f32 %v163, %v266
  %268 = vmatprep.mubr.bf16.mxu0 0
  %269 = vmatmul.mubr.bf16.gmra.mrb[0].mxu0 %v214
  %v270 = vpop.f32.mrb[0].mxu0
  %v271 = vadd.f32 %v159, %v270
  %v272 = vpop.f32.mrb[0].mxu0
  %v273 = vadd.f32 %v163, %v272
  %v274 = vpop.f32.mrb[0].mxu0
  %v275 = vadd.f32 %v159, %v274
  %v276 = vpop.f32.mrb[0].mxu0
  %v277 = vadd.f32 %v163, %v276
  %278 = vdwg.mxu0
  %v279 = vpack.c.bf16 %v255, %v251
  %v280 = vpack.c.bf16 %v257, %v253
  %v281 = vpack.c.bf16 %v265, %v261
  %v282 = vpack.c.bf16 %v267, %v263
  %v283 = vpack.c.bf16 %v275, %v271
  %v284 = vpack.c.bf16 %v277, %v273
  %v291 = vunpack.c.l.b16 %v279
  %v292 = vunpack.c.l.b16 %v280
  %v293 = vunpack.c.h.b16 %v279
  %v294 = vunpack.c.h.b16 %v280
  %v295 = vunpack.c.l.b16 %v281
  %v296 = vunpack.c.l.b16 %v282
  %v297 = vunpack.c.h.b16 %v281
  %v298 = vunpack.c.h.b16 %v282
  %v299 = vunpack.c.l.b16 %v283
  %v300 = vunpack.c.l.b16 %v284
  %v301 = vunpack.c.h.b16 %v283
  %v302 = vunpack.c.h.b16 %v284
  %v303 = vpack.c.b16 %v292, %v291
  %v304 = vpack.c.b16 %v294, %v293
  %v305 = vpack.c.b16 %v296, %v295
  %v306 = vpack.c.b16 %v298, %v297
  %v307 = vpack.c.b16 %v300, %v299
  %v308 = vpack.c.b16 %v302, %v301
  %vm315 = vcmask 1043456
  %vm316 = vcmask 523268
  %vm317 = vmor %vm316, %vm315
  %318 = vst.msk [vmem:[%s5] sm:$0xff] %vm317, %v303
  %319 = vst.msk [vmem:[%s5 + $0x8] sm:$0xff] %vm317, %v304
  %320 = vst.msk [vmem:[%s5 + $0x10] sm:$0xff] %vm317, %v305
  %321 = vst.msk [vmem:[%s5 + $0x18] sm:$0xff] %vm317, %v306
  %322 = vst.msk [vmem:[%s5 + $0x20] sm:$0xff] %vm317, %v307
  %323 = vst.msk [vmem:[%s5 + $0x28] sm:$0xff] %vm317, %v308
  // Predicated region
  $region26: #{vit_forward.13} parent=0 // pred_check
    _
  $region27: #{vit_forward.13} parent=0 // pred_check_branch
    %325 = sbr.rel (0) target = $region29
  $region28: #{vit_forward.13} parent=0 // pred_region
    _
  $region29: #{vit_forward.13} parent=0 // pred_fallthru
    _
  // Predicated region
  $region30: #{vit_forward.13} parent=0 // pred_check
    _
  $region31: #{vit_forward.13} parent=0 // pred_check_branch
    %327 = sbr.rel (0) target = $region33
  $region32: #{vit_forward.13} parent=0 // pred_region
    _
  $region33: #{vit_forward.13} parent=0 // pred_fallthru
    _

// kernel: vit_forward.14
$region0: #{vit_forward.14}
  #allocation0 [shape = 'u32[]', space=smem, size = 0x4, offset = 0x4, fixed_abs, tag = 'smem constant byte address 0x4 - core index']
  #allocation1 [shape = 'u32[144,128]{1,0:T(1,128)}', space=vmem, size = 0x12000, scoped, tag = 'internal scratch']
  %s0 = inlined_call_operand.vmem [shape: bf16[2,24,192], index: 0, kind: input, shape index: {}]
  %s1 = inlined_call_operand.vmem [shape: bf16[2,24,64], index: 1, kind: output, shape index: {}]
  %s2 = sld [smem:[#allocation0]]
  $region37: #{vit_forward.14} parent=0
    _
  %s4 = ssub.s32 1, %s2
  %s5 = scalar_select 0, %s4, %s2
  loop: start=0, step=1, limit=4
  $region2: #{vit_forward.14} parent=0 // loop_pre_header
    _
  $region3: #{vit_forward.14} parent=0 // loop_header
    %s7 = sphi 0, %s11
    %p8 = scmp.ge.s32.totalorder %s7, 4
    %s17 = sphi 0, %s19
    %s20 = sphi 0, %s17
    %s21 = sphi 0, %s20
    %s37 = sphi 0, %s21
    %s43 = sphi 0, %s45
    %s46 = sphi 0, %s43
    %s47 = sphi 0, %s46
    %s63 = sphi 0, %s47
  $region4: #{vit_forward.14} parent=0 // loop_header_branch
    %10 = sbr.rel (%p8) target = $region8
  $region5: #{vit_forward.14} parent=0 // loop_body
    %s12 = ssub.s32 %s7, 1
    %s13 = ssub.s32 %s7, 2
    %s14 = sadd.s32 %s7, 1
    %s15 = ssub.s32 %s7, %s14
    %p16 = scmp.eq.s32.totalorder %s15, 0
    %s18 = sadd.s32 %s17, 1
    %s19 = scalar_select %p16, %s17, %s18
    %p22 = pneg %p16
    %p23 = scmp.eq.s32.totalorder %s7, 1
    %p24 = por %p22, %p23
    %p25 = scmp.ne.s32.totalorder %s17, %s20
    %p26 = scmp.eq.s32.totalorder %s7, 0
    %p27 = por %p25, %p26
    %p28 = scmp.ne.s32.totalorder %s17, %s20
    %p29 = scmp.eq.s32.totalorder %s12, 1
    %p30 = por %p28, %p29
    %p31 = scmp.ne.s32.totalorder %s20, %s21
    %p32 = scmp.eq.s32.totalorder %s12, 0
    %p33 = por %p31, %p32
    %p34 = scmp.ne.s32.totalorder %s20, %s21
    %p35 = scmp.eq.s32.totalorder %s13, 1
    %p36 = por %p34, %p35
    %p38 = scmp.ne.s32.totalorder %s21, %s37
    %p39 = scmp.eq.s32.totalorder %s13, 0
    %p40 = por %p38, %p39
    %s41 = ssub.s32 %s7, %s14
    %p42 = scmp.eq.s32.totalorder %s41, 0
    %s44 = sadd.s32 %s43, 1
    %s45 = scalar_select %p42, %s43, %s44
    %p48 = pneg %p42
    %p49 = scmp.eq.s32.totalorder %s7, 1
    %p50 = por %p48, %p49
    %p51 = scmp.ne.s32.totalorder %s43, %s46
    %p52 = scmp.eq.s32.totalorder %s7, 0
    %p53 = por %p51, %p52
    %p54 = scmp.ne.s32.totalorder %s43, %s46
    %p55 = scmp.eq.s32.totalorder %s12, 1
    %p56 = por %p54, %p55
    %p57 = scmp.ne.s32.totalorder %s46, %s47
    %p58 = scmp.eq.s32.totalorder %s12, 0
    %p59 = por %p57, %p58
    %p60 = scmp.ne.s32.totalorder %s46, %s47
    %p61 = scmp.eq.s32.totalorder %s13, 1
    %p62 = por %p60, %p61
    %p64 = scmp.ne.s32.totalorder %s47, %s63
    %p65 = scmp.eq.s32.totalorder %s13, 0
    %p66 = por %p64, %p65
    %p67 = scmp.le.s32.totalorder 1, %s7
    %p68 = scmp.lt.s32.totalorder %s7, 3
    %p69 = pnand %p67, %p68
    %p70 = pneg %p69
    // Predicated region
    $region9: #{vit_forward.14} parent=5 // pred_check
      _
    $region10: #{vit_forward.14} parent=5 // pred_check_branch
      %72 = sbr.rel (%p69) target = $region12
    $region11: #{vit_forward.14} parent=5 // pred_region
      %s73 = ssub.s32 %s7, 1
    $region12: #{vit_forward.14} parent=5 // pred_fallthru
      _
    %p74 = scmp.lt.s32.totalorder %s7, 2
    // Predicated region
    $region13: #{vit_forward.14} parent=5 // pred_check
      %p75 = pneg %p74
    $region14: #{vit_forward.14} parent=5 // pred_check_branch
      %77 = sbr.rel (%p75) target = $region16
    $region15: #{vit_forward.14} parent=5 // pred_region
      // Predicated region
      $region17: #{vit_forward.14} parent=15 // pred_check
        %p78 = pneg %p27
      $region18: #{vit_forward.14} parent=15 // pred_check_branch
        %80 = sbr.rel (%p78) target = $region20
      $region19: #{vit_forward.14} parent=15 // pred_region
        %p81 = scmp.lt.s32.totalorder %s7, 1
        %s82 = scalar_select %p81, %s7, 1
        %s83 = smul.addr %s82, 6
        %s84 = smul.addr %s83, 4
        %s85 = scalar_lea.vmem %s0, %s84
      $region20: #{vit_forward.14} parent=15 // pred_fallthru
        _
    $region16: #{vit_forward.14} parent=5 // pred_fallthru
      _
    %p86 = scmp.le.s32.totalorder 1, %s7
    %p87 = scmp.lt.s32.totalorder %s7, 3
    %p88 = pnand %p86, %p87
    %p89 = pneg %p88
    // Predicated region
    $region21: #{vit_forward.14} parent=5 // pred_check
      _
    $region22: #{vit_forward.14} parent=5 // pred_check_branch
      %91 = sbr.rel (%p88) target = $region24
    $region23: #{vit_forward.14} parent=5 // pred_region
      %s92 = ssub.s32 %s7, 1
      %p93 = scmp.lt.s32.totalorder %s12, 1
      %s94 = scalar_select %p93, %s12, 1
      %s95 = smul.addr %s94, 6
      %s96 = smul.addr %s95, 4
      %s97 = scalar_lea.vmem %s0, %s96
      %p98 = pneg %p33
      %p99 = pneg %p30
      %p100 = pneg %p59
      %p101 = pneg %p56
      %p102 = scmp.lt.s32.totalorder %s12, 1
      %s103 = scalar_select %p102, %s12, 1
      %s104 = smul.addr %s103, 3
      %s105 = smul.addr %s104, 4
      %s106 = scalar_lea.vmem %s1, %s105
      %p107 = scmp.lt.s32.totalorder %s12, 1
      %s108 = scalar_select %p107, %s12, 1
      %s109 = smul.addr %s108, 6
      %s110 = smul.addr %s109, 4
      %s111 = scalar_lea.vmem %s0, %s110
      %p112 = scmp.lt.s32.totalorder %s12, 1
      %s113 = scalar_select %p112, %s12, 1
      %s114 = smul.addr %s113, 3
      %s115 = smul.addr %s114, 4
      %s116 = scalar_lea.vmem %s1, %s115
      %v118 = vlaneseq
      %v119 = vand.u32 %v118, 127
      %vm120 = vcmp.lt.s32.totalorder %v119, 17
      %v121 = vld [vmem:[%s111] sm:$0xf]
      %v122 = vld [vmem:[%s111 + $0x8] sm:$0xf]
      %v123 = vld [vmem:[%s111 + $0x10] sm:$0xf]
      %v127 = vunpack.c.l.b16 %v121
      %v128 = vunpack.c.l.b16 %v122
      %v129 = vunpack.c.l.b16 %v123
      %v130 = vpack.c.b16 %v128, %v127
      %v131 = vpack.c.b16 %v129, %v129
      %132 = vrot.lane.b32.xlu0 %v130, 112
      %v133 = vpop.permute.xlu0 %132
      %134 = vrot.lane.b32.xlu0 %v131, 112
      %v135 = vpop.permute.xlu0 %134
      %vm136 = vcmask 130048
      %v138 = vsel %vm136, %v130, 0
      %v141 = vsel %vm136, %v131, 0
      %v144 = vsel %vm136, %v133, 0
      %v147 = vsel %vm136, %v135, 0
      %149 = vmatprep.subr.bf16.mxu0 0
      %150 = vmatpush1.bf16.xpose.msra.mxu0 %v144
      %151 = vmatprep.subr.bf16.mxu0 0
      %152 = vmatpush1.bf16.xpose.msra.mxu0 %v147
      %153 = vmatprep.subr.bf16.mxu0 0
      %154 = vmatpush1.bf16.xpose.msra.mxu0 0
      %155 = vmatprep.subr.bf16.mxu0 0
      %156 = vmatpush1.bf16.xpose.msra.mxu0 0
      %157 = vmatprep.subr.bf16.mxu0 0
      %158 = vmatpush1.bf16.xpose.msra.mxu0 0
      %159 = vmatprep.subr.bf16.mxu0 0
      %160 = vmatpush1.bf16.xpose.msra.mxu0 0
      %161 = vmatprep.subr.bf16.mxu0 0
      %162 = vmatpush1.bf16.xpose.msra.mxu0 0
      %163 = vmatprep.subr.bf16.mxu0 0
      %164 = vmatpush1.bf16.xpose.msra.mxu0 0
      %165 = vmatprep.subr.bf16.mxu0 0
      %166 = vmatpush1.bf16.xpose.msra.mxu0 0
      %167 = vmatprep.subr.bf16.mxu0 0
      %168 = vmatpush1.bf16.xpose.msra.mxu0 0
      %169 = vmatprep.subr.bf16.mxu0 0
      %170 = vmatpush1.bf16.xpose.msra.mxu0 0
      %171 = vmatprep.subr.bf16.mxu0 0
      %172 = vmatpush1.bf16.xpose.msra.mxu0 0
      %173 = vmatprep.subr.bf16.mxu0 0
      %174 = vmatpush1.bf16.xpose.msra.mxu0 0
      %175 = vmatprep.subr.bf16.mxu0 0
      %176 = vmatpush1.bf16.xpose.msra.mxu0 0
      %177 = vmatprep.subr.bf16.mxu0 0
      %178 = vmatpush1.bf16.xpose.msra.mxu0 0
      %179 = vmatprep.subr.bf16.mxu0 0
      %180 = vmatpush1.bf16.xpose.msra.mxu0 0
      %181 = vmatprep.mubr.bf16.mxu0 0
      %182 = vmatmul.mubr.bf16.gmra.mrb[0].mxu0 %v138
      %v183 = vpop.f32.mrb[0].mxu0
      %v184 = vadd.f32 0.0, %v183
      %v185 = vpop.f32.mrb[0].mxu0
      %v186 = vpop.f32.mrb[0].mxu0
      %v187 = vadd.f32 0.0, %v186
      %v188 = vpop.f32.mrb[0].mxu0
      %189 = vmatprep.mubr.bf16.mxu0 0
      %190 = vmatmul.mubr.bf16.gmra.mrb[0].mxu0 %v141
      %v191 = vpop.f32.mrb[0].mxu0
      %v192 = vadd.f32 0.0, %v191
      %v193 = vpop.f32.mrb[0].mxu0
      %v194 = vpop.f32.mrb[0].mxu0
      %v195 = vpop.f32.mrb[0].mxu0
      %196 = vdwg.mxu0
      %v197 = vsel %vm120, %v184, -1e+30
      %v198 = vsel %vm120, %v187, -1e+30
      %v199 = vsel %vm120, %v192, -1e+30
      %vm200 = vcmask 195584
      %v201 = vsel %vm200, %v197, -inf
      %202 = vmax.xlane.f32.xlu0 %v201
      %v203 = vpop.xlane.xlu0 %202
      %v204 = vsel %vm200, %v198, -inf
      %205 = vmax.xlane.f32.xlu0 %v204
      %v206 = vpop.xlane.xlu0 %205
      %v207 = vsel %vm200, %v199, -inf
      %208 = vmax.xlane.f32.xlu0 %v207
      %v209 = vpop.xlane.xlu0 %208
      %v210 = vsub.f32 %v197, %v203
      %v211 = vsub.f32 %v198, %v206
      %v212 = vsub.f32 %v199, %v209
      %v213 = vmul.f32 %v210, 1.442695
      %v214 = vpow.pop %v213
      %v215 = vmul.f32 %v211, 1.442695
      %v216 = vpow.pop %v215
      %v217 = vmul.f32 %v212, 1.442695
      %v218 = vpow.pop %v217
      %v219 = vsel %vm200, %v214, 0.0
      %220 = vadd.xlane.f32.xlu0 %v219
      %v221 = vpop.xlane.xlu0 %220
      %v222 = vsel %vm200, %v216, 0.0
      %223 = vadd.xlane.f32.xlu0 %v222
      %v224 = vpop.xlane.xlu0 %223
      %v225 = vsel %vm200, %v218, 0.0
      %226 = vadd.xlane.f32.xlu0 %v225
      %v227 = vpop.xlane.xlu0 %226
      %v228 = vrcp.pop %v221
      %v229 = vrcp.pop %v224
      %v230 = vrcp.pop %v227
      %v231 = vmul.f32 %v214, %v228
      %v232 = vmul.f32 %v216, %v229
      %v233 = vmul.f32 %v218, %v230
      %v234 = vpack.c.bf16 %v232, %v231
      %v235 = vpack.c.bf16 %v233, %v233
      %236 = vrot.lane.b32.xlu0 %v130, 96
      %v237 = vpop.permute.xlu0 %236
      %238 = vrot.lane.b32.xlu0 %v131, 96
      %v239 = vpop.permute.xlu0 %238
      %v242 = vsel %vm200, %v234, 0
      %v245 = vsel %vm200, %v235, 0
      %vm247 = vcmask 1043456
      %v249 = vsel %vm247, %v239, 0
      %251 = vmatprep.subr.bf16.mxu0 0
      %252 = vmatpush1.bf16.msra.mxu0 %v237
      %253 = vmatprep.subr.bf16.mxu0 0
      %254 = vmatpush1.bf16.msra.mxu0 %v249
      %255 = vmatprep.subr.bf16.mxu0 0
      %256 = vmatpush1.bf16.msra.mxu0 0
      %257 = vmatprep.subr.bf16.mxu0 0
      %258 = vmatpush1.bf16.msra.mxu0 0
      %259 = vmatprep.subr.bf16.mxu0 0
      %260 = vmatpush1.bf16.msra.mxu0 0
      %261 = vmatprep.subr.bf16.mxu0 0
      %262 = vmatpush1.bf16.msra.mxu0 0
      %263 = vmatprep.subr.bf16.mxu0 0
      %264 = vmatpush1.bf16.msra.mxu0 0
      %265 = vmatprep.subr.bf16.mxu0 0
      %266 = vmatpush1.bf16.msra.mxu0 0
      %267 = vmatprep.subr.bf16.mxu0 0
      %268 = vmatpush1.bf16.msra.mxu0 0
      %269 = vmatprep.subr.bf16.mxu0 0
      %270 = vmatpush1.bf16.msra.mxu0 0
      %271 = vmatprep.subr.bf16.mxu0 0
      %272 = vmatpush1.bf16.msra.mxu0 0
      %273 = vmatprep.subr.bf16.mxu0 0
      %274 = vmatpush1.bf16.msra.mxu0 0
      %275 = vmatprep.subr.bf16.mxu0 0
      %276 = vmatpush1.bf16.msra.mxu0 0
      %277 = vmatprep.subr.bf16.mxu0 0
      %278 = vmatpush1.bf16.msra.mxu0 0
      %279 = vmatprep.subr.bf16.mxu0 0
      %280 = vmatpush1.bf16.msra.mxu0 0
      %281 = vmatprep.subr.bf16.mxu0 0
      %282 = vmatpush1.bf16.msra.mxu0 0
      %283 = vmatprep.mubr.bf16.mxu0 0
      %284 = vmatmul.mubr.bf16.gmra.mrb[0].mxu0 %v242
      %v285 = vpop.f32.mrb[0].mxu0
      %v286 = vadd.f32 0.0, %v285
      %v287 = vpop.f32.mrb[0].mxu0
      %v288 = vpop.f32.mrb[0].mxu0
      %v289 = vadd.f32 0.0, %v288
      %v290 = vpop.f32.mrb[0].mxu0
      %291 = vmatprep.mubr.bf16.mxu0 0
      %292 = vmatmul.mubr.bf16.gmra.mrb[0].mxu0 %v245
      %v293 = vpop.f32.mrb[0].mxu0
      %v294 = vadd.f32 0.0, %v293
      %v295 = vpop.f32.mrb[0].mxu0
      %v296 = vpop.f32.mrb[0].mxu0
      %v297 = vpop.f32.mrb[0].mxu0
      %298 = vdwg.mxu0
      %299 = vrot.lane.b32.xlu0 %v130, 80
      %v300 = vpop.permute.xlu0 %299
      %301 = vrot.lane.b32.xlu0 %v131, 80
      %v302 = vpop.permute.xlu0 %301
      %303 = vrot.lane.b32.xlu0 %v130, 64
      %v304 = vpop.permute.xlu0 %303
      %305 = vrot.lane.b32.xlu0 %v131, 64
      %v306 = vpop.permute.xlu0 %305
      %v308 = vsel %vm136, %v300, 0
      %v311 = vsel %vm136, %v302, 0
      %v314 = vsel %vm136, %v304, 0
      %v317 = vsel %vm136, %v306, 0
      %319 = vmatprep.subr.bf16.mxu0 0
      %320 = vmatpush1.bf16.xpose.msra.mxu0 %v314
      %321 = vmatprep.subr.bf16.mxu0 0
      %322 = vmatpush1.bf16.xpose.msra.mxu0 %v317
      %323 = vmatprep.subr.bf16.mxu0 0
      %324 = vmatpush1.bf16.xpose.msra.mxu0 0
      %325 = vmatprep.subr.bf16.mxu0 0
      %326 = vmatpush1.bf16.xpose.msra.mxu0 0
      %327 = vmatprep.subr.bf16.mxu0 0
      %328 = vmatpush1.bf16.xpose.msra.mxu0 0
      %329 = vmatprep.subr.bf16.mxu0 0
      %330 = vmatpush1.bf16.xpose.msra.mxu0 0
      %331 = vmatprep.subr.bf16.mxu0 0
      %332 = vmatpush1.bf16.xpose.msra.mxu0 0
      %333 = vmatprep.subr.bf16.mxu0 0
      %334 = vmatpush1.bf16.xpose.msra.mxu0 0
      %335 = vmatprep.subr.bf16.mxu0 0
      %336 = vmatpush1.bf16.xpose.msra.mxu0 0
      %337 = vmatprep.subr.bf16.mxu0 0
      %338 = vmatpush1.bf16.xpose.msra.mxu0 0
      %339 = vmatprep.subr.bf16.mxu0 0
      %340 = vmatpush1.bf16.xpose.msra.mxu0 0
      %341 = vmatprep.subr.bf16.mxu0 0
      %342 = vmatpush1.bf16.xpose.msra.mxu0 0
      %343 = vmatprep.subr.bf16.mxu0 0
      %344 = vmatpush1.bf16.xpose.msra.mxu0 0
      %345 = vmatprep.subr.bf16.mxu0 0
      %346 = vmatpush1.bf16.xpose.msra.mxu0 0
      %347 = vmatprep.subr.bf16.mxu0 0
      %348 = vmatpush1.bf16.xpose.msra.mxu0 0
      %349 = vmatprep.subr.bf16.mxu0 0
      %350 = vmatpush1.bf16.xpose.msra.mxu0 0
      %351 = vmatprep.mubr.bf16.mxu0 0
      %352 = vmatmul.mubr.bf16.gmra.mrb[0].mxu0 %v308
      %v353 = vpop.f32.mrb[0].mxu0
      %v354 = vadd.f32 0.0, %v353
      %v355 = vpop.f32.mrb[0].mxu0
      %v356 = vpop.f32.mrb[0].mxu0
      %v357 = vadd.f32 0.0, %v356
      %v358 = vpop.f32.mrb[0].mxu0
      %359 = vmatprep.mubr.bf16.mxu0 0
      %360 = vmatmul.mubr.bf16.gmra.mrb[0].mxu0 %v311
      %v361 = vpop.f32.mrb[0].mxu0
      %v362 = vadd.f32 0.0, %v361
      %v363 = vpop.f32.mrb[0].mxu0
      %v364 = vpop.f32.mrb[0].mxu0
      %v365 = vpop.f32.mrb[0].mxu0
      %366 = vdwg.mxu0
      %v367 = vsel %vm120, %v354, -1e+30
      %v368 = vsel %vm120, %v357, -1e+30
      %v369 = vsel %vm120, %v362, -1e+30
      %v370 = vsel %vm200, %v367, -inf
      %371 = vmax.xlane.f32.xlu0 %v370
      %v372 = vpop.xlane.xlu0 %371
      %v373 = vsel %vm200, %v368, -inf
      %374 = vmax.xlane.f32.xlu0 %v373
      %v375 = vpop.xlane.xlu0 %374
      %v376 = vsel %vm200, %v369, -inf
      %377 = vmax.xlane.f32.xlu0 %v376
      %v378 = vpop.xlane.xlu0 %377
      %v379 = vsub.f32 %v367, %v372
      %v380 = vsub.f32 %v368, %v375
      %v381 = vsub.f32 %v369, %v378
      %v382 = vmul.f32 %v379, 1.442695
      %v383 = vpow.pop %v382
      %v384 = vmul.f32 %v380, 1.442695
      %v385 = vpow.pop %v384
      %v386 = vmul.f32 %v381, 1.442695
      %v387 = vpow.pop %v386
      %v388 = vsel %vm200, %v383, 0.0
      %389 = vadd.xlane.f32.xlu0 %v388
      %v390 = vpop.xlane.xlu0 %389
      %v391 = vsel %vm200, %v385, 0.0
      %392 = vadd.xlane.f32.xlu0 %v391
      %v393 = vpop.xlane.xlu0 %392
      %v394 = vsel %vm200, %v387, 0.0
      %395 = vadd.xlane.f32.xlu0 %v394
      %v396 = vpop.xlane.xlu0 %395
      %v397 = vrcp.pop %v390
      %v398 = vrcp.pop %v393
      %v399 = vrcp.pop %v396
      %v400 = vmul.f32 %v383, %v397
      %v401 = vmul.f32 %v385, %v398
      %v402 = vmul.f32 %v387, %v399
      %v403 = vpack.c.bf16 %v401, %v400
      %v404 = vpack.c.bf16 %v402, %v402
      %405 = vrot.lane.b32.xlu0 %v130, 48
      %v406 = vpop.permute.xlu0 %405
      %407 = vrot.lane.b32.xlu0 %v131, 48
      %v408 = vpop.permute.xlu0 %407
      %v411 = vsel %vm200, %v403, 0
      %v414 = vsel %vm200, %v404, 0
      %v417 = vsel %vm247, %v408, 0
      %419 = vmatprep.subr.bf16.mxu0 0
      %420 = vmatpush1.bf16.msra.mxu0 %v406
      %421 = vmatprep.subr.bf16.mxu0 0
      %422 = vmatpush1.bf16.msra.mxu0 %v417
      %423 = vmatprep.subr.bf16.mxu0 0
      %424 = vmatpush1.bf16.msra.mxu0 0
      %425 = vmatprep.subr.bf16.mxu0 0
      %426 = vmatpush1.bf16.msra.mxu0 0
      %427 = vmatprep.subr.bf16.mxu0 0
      %428 = vmatpush1.bf16.msra.mxu0 0
      %429 = vmatprep.subr.bf16.mxu0 0
      %430 = vmatpush1.bf16.msra.mxu0 0
      %431 = vmatprep.subr.bf16.mxu0 0
      %432 = vmatpush1.bf16.msra.mxu0 0
      %433 = vmatprep.subr.bf16.mxu0 0
      %434 = vmatpush1.bf16.msra.mxu0 0
      %435 = vmatprep.subr.bf16.mxu0 0
      %436 = vmatpush1.bf16.msra.mxu0 0
      %437 = vmatprep.subr.bf16.mxu0 0
      %438 = vmatpush1.bf16.msra.mxu0 0
      %439 = vmatprep.subr.bf16.mxu0 0
      %440 = vmatpush1.bf16.msra.mxu0 0
      %441 = vmatprep.subr.bf16.mxu0 0
      %442 = vmatpush1.bf16.msra.mxu0 0
      %443 = vmatprep.subr.bf16.mxu0 0
      %444 = vmatpush1.bf16.msra.mxu0 0
      %445 = vmatprep.subr.bf16.mxu0 0
      %446 = vmatpush1.bf16.msra.mxu0 0
      %447 = vmatprep.subr.bf16.mxu0 0
      %448 = vmatpush1.bf16.msra.mxu0 0
      %449 = vmatprep.subr.bf16.mxu0 0
      %450 = vmatpush1.bf16.msra.mxu0 0
      %451 = vmatprep.mubr.bf16.mxu0 0
      %452 = vmatmul.mubr.bf16.gmra.mrb[0].mxu0 %v411
      %v453 = vpop.f32.mrb[0].mxu0
      %v454 = vadd.f32 0.0, %v453
      %v455 = vpop.f32.mrb[0].mxu0
      %v456 = vpop.f32.mrb[0].mxu0
      %v457 = vadd.f32 0.0, %v456
      %v458 = vpop.f32.mrb[0].mxu0
      %459 = vmatprep.mubr.bf16.mxu0 0
      %460 = vmatmul.mubr.bf16.gmra.mrb[0].mxu0 %v414
      %v461 = vpop.f32.mrb[0].mxu0
      %v462 = vadd.f32 0.0, %v461
      %v463 = vpop.f32.mrb[0].mxu0
      %v464 = vpop.f32.mrb[0].mxu0
      %v465 = vpop.f32.mrb[0].mxu0
      %466 = vdwg.mxu0
      %v467 = vld [vmem:[%s111 + $0x4] sm:$0xf]
      %v468 = vld [vmem:[%s111 + $0xc] sm:$0xf]
      %v469 = vld [vmem:[%s111 + $0x14] sm:$0xf]
      %470 = vrot.lane.b32.xlu0 %v130, 32
      %v471 = vpop.permute.xlu0 %470
      %472 = vrot.lane.b32.xlu0 %v131, 32
      %v473 = vpop.permute.xlu0 %472
      %474 = vrot.lane.b32.xlu0 %v130, 16
      %v475 = vpop.permute.xlu0 %474
      %476 = vrot.lane.b32.xlu0 %v131, 16
      %v477 = vpop.permute.xlu0 %476
      %v479 = vsel %vm136, %v471, 0
      %v482 = vsel %vm136, %v473, 0
      %v485 = vsel %vm136, %v475, 0
      %v488 = vsel %vm136, %v477, 0
      %490 = vmatprep.subr.bf16.mxu0 0
      %491 = vmatpush1.bf16.xpose.msra.mxu0 %v485
      %492 = vmatprep.subr.bf16.mxu0 0
      %493 = vmatpush1.bf16.xpose.msra.mxu0 %v488
      %494 = vmatprep.subr.bf16.mxu0 0
      %495 = vmatpush1.bf16.xpose.msra.mxu0 0
      %496 = vmatprep.subr.bf16.mxu0 0
      %497 = vmatpush1.bf16.xpose.msra.mxu0 0
      %498 = vmatprep.subr.bf16.mxu0 0
      %499 = vmatpush1.bf16.xpose.msra.mxu0 0
      %500 = vmatprep.subr.bf16.mxu0 0
      %501 = vmatpush1.bf16.xpose.msra.mxu0 0
      %502 = vmatprep.subr.bf16.mxu0 0
      %503 = vmatpush1.bf16.xpose.msra.mxu0 0
      %504 = vmatprep.subr.bf16.mxu0 0
      %505 = vmatpush1.bf16.xpose.msra.mxu0 0
      %506 = vmatprep.subr.bf16.mxu0 0
      %507 = vmatpush1.bf16.xpose.msra.mxu0 0
      %508 = vmatprep.subr.bf16.mxu0 0
      %509 = vmatpush1.bf16.xpose.msra.mxu0 0
      %510 = vmatprep.subr.bf16.mxu0 0
      %511 = vmatpush1.bf16.xpose.msra.mxu0 0
      %512 = vmatprep.subr.bf16.mxu0 0
      %513 = vmatpush1.bf16.xpose.msra.mxu0 0
      %514 = vmatprep.subr.bf16.mxu0 0
      %515 = vmatpush1.bf16.xpose.msra.mxu0 0
      %516 = vmatprep.subr.bf16.mxu0 0
      %517 = vmatpush1.bf16.xpose.msra.mxu0 0
      %518 = vmatprep.subr.bf16.mxu0 0
      %519 = vmatpush1.bf16.xpose.msra.mxu0 0
      %520 = vmatprep.subr.bf16.mxu0 0
      %521 = vmatpush1.bf16.xpose.msra.mxu0 0
      %522 = vmatprep.mubr.bf16.mxu0 0
      %523 = vmatmul.mubr.bf16.gmra.mrb[0].mxu0 %v479
      %v524 = vpop.f32.mrb[0].mxu0
      %v525 = vadd.f32 0.0, %v524
      %v526 = vpop.f32.mrb[0].mxu0
      %v527 = vpop.f32.mrb[0].mxu0
      %v528 = vadd.f32 0.0, %v527
      %v529 = vpop.f32.mrb[0].mxu0
      %530 = vmatprep.mubr.bf16.mxu0 0
      %531 = vmatmul.mubr.bf16.gmra.mrb[0].mxu0 %v482
      %v532 = vpop.f32.mrb[0].mxu0
      %v533 = vadd.f32 0.0, %v532
      %v534 = vpop.f32.mrb[0].mxu0
      %v535 = vpop.f32.mrb[0].mxu0
      %v536 = vpop.f32.mrb[0].mxu0
      %537 = vdwg.mxu0
      %v538 = vsel %vm120, %v525, -1e+30
      %v539 = vsel %vm120, %v528, -1e+30
      %v540 = vsel %vm120, %v533, -1e+30
      %v541 = vsel %vm200, %v538, -inf
      %542 = vmax.xlane.f32.xlu0 %v541
      %v543 = vpop.xlane.xlu0 %542
      %v544 = vsel %vm200, %v539, -inf
      %545 = vmax.xlane.f32.xlu0 %v544
      %v546 = vpop.xlane.xlu0 %545
      %v547 = vsel %vm200, %v540, -inf
      %548 = vmax.xlane.f32.xlu0 %v547
      %v549 = vpop.xlane.xlu0 %548
      %v550 = vsub.f32 %v538, %v543
      %v551 = vsub.f32 %v539, %v546
      %v552 = vsub.f32 %v540, %v549
      %v553 = vmul.f32 %v550, 1.442695
      %v554 = vpow.pop %v553
      %v555 = vmul.f32 %v551, 1.442695
      %v556 = vpow.pop %v555
      %v557 = vmul.f32 %v552, 1.442695
      %v558 = vpow.pop %v557
      %v559 = vsel %vm200, %v554, 0.0
      %560 = vadd.xlane.f32.xlu0 %v559
      %v561 = vpop.xlane.xlu0 %560
      %v562 = vsel %vm200, %v556, 0.0
      %563 = vadd.xlane.f32.xlu0 %v562
      %v564 = vpop.xlane.xlu0 %563
      %v565 = vsel %vm200, %v558, 0.0
      %566 = vadd.xlane.f32.xlu0 %v565
      %v567 = vpop.xlane.xlu0 %566
      %v568 = vrcp.pop %v561
      %v569 = vrcp.pop %v564
      %v570 = vrcp.pop %v567
      %v571 = vmul.f32 %v554, %v568
      %v572 = vmul.f32 %v556, %v569
      %v573 = vmul.f32 %v558, %v570
      %v574 = vpack.c.bf16 %v572, %v571
      %v575 = vpack.c.bf16 %v573, %v573
      %v579 = vunpack.c.l.b16 %v467
      %v580 = vunpack.c.l.b16 %v468
      %v581 = vunpack.c.l.b16 %v469
      %v582 = vpack.c.b16 %v580, %v579
      %v583 = vpack.c.b16 %v581, %v581
      %v586 = vsel %vm200, %v574, 0
      %v589 = vsel %vm200, %v575, 0
      %v592 = vsel %vm247, %v583, 0
      %594 = vmatprep.subr.bf16.mxu0 0
      %595 = vmatpush1.bf16.msra.mxu0 %v582
      %596 = vmatprep.subr.bf16.mxu0 0
      %597 = vmatpush1.bf16.msra.mxu0 %v592
      %598 = vmatprep.subr.bf16.mxu0 0
      %599 = vmatpush1.bf16.msra.mxu0 0
      %600 = vmatprep.subr.bf16.mxu0 0
      %601 = vmatpush1.bf16.msra.mxu0 0
      %602 = vmatprep.subr.bf16.mxu0 0
      %603 = vmatpush1.bf16.msra.mxu0 0
      %604 = vmatprep.subr.bf16.mxu0 0
      %605 = vmatpush1.bf16.msra.mxu0 0
      %606 = vmatprep.subr.bf16.mxu0 0
      %607 = vmatpush1.bf16.msra.mxu0 0
      %608 = vmatprep.subr.bf16.mxu0 0
      %609 = vmatpush1.bf16.msra.mxu0 0
      %610 = vmatprep.subr.bf16.mxu0 0
      %611 = vmatpush1.bf16.msra.mxu0 0
      %612 = vmatprep.subr.bf16.mxu0 0
      %613 = vmatpush1.bf16.msra.mxu0 0
      %614 = vmatprep.subr.bf16.mxu0 0
      %615 = vmatpush1.bf16.msra.mxu0 0
      %616 = vmatprep.subr.bf16.mxu0 0
      %617 = vmatpush1.bf16.msra.mxu0 0
      %618 = vmatprep.subr.bf16.mxu0 0
      %619 = vmatpush1.bf16.msra.mxu0 0
      %620 = vmatprep.subr.bf16.mxu0 0
      %621 = vmatpush1.bf16.msra.mxu0 0
      %622 = vmatprep.subr.bf16.mxu0 0
      %623 = vmatpush1.bf16.msra.mxu0 0
      %624 = vmatprep.subr.bf16.mxu0 0
      %625 = vmatpush1.bf16.msra.mxu0 0
      %626 = vmatprep.mubr.bf16.mxu0 0
      %627 = vmatmul.mubr.bf16.gmra.mrb[0].mxu0 %v586
      %v628 = vpop.f32.mrb[0].mxu0
      %v629 = vadd.f32 0.0, %v628
      %v630 = vpop.f32.mrb[0].mxu0
      %v631 = vpop.f32.mrb[0].mxu0
      %v632 = vadd.f32 0.0, %v631
      %v633 = vpop.f32.mrb[0].mxu0
      %634 = vmatprep.mubr.bf16.mxu0 0
      %635 = vmatmul.mubr.bf16.gmra.mrb[0].mxu0 %v589
      %v636 = vpop.f32.mrb[0].mxu0
      %v637 = vadd.f32 0.0, %v636
      %v638 = vpop.f32.mrb[0].mxu0
      %v639 = vpop.f32.mrb[0].mxu0
      %v640 = vpop.f32.mrb[0].mxu0
      %641 = vdwg.mxu0
      %642 = vrot.lane.b32.xlu0 %v582, 112
      %v643 = vpop.permute.xlu0 %642
      %644 = vrot.lane.b32.xlu0 %v583, 112
      %v645 = vpop.permute.xlu0 %644
      %646 = vrot.lane.b32.xlu0 %v582, 96
      %v647 = vpop.permute.xlu0 %646
      %648 = vrot.lane.b32.xlu0 %v583, 96
      %v649 = vpop.permute.xlu0 %648
      %v651 = vsel %vm136, %v643, 0
      %v654 = vsel %vm136, %v645, 0
      %v657 = vsel %vm136, %v647, 0
      %v660 = vsel %vm136, %v649, 0
      %662 = vmatprep.subr.bf16.mxu0 0
      %663 = vmatpush1.bf16.xpose.msra.mxu0 %v657
      %664 = vmatprep.subr.bf16.mxu0 0
      %665 = vmatpush1.bf16.xpose.msra.mxu0 %v660
      %666 = vmatprep.subr.bf16.mxu0 0
      %667 = vmatpush1.bf16.xpose.msra.mxu0 0
      %668 = vmatprep.subr.bf16.mxu0 0
      %669 = vmatpush1.bf16.xpose.msra.mxu0 0
      %670 = vmatprep.subr.bf16.mxu0 0
      %671 = vmatpush1.bf16.xpose.msra.mxu0 0
      %672 = vmatprep.subr.bf16.mxu0 0
      %673 = vmatpush1.bf16.xpose.msra.mxu0 0
      %674 = vmatprep.subr.bf16.mxu0 0
      %675 = vmatpush1.bf16.xpose.msra.mxu0 0
      %676 = vmatprep.subr.bf16.mxu0 0
      %677 = vmatpush1.bf16.xpose.msra.mxu0 0
      %678 = vmatprep.subr.bf16.mxu0 0
      %679 = vmatpush1.bf16.xpose.msra.mxu0 0
      %680 = vmatprep.subr.bf16.mxu0 0
      %681 = vmatpush1.bf16.xpose.msra.mxu0 0
      %682 = vmatprep.subr.bf16.mxu0 0
      %683 = vmatpush1.bf16.xpose.msra.mxu0 0
      %684 = vmatprep.subr.bf16.mxu0 0
      %685 = vmatpush1.bf16.xpose.msra.mxu0 0
      %686 = vmatprep.subr.bf16.mxu0 0
      %687 = vmatpush1.bf16.xpose.msra.mxu0 0
      %688 = vmatprep.subr.bf16.mxu0 0
      %689 = vmatpush1.bf16.xpose.msra.mxu0 0
      %690 = vmatprep.subr.bf16.mxu0 0
      %691 = vmatpush1.bf16.xpose.msra.mxu0 0
      %692 = vmatprep.subr.bf16.mxu0 0
      %693 = vmatpush1.bf16.xpose.msra.mxu0 0
      %694 = vmatprep.mubr.bf16.mxu0 0
      %695 = vmatmul.mubr.bf16.gmra.mrb[0].mxu0 %v651
      %v696 = vpop.f32.mrb[0].mxu0
      %v697 = vadd.f32 0.0, %v696
      %v698 = vpop.f32.mrb[0].mxu0
      %v699 = vpop.f32.mrb[0].mxu0
      %v700 = vadd.f32 0.0, %v699
      %v701 = vpop.f32.mrb[0].mxu0
      %702 = vmatprep.mubr.bf16.mxu0 0
      %703 = vmatmul.mubr.bf16.gmra.mrb[0].mxu0 %v654
      %v704 = vpop.f32.mrb[0].mxu0
      %v705 = vadd.f32 0.0, %v704
      %v706 = vpop.f32.mrb[0].mxu0
      %v707 = vpop.f32.mrb[0].mxu0
      %v708 = vpop.f32.mrb[0].mxu0
      %709 = vdwg.mxu0
      %v710 = vsel %vm120, %v697, -1e+30
      %v711 = vsel %vm120, %v700, -1e+30
      %v712 = vsel %vm120, %v705, -1e+30
      %v713 = vsel %vm200, %v710, -inf
      %714 = vmax.xlane.f32.xlu0 %v713
      %v715 = vpop.xlane.xlu0 %714
      %v716 = vsel %vm200, %v711, -inf
      %717 = vmax.xlane.f32.xlu0 %v716
      %v718 = vpop.xlane.xlu0 %717
      %v719 = vsel %vm200, %v712, -inf
      %720 = vmax.xlane.f32.xlu0 %v719
      %v721 = vpop.xlane.xlu0 %720
      %v722 = vsub.f32 %v710, %v715
      %v723 = vsub.f32 %v711, %v718
      %v724 = vsub.f32 %v712, %v721
      %v725 = vmul.f32 %v722, 1.442695
      %v726 = vpow.pop %v725
      %v727 = vmul.f32 %v723, 1.442695
      %v728 = vpow.pop %v727
      %v729 = vmul.f32 %v724, 1.442695
      %v730 = vpow.pop %v729
      %v731 = vsel %vm200, %v726, 0.0
      %732 = vadd.xlane.f32.xlu0 %v731
      %v733 = vpop.xlane.xlu0 %732
      %v734 = vsel %vm200, %v728, 0.0
      %735 = vadd.xlane.f32.xlu0 %v734
      %v736 = vpop.xlane.xlu0 %735
      %v737 = vsel %vm200, %v730, 0.0
      %738 = vadd.xlane.f32.xlu0 %v737
      %v739 = vpop.xlane.xlu0 %738
      %v740 = vrcp.pop %v733
      %v741 = vrcp.pop %v736
      %v742 = vrcp.pop %v739
      %v743 = vmul.f32 %v726, %v740
      %v744 = vmul.f32 %v728, %v741
      %v745 = vmul.f32 %v730, %v742
      %v746 = vpack.c.bf16 %v744, %v743
      %v747 = vpack.c.bf16 %v745, %v745
      %748 = vrot.lane.b32.xlu0 %v582, 80
      %v749 = vpop.permute.xlu0 %748
      %750 = vrot.lane.b32.xlu0 %v583, 80
      %v751 = vpop.permute.xlu0 %750
      %v754 = vsel %vm200, %v746, 0
      %v757 = vsel %vm200, %v747, 0
      %v760 = vsel %vm247, %v751, 0
      %762 = vmatprep.subr.bf16.mxu0 0
      %763 = vmatpush1.bf16.msra.mxu0 %v749
      %764 = vmatprep.subr.bf16.mxu0 0
      %765 = vmatpush1.bf16.msra.mxu0 %v760
      %766 = vmatprep.subr.bf16.mxu0 0
      %767 = vmatpush1.bf16.msra.mxu0 0
      %768 = vmatprep.subr.bf16.mxu0 0
      %769 = vmatpush1.bf16.msra.mxu0 0
      %770 = vmatprep.subr.bf16.mxu0 0
      %771 = vmatpush1.bf16.msra.mxu0 0
      %772 = vmatprep.subr.bf16.mxu0 0
      %773 = vmatpush1.bf16.msra.mxu0 0
      %774 = vmatprep.subr.bf16.mxu0 0
      %775 = vmatpush1.bf16.msra.mxu0 0
      %776 = vmatprep.subr.bf16.mxu0 0
      %777 = vmatpush1.bf16.msra.mxu0 0
      %778 = vmatprep.subr.bf16.mxu0 0
      %779 = vmatpush1.bf16.msra.mxu0 0
      %780 = vmatprep.subr.bf16.mxu0 0
      %781 = vmatpush1.bf16.msra.mxu0 0
      %782 = vmatprep.subr.bf16.mxu0 0
      %783 = vmatpush1.bf16.msra.mxu0 0
      %784 = vmatprep.subr.bf16.mxu0 0
      %785 = vmatpush1.bf16.msra.mxu0 0
      %786 = vmatprep.subr.bf16.mxu0 0
      %787 = vmatpush1.bf16.msra.mxu0 0
      %788 = vmatprep.subr.bf16.mxu0 0
      %789 = vmatpush1.bf16.msra.mxu0 0
      %790 = vmatprep.subr.bf16.mxu0 0
      %791 = vmatpush1.bf16.msra.mxu0 0
      %792 = vmatprep.subr.bf16.mxu0 0
      %793 = vmatpush1.bf16.msra.mxu0 0
      %794 = vmatprep.mubr.bf16.mxu0 0
      %795 = vmatmul.mubr.bf16.gmra.mrb[0].mxu0 %v754
      %v796 = vpop.f32.mrb[0].mxu0
      %v797 = vadd.f32 0.0, %v796
      %v798 = vpop.f32.mrb[0].mxu0
      %v799 = vpop.f32.mrb[0].mxu0
      %v800 = vadd.f32 0.0, %v799
      %v801 = vpop.f32.mrb[0].mxu0
      %802 = vmatprep.mubr.bf16.mxu0 0
      %803 = vmatmul.mubr.bf16.gmra.mrb[0].mxu0 %v757
      %v804 = vpop.f32.mrb[0].mxu0
      %v805 = vadd.f32 0.0, %v804
      %v806 = vpop.f32.mrb[0].mxu0
      %v807 = vpop.f32.mrb[0].mxu0
      %v808 = vpop.f32.mrb[0].mxu0
      %809 = vdwg.mxu0
      %813 = vrot.lane.b32.xlu0 %v454, 16
      %v814 = vpop.permute.xlu0 %813
      %815 = vrot.lane.b32.xlu0 %v457, 16
      %v816 = vpop.permute.xlu0 %815
      %817 = vrot.lane.b32.xlu0 %v462, 16
      %v818 = vpop.permute.xlu0 %817
      %825 = vrot.lane.b32.xlu0 %v629, 32
      %v826 = vpop.permute.xlu0 %825
      %827 = vrot.lane.b32.xlu0 %v632, 32
      %v828 = vpop.permute.xlu0 %827
      %829 = vrot.lane.b32.xlu0 %v637, 32
      %v830 = vpop.permute.xlu0 %829
      %837 = vrot.lane.b32.xlu0 %v797, 48
      %v838 = vpop.permute.xlu0 %837
      %839 = vrot.lane.b32.xlu0 %v800, 48
      %v840 = vpop.permute.xlu0 %839
      %841 = vrot.lane.b32.xlu0 %v805, 48
      %v842 = vpop.permute.xlu0 %841
      %v846 = vsel %vm136, %v286, %v814
      %v847 = vsel %vm136, %v289, %v816
      %v848 = vsel %vm136, %v294, %v818
      %vm849 = vcmask 261120
      %v850 = vsel %vm849, %v846, %v826
      %v851 = vsel %vm849, %v847, %v828
      %v852 = vsel %vm849, %v848, %v830
      %vm853 = vcmask 392192
      %v854 = vsel %vm853, %v850, %v838
      %v855 = vsel %vm853, %v851, %v840
      %v856 = vsel %vm853, %v852, %v842
      %v857 = vpack.c.bf16 %v855, %v854
      %v858 = vpack.c.bf16 %v856, %v856
      %v861 = vunpack.c.l.b16 %v857
      %v862 = vunpack.c.h.b16 %v857
      %v863 = vunpack.c.l.b16 %v858
      %v864 = vpack.c.b16 %v861, %v861
      %v865 = vpack.c.b16 %v862, %v862
      %v866 = vpack.c.b16 %v863, %v863
      %vm870 = vcmask 519168
      %871 = vst.msk [vmem:[%s116] sm:$0xf] %vm870, %v864
      %872 = vst.msk [vmem:[%s116 + $0x4] sm:$0xf] %vm870, %v865
      %873 = vst.msk [vmem:[%s116 + $0x8] sm:$0xf] %vm870, %v866
      %p874 = scmp.lt.s32.totalorder %s12, 1
      %s875 = scalar_select %p874, %s12, 1
      %s876 = smul.addr %s875, 3
      %s877 = smul.addr %s876, 4
      %s878 = scalar_lea.vmem %s1, %s877
      // Predicated region
      $region25: #{vit_forward.14} parent=23 // pred_check
        %p879 = pneg %p56
      $region26: #{vit_forward.14} parent=23 // pred_check_branch
        %881 = sbr.rel (%p879) target = $region28
      $region27: #{vit_forward.14} parent=23 // pred_region
        _
      $region28: #{vit_forward.14} parent=23 // pred_fallthru
        _
    $region24: #{vit_forward.14} parent=5 // pred_fallthru
      _
    %p882 = scmp.le.s32.totalorder 2, %s7
    // Predicated region
    $region29: #{vit_forward.14} parent=5 // pred_check
      %p883 = pneg %p882
    $region30: #{vit_forward.14} parent=5 // pred_check_branch
      %885 = sbr.rel (%p883) target = $region32
    $region31: #{vit_forward.14} parent=5 // pred_region
      %s886 = ssub.s32 %s7, 2
      // Predicated region
      $region33: #{vit_forward.14} parent=31 // pred_check
        %p887 = pneg %p62
      $region34: #{vit_forward.14} parent=31 // pred_check_branch
        %889 = sbr.rel (%p887) target = $region36
      $region35: #{vit_forward.14} parent=31 // pred_region
        %p890 = scmp.lt.s32.totalorder %s13, 1
        %s891 = scalar_select %p890, %s13, 1
        %s892 = smul.addr %s891, 3
        %s893 = smul.addr %s892, 4
        %s894 = scalar_lea.vmem %s1, %s893
      $region36: #{vit_forward.14} parent=31 // pred_fallthru
        _
    $region32: #{vit_forward.14} parent=5 // pred_fallthru
      _
  $region6: #{vit_forward.14} parent=0 // loop_footer
    %s11 = sadd.s32 1, %s7
  $region7: #{vit_forward.14} parent=0 // loop_footer_branch
    %6 = sbr.rel target = $region3
  $region8: #{vit_forward.14} parent=0 // loop_exit
    _

// kernel: vit_forward.16
$region0: #{vit_forward.16}
  #allocation0 [shape = 'u32[]', space=smem, size = 0x4, offset = 0x4, fixed_abs, tag = 'smem constant byte address 0x4 - core index']
  #allocation1 [shape = 'u32[144,128]{1,0:T(1,128)}', space=vmem, size = 0x12000, scoped, tag = 'internal scratch']
  #allocation2 [shape = 'bf16[48,64]{1,0:T(16,128)(2,1)}', space=vmem, size = 0x3000, scoped, tag = 'scratch operand']
  %s0 = inlined_call_operand.vmem [shape: f32[48,64], index: 0, kind: input, shape index: {}]
  %s1 = inlined_call_operand.vmem [shape: bf16[64,256], index: 1, kind: input, shape index: {}]
  %s2 = inlined_call_operand.vmem [shape: f32[1,256], index: 2, kind: input, shape index: {}]
  %s3 = inlined_call_operand.vmem [shape: f32[1,64], index: 3, kind: input, shape index: {}]
  %s4 = inlined_call_operand.vmem [shape: f32[1,64], index: 4, kind: input, shape index: {}]
  %s5 = inlined_call_operand.vmem [shape: bf16[48,256], index: 5, kind: output, shape index: {}]
  %s6 = sld [smem:[#allocation0]]
  $region34: #{vit_forward.16} parent=0
    _
  %s8 = ssub.s32 1, %s6
  %s9 = scalar_select 0, %s8, %s6
  // Predicated region
  $region2: #{vit_forward.16} parent=0 // pred_check
    _
  $region3: #{vit_forward.16} parent=0 // pred_check_branch
    %11 = sbr.rel (0) target = $region5
  $region4: #{vit_forward.16} parent=0 // pred_region
    _
  $region5: #{vit_forward.16} parent=0 // pred_fallthru
    _
  // Predicated region
  $region6: #{vit_forward.16} parent=0 // pred_check
    _
  $region7: #{vit_forward.16} parent=0 // pred_check_branch
    %13 = sbr.rel (0) target = $region9
  $region8: #{vit_forward.16} parent=0 // pred_region
    _
  $region9: #{vit_forward.16} parent=0 // pred_fallthru
    _
  // Predicated region
  $region10: #{vit_forward.16} parent=0 // pred_check
    _
  $region11: #{vit_forward.16} parent=0 // pred_check_branch
    %15 = sbr.rel (0) target = $region13
  $region12: #{vit_forward.16} parent=0 // pred_region
    _
  $region13: #{vit_forward.16} parent=0 // pred_fallthru
    _
  // Predicated region
  $region14: #{vit_forward.16} parent=0 // pred_check
    _
  $region15: #{vit_forward.16} parent=0 // pred_check_branch
    %17 = sbr.rel (0) target = $region17
  $region16: #{vit_forward.16} parent=0 // pred_region
    _
  $region17: #{vit_forward.16} parent=0 // pred_fallthru
    _
  // Predicated region
  $region18: #{vit_forward.16} parent=0 // pred_check
    _
  $region19: #{vit_forward.16} parent=0 // pred_check_branch
    %19 = sbr.rel (0) target = $region21
  $region20: #{vit_forward.16} parent=0 // pred_region
    _
  $region21: #{vit_forward.16} parent=0 // pred_fallthru
    _
  %p21 = scmp.eq.s32.totalorder 0, 0
  // Predicated region
  $region22: #{vit_forward.16} parent=0 // pred_check
    %p22 = pneg %p21
  $region23: #{vit_forward.16} parent=0 // pred_check_branch
    %24 = sbr.rel (%p22) target = $region25
  $region24: #{vit_forward.16} parent=0 // pred_region
    %v25 = vld [vmem:[%s0] sm:$0xff]
    %v26 = vld [vmem:[%s0 + $0x8] sm:$0xff]
    %v27 = vld [vmem:[%s0 + $0x10] sm:$0xff]
    %v28 = vld [vmem:[%s0 + $0x18] sm:$0xff]
    %v29 = vld [vmem:[%s0 + $0x20] sm:$0xff]
    %v30 = vld [vmem:[%s0 + $0x28] sm:$0xff]
    %vm31 = vcmask 523264
    %v32 = vsel %vm31, %v25, 0.0
    %33 = vadd.xlane.f32.xlu0 %v32
    %v34 = vpop.xlane.xlu0 %33
    %v35 = vsel %vm31, %v26, 0.0
    %36 = vadd.xlane.f32.xlu0 %v35
    %v37 = vpop.xlane.xlu0 %36
    %v38 = vsel %vm31, %v27, 0.0
    %39 = vadd.xlane.f32.xlu0 %v38
    %v40 = vpop.xlane.xlu0 %39
    %v41 = vsel %vm31, %v28, 0.0
    %42 = vadd.xlane.f32.xlu0 %v41
    %v43 = vpop.xlane.xlu0 %42
    %v44 = vsel %vm31, %v29, 0.0
    %45 = vadd.xlane.f32.xlu0 %v44
    %v46 = vpop.xlane.xlu0 %45
    %v47 = vsel %vm31, %v30, 0.0
    %48 = vadd.xlane.f32.xlu0 %v47
    %v49 = vpop.xlane.xlu0 %48
    %v50 = vrcp.pop 64.0
    %v51 = vmul.f32 %v34, %v50
    %v52 = vmul.f32 %v37, %v50
    %v53 = vmul.f32 %v40, %v50
    %v54 = vmul.f32 %v43, %v50
    %v55 = vmul.f32 %v46, %v50
    %v56 = vmul.f32 %v49, %v50
    %v57 = vsub.f32 %v25, %v51
    %v58 = vsub.f32 %v26, %v52
    %v59 = vsub.f32 %v27, %v53
    %v60 = vsub.f32 %v28, %v54
    %v61 = vsub.f32 %v29, %v55
    %v62 = vsub.f32 %v30, %v56
    %v63 = vmul.f32 %v57, %v57
    %v64 = vmul.f32 %v58, %v58
    %v65 = vmul.f32 %v59, %v59
    %v66 = vmul.f32 %v60, %v60
    %v67 = vmul.f32 %v61, %v61
    %v68 = vmul.f32 %v62, %v62
    %v69 = vsel %vm31, %v63, 0.0
    %70 = vadd.xlane.f32.xlu0 %v69
    %v71 = vpop.xlane.xlu0 %70
    %v72 = vsel %vm31, %v64, 0.0
    %73 = vadd.xlane.f32.xlu0 %v72
    %v74 = vpop.xlane.xlu0 %73
    %v75 = vsel %vm31, %v65, 0.0
    %76 = vadd.xlane.f32.xlu0 %v75
    %v77 = vpop.xlane.xlu0 %76
    %v78 = vsel %vm31, %v66, 0.0
    %79 = vadd.xlane.f32.xlu0 %v78
    %v80 = vpop.xlane.xlu0 %79
    %v81 = vsel %vm31, %v67, 0.0
    %82 = vadd.xlane.f32.xlu0 %v81
    %v83 = vpop.xlane.xlu0 %82
    %v84 = vsel %vm31, %v68, 0.0
    %85 = vadd.xlane.f32.xlu0 %v84
    %v86 = vpop.xlane.xlu0 %85
    %v87 = vmul.f32 %v71, %v50
    %v88 = vmul.f32 %v74, %v50
    %v89 = vmul.f32 %v77, %v50
    %v90 = vmul.f32 %v80, %v50
    %v91 = vmul.f32 %v83, %v50
    %v92 = vmul.f32 %v86, %v50
    %v93 = vadd.f32 %v87, 1e-05
    %v94 = vadd.f32 %v88, 1e-05
    %v95 = vadd.f32 %v89, 1e-05
    %v96 = vadd.f32 %v90, 1e-05
    %v97 = vadd.f32 %v91, 1e-05
    %v98 = vadd.f32 %v92, 1e-05
    %v99 = vrsqrt.pop %v93
    %v100 = vrsqrt.pop %v94
    %v101 = vrsqrt.pop %v95
    %v102 = vrsqrt.pop %v96
    %v103 = vrsqrt.pop %v97
    %v104 = vrsqrt.pop %v98
    %v105 = vmul.f32 %v57, %v99
    %v106 = vmul.f32 %v58, %v100
    %v107 = vmul.f32 %v59, %v101
    %v108 = vmul.f32 %v60, %v102
    %v109 = vmul.f32 %v61, %v103
    %v110 = vmul.f32 %v62, %v104
    %v111 = vld [vmem:[%s3] sm:$0x1]
    %v113 = vlaneseq
    %v114 = vshrl.u32 %v113, 7
    %v115 = vsub.s32 0, %v114
    %v116 = vrot.slane %v111, %v115
    %v118 = vmul.f32 %v105, %v116
    %v119 = vmul.f32 %v106, %v116
    %v120 = vmul.f32 %v107, %v116
    %v121 = vmul.f32 %v108, %v116
    %v122 = vmul.f32 %v109, %v116
    %v123 = vmul.f32 %v110, %v116
    %v124 = vld [vmem:[%s4] sm:$0x1]
    %v126 = vlaneseq
    %v127 = vshrl.u32 %v126, 7
    %v128 = vsub.s32 0, %v127
    %v129 = vrot.slane %v124, %v128
    %v131 = vadd.f32 %v118, %v129
    %v132 = vadd.f32 %v119, %v129
    %v133 = vadd.f32 %v120, %v129
    %v134 = vadd.f32 %v121, %v129
    %v135 = vadd.f32 %v122, %v129
    %v136 = vadd.f32 %v123, %v129
    %v137 = vpack.c.bf16 %v132, %v131
    %v138 = vpack.c.bf16 %v134, %v133
    %v139 = vpack.c.bf16 %v136, %v135
    %140 = vst.msk [vmem:[#allocation2] sm:$0xff] %vm31, %v137
    %141 = vst.msk [vmem:[#allocation2 + $0x8] sm:$0xff] %vm31, %v138
    %142 = vst.msk [vmem:[#allocation2 + $0x10] sm:$0xff] %vm31, %v139
  $region25: #{vit_forward.16} parent=0 // pred_fallthru
    _
  %v143 = vld [vmem:[#allocation2] sm:$0xff]
  %v144 = vld [vmem:[#allocation2 + $0x8] sm:$0xff]
  %v145 = vld [vmem:[#allocation2 + $0x10] sm:$0xff]
  %v146 = vld [vmem:[%s1] sm:$0xff]
  %v147 = vld [vmem:[%s1 + $0x8] sm:$0xff]
  %v148 = vld [vmem:[%s1 + $0x10] sm:$0xff]
  %v149 = vld [vmem:[%s1 + $0x18] sm:$0xff]
  %v150 = vld [vmem:[%s1 + $0x20] sm:$0xff]
  %v151 = vld [vmem:[%s1 + $0x28] sm:$0xff]
  %v152 = vld [vmem:[%s1 + $0x30] sm:$0xff]
  %v153 = vld [vmem:[%s1 + $0x38] sm:$0xff]
  %v154 = vld [vmem:[%s2] sm:$0x3]
  %v156 = vlaneseq
  %v157 = vshrl.u32 %v156, 7
  %v158 = vsub.s32 0, %v157
  %v159 = vrot.slane %v154, %v158
  %v160 = vlaneseq
  %v161 = vshrl.u32 %v160, 7
  %v162 = vsub.s32 1, %v161
  %v163 = vrot.slane %v154, %v162
  %v174 = vunpack.c.l.b16 %v146
  %v175 = vunpack.c.h.b16 %v146
  %v176 = vunpack.c.l.b16 %v147
  %v177 = vunpack.c.h.b16 %v147
  %v178 = vunpack.c.l.b16 %v148
  %v179 = vunpack.c.h.b16 %v148
  %v180 = vunpack.c.l.b16 %v149
  %v181 = vunpack.c.h.b16 %v149
  %v182 = vunpack.c.l.b16 %v150
  %v183 = vunpack.c.h.b16 %v150
  %v184 = vunpack.c.l.b16 %v151
  %v185 = vunpack.c.h.b16 %v151
  %v186 = vunpack.c.l.b16 %v152
  %v187 = vunpack.c.h.b16 %v152
  %v188 = vunpack.c.l.b16 %v153
  %v189 = vunpack.c.h.b16 %v153
  %v190 = vpack.c.b16 %v176, %v174
  %v191 = vpack.c.b16 %v177, %v175
  %v192 = vpack.c.b16 %v180, %v178
  %v193 = vpack.c.b16 %v181, %v179
  %v194 = vpack.c.b16 %v184, %v182
  %v195 = vpack.c.b16 %v185, %v183
  %v196 = vpack.c.b16 %v188, %v186
  %v197 = vpack.c.b16 %v189, %v187
  %vm206 = vcmask 523264
  %v208 = vsel %vm206, %v143, 0
  %v211 = vsel %vm206, %v144, 0
  %v214 = vsel %vm206, %v145, 0
  %216 = vmatprep.subr.bf16.mxu0 %v191
  %217 = vmatpush1.bf16.msra.mxu0 %v190
  %218 = vmatprep.subr.bf16.mxu0 %v193
  %219 = vmatpush1.bf16.msra.mxu0 %v192
  %220 = vmatprep.subr.bf16.mxu0 %v195
  %221 = vmatpush1.bf16.msra.mxu0 %v194
  %222 = vmatprep.subr.bf16.mxu0 %v197
  %223 = vmatpush1.bf16.msra.mxu0 %v196
  %224 = vmatprep.subr.bf16.mxu0 0
  %225 = vmatpush1.bf16.msra.mxu0 0
  %226 = vmatprep.subr.bf16.mxu0 0
  %227 = vmatpush1.bf16.msra.mxu0 0
  %228 = vmatprep.subr.bf16.mxu0 0
  %229 = vmatpush1.bf16.msra.mxu0 0
  %230 = vmatprep.subr.bf16.mxu0 0
  %231 = vmatpush1.bf16.msra.mxu0 0
  %232 = vmatprep.subr.bf16.mxu0 0
  %233 = vmatpush1.bf16.msra.mxu0 0
  %234 = vmatprep.subr.bf16.mxu0 0
  %235 = vmatpush1.bf16.msra.mxu0 0
  %236 = vmatprep.subr.bf16.mxu0 0
  %237 = vmatpush1.bf16.msra.mxu0 0
  %238 = vmatprep.subr.bf16.mxu0 0
  %239 = vmatpush1.bf16.msra.mxu0 0
  %240 = vmatprep.subr.bf16.mxu0 0
  %241 = vmatpush1.bf16.msra.mxu0 0
  %242 = vmatprep.subr.bf16.mxu0 0
  %243 = vmatpush1.bf16.msra.mxu0 0
  %244 = vmatprep.subr.bf16.mxu0 0
  %245 = vmatpush1.bf16.msra.mxu0 0
  %246 = vmatprep.subr.bf16.mxu0 0
  %247 = vmatpush1.bf16.msra.mxu0 0
  %248 = vmatprep.mubr.bf16.mxu0 0
  %249 = vmatmul.mubr.bf16.gmra.mrb[0].mxu0 %v208
  %v250 = vpop.f32.mrb[0].mxu0
  %v251 = vadd.f32 %v159, %v250
  %v252 = vpop.f32.mrb[0].mxu0
  %v253 = vadd.f32 %v163, %v252
  %v254 = vpop.f32.mrb[0].mxu0
  %v255 = vadd.f32 %v159, %v254
  %v256 = vpop.f32.mrb[0].mxu0
  %v257 = vadd.f32 %v163, %v256
  %258 = vmatprep.mubr.bf16.mxu0 0
  %259 = vmatmul.mubr.bf16.gmra.mrb[0].mxu0 %v211
  %v260 = vpop.f32.mrb[0].mxu0
  %v261 = vadd.f32 %v159, %v260
  %v262 = vpop.f32.mrb[0].mxu0
  %v263 = vadd.f32 %v163, %v262
  %v264 = vpop.f32.mrb[0].mxu0
  %v265 = vadd.f32 %v159, %v264
  %v266 = vpop.f32.mrb[0].mxu0
  %v267 = vadd.f32 %v163, %v266
  %268 = vmatprep.mubr.bf16.mxu0 0
  %269 = vmatmul.mubr.bf16.gmra.mrb[0].mxu0 %v214
  %v270 = vpop.f32.mrb[0].mxu0
  %v271 = vadd.f32 %v159, %v270
  %v272 = vpop.f32.mrb[0].mxu0
  %v273 = vadd.f32 %v163, %v272
  %v274 = vpop.f32.mrb[0].mxu0
  %v275 = vadd.f32 %v159, %v274
  %v276 = vpop.f32.mrb[0].mxu0
  %v277 = vadd.f32 %v163, %v276
  %278 = vdwg.mxu0
  %v279 = vmul.f32 %v251, 0.5
  %v280 = vmul.f32 %v253, 0.5
  %v281 = vmul.f32 %v255, 0.5
  %v282 = vmul.f32 %v257, 0.5
  %v283 = vmul.f32 %v261, 0.5
  %v284 = vmul.f32 %v263, 0.5
  %v285 = vmul.f32 %v265, 0.5
  %v286 = vmul.f32 %v267, 0.5
  %v287 = vmul.f32 %v271, 0.5
  %v288 = vmul.f32 %v273, 0.5
  %v289 = vmul.f32 %v275, 0.5
  %v290 = vmul.f32 %v277, 0.5
  %v291 = vmul.f32 %v251, 0.70710677
  %v292 = vmul.f32 %v253, 0.70710677
  %v293 = vmul.f32 %v255, 0.70710677
  %v294 = vmul.f32 %v257, 0.70710677
  %v295 = vmul.f32 %v261, 0.70710677
  %v296 = vmul.f32 %v263, 0.70710677
  %v297 = vmul.f32 %v265, 0.70710677
  %v298 = vmul.f32 %v267, 0.70710677
  %v299 = vmul.f32 %v271, 0.70710677
  %v300 = vmul.f32 %v273, 0.70710677
  %v301 = vmul.f32 %v275, 0.70710677
  %v302 = vmul.f32 %v277, 0.70710677
  %v303 = verf.f32.pop %v291
  %v304 = verf.f32.pop %v292
  %v305 = verf.f32.pop %v293
  %v306 = verf.f32.pop %v294
  %v307 = verf.f32.pop %v295
  %v308 = verf.f32.pop %v296
  %v309 = verf.f32.pop %v297
  %v310 = verf.f32.pop %v298
  %v311 = verf.f32.pop %v299
  %v312 = verf.f32.pop %v300
  %v313 = verf.f32.pop %v301
  %v314 = verf.f32.pop %v302
  %v315 = vadd.f32 %v303, 1.0
  %v316 = vadd.f32 %v304, 1.0
  %v317 = vadd.f32 %v305, 1.0
  %v318 = vadd.f32 %v306, 1.0
  %v319 = vadd.f32 %v307, 1.0
  %v320 = vadd.f32 %v308, 1.0
  %v321 = vadd.f32 %v309, 1.0
  %v322 = vadd.f32 %v310, 1.0
  %v323 = vadd.f32 %v311, 1.0
  %v324 = vadd.f32 %v312, 1.0
  %v325 = vadd.f32 %v313, 1.0
  %v326 = vadd.f32 %v314, 1.0
  %v327 = vmul.f32 %v279, %v315
  %v328 = vmul.f32 %v280, %v316
  %v329 = vmul.f32 %v281, %v317
  %v330 = vmul.f32 %v282, %v318
  %v331 = vmul.f32 %v283, %v319
  %v332 = vmul.f32 %v284, %v320
  %v333 = vmul.f32 %v285, %v321
  %v334 = vmul.f32 %v286, %v322
  %v335 = vmul.f32 %v287, %v323
  %v336 = vmul.f32 %v288, %v324
  %v337 = vmul.f32 %v289, %v325
  %v338 = vmul.f32 %v290, %v326
  %v339 = vpack.c.bf16 %v329, %v327
  %v340 = vpack.c.bf16 %v330, %v328
  %v341 = vpack.c.bf16 %v333, %v331
  %v342 = vpack.c.bf16 %v334, %v332
  %v343 = vpack.c.bf16 %v337, %v335
  %v344 = vpack.c.bf16 %v338, %v336
  %v351 = vunpack.c.l.b16 %v339
  %v352 = vunpack.c.l.b16 %v340
  %v353 = vunpack.c.h.b16 %v339
  %v354 = vunpack.c.h.b16 %v340
  %v355 = vunpack.c.l.b16 %v341
  %v356 = vunpack.c.l.b16 %v342
  %v357 = vunpack.c.h.b16 %v341
  %v358 = vunpack.c.h.b16 %v342
  %v359 = vunpack.c.l.b16 %v343
  %v360 = vunpack.c.l.b16 %v344
  %v361 = vunpack.c.h.b16 %v343
  %v362 = vunpack.c.h.b16 %v344
  %v363 = vpack.c.b16 %v352, %v351
  %v364 = vpack.c.b16 %v354, %v353
  %v365 = vpack.c.b16 %v356, %v355
  %v366 = vpack.c.b16 %v358, %v357
  %v367 = vpack.c.b16 %v360, %v359
  %v368 = vpack.c.b16 %v362, %v361
  %375 = vst [vmem:[%s5] sm:$0xff] %v363
  %376 = vst [vmem:[%s5 + $0x8] sm:$0xff] %v364
  %377 = vst [vmem:[%s5 + $0x10] sm:$0xff] %v365
  %378 = vst [vmem:[%s5 + $0x18] sm:$0xff] %v366
  %379 = vst [vmem:[%s5 + $0x20] sm:$0xff] %v367
  %380 = vst [vmem:[%s5 + $0x28] sm:$0xff] %v368
  // Predicated region
  $region26: #{vit_forward.16} parent=0 // pred_check
    _
  $region27: #{vit_forward.16} parent=0 // pred_check_branch
    %382 = sbr.rel (0) target = $region29
  $region28: #{vit_forward.16} parent=0 // pred_region
    _
  $region29: #{vit_forward.16} parent=0 // pred_fallthru
    _
  // Predicated region
  $region30: #{vit_forward.16} parent=0 // pred_check
    _
  $region31: #{vit_forward.16} parent=0 // pred_check_branch
    %384 = sbr.rel (0) target = $region33
  $region32: #{vit_forward.16} parent=0 // pred_region
    _
  $region33: #{vit_forward.16} parent=0 // pred_fallthru
    _

// kernel: vit_forward.17
$region0: #{vit_forward.17}
  #allocation0 [shape = 'u32[]', space=smem, size = 0x4, offset = 0x4, fixed_abs, tag = 'smem constant byte address 0x4 - core index']
  #allocation1 [shape = 'u32[144,128]{1,0:T(1,128)}', space=vmem, size = 0x12000, scoped, tag = 'internal scratch']
  %s0 = inlined_call_operand.vmem [shape: bf16[48,256], index: 0, kind: input, shape index: {}]
  %s1 = inlined_call_operand.vmem [shape: bf16[256,64], index: 1, kind: input, shape index: {}]
  %s2 = inlined_call_operand.vmem [shape: f32[1,64], index: 2, kind: input, shape index: {}]
  %s3 = inlined_call_operand.vmem [shape: f32[48,64], index: 3, kind: input, shape index: {}]
  %s4 = inlined_call_operand.vmem [shape: f32[48,64], index: 4, kind: output, shape index: {}]
  %s5 = sld [smem:[#allocation0]]
  $region26: #{vit_forward.17} parent=0
    _
  %s7 = ssub.s32 1, %s5
  %s8 = scalar_select 0, %s7, %s5
  // Predicated region
  $region2: #{vit_forward.17} parent=0 // pred_check
    _
  $region3: #{vit_forward.17} parent=0 // pred_check_branch
    %10 = sbr.rel (0) target = $region5
  $region4: #{vit_forward.17} parent=0 // pred_region
    _
  $region5: #{vit_forward.17} parent=0 // pred_fallthru
    _
  // Predicated region
  $region6: #{vit_forward.17} parent=0 // pred_check
    _
  $region7: #{vit_forward.17} parent=0 // pred_check_branch
    %12 = sbr.rel (0) target = $region9
  $region8: #{vit_forward.17} parent=0 // pred_region
    _
  $region9: #{vit_forward.17} parent=0 // pred_fallthru
    _
  // Predicated region
  $region10: #{vit_forward.17} parent=0 // pred_check
    _
  $region11: #{vit_forward.17} parent=0 // pred_check_branch
    %14 = sbr.rel (0) target = $region13
  $region12: #{vit_forward.17} parent=0 // pred_region
    _
  $region13: #{vit_forward.17} parent=0 // pred_fallthru
    _
  // Predicated region
  $region14: #{vit_forward.17} parent=0 // pred_check
    _
  $region15: #{vit_forward.17} parent=0 // pred_check_branch
    %16 = sbr.rel (0) target = $region17
  $region16: #{vit_forward.17} parent=0 // pred_region
    _
  $region17: #{vit_forward.17} parent=0 // pred_fallthru
    _
  %v18 = vld [vmem:[%s0] sm:$0xff]
  %v19 = vld [vmem:[%s0 + $0x8] sm:$0xff]
  %v20 = vld [vmem:[%s0 + $0x10] sm:$0xff]
  %v21 = vld [vmem:[%s0 + $0x18] sm:$0xff]
  %v22 = vld [vmem:[%s0 + $0x20] sm:$0xff]
  %v23 = vld [vmem:[%s0 + $0x28] sm:$0xff]
  %v24 = vld [vmem:[%s1] sm:$0xf]
  %v25 = vld [vmem:[%s1 + $0x4] sm:$0xf]
  %v26 = vld [vmem:[%s1 + $0x8] sm:$0xf]
  %v27 = vld [vmem:[%s1 + $0xc] sm:$0xf]
  %v28 = vld [vmem:[%s1 + $0x10] sm:$0xf]
  %v29 = vld [vmem:[%s1 + $0x14] sm:$0xf]
  %v30 = vld [vmem:[%s1 + $0x18] sm:$0xf]
  %v31 = vld [vmem:[%s1 + $0x1c] sm:$0xf]
  %v32 = vld [vmem:[%s1 + $0x20] sm:$0xf]
  %v33 = vld [vmem:[%s1 + $0x24] sm:$0xf]
  %v34 = vld [vmem:[%s1 + $0x28] sm:$0xf]
  %v35 = vld [vmem:[%s1 + $0x2c] sm:$0xf]
  %v36 = vld [vmem:[%s1 + $0x30] sm:$0xf]
  %v37 = vld [vmem:[%s1 + $0x34] sm:$0xf]
  %v38 = vld [vmem:[%s1 + $0x38] sm:$0xf]
  %v39 = vld [vmem:[%s1 + $0x3c] sm:$0xf]
  %v40 = vld [vmem:[%s1 + $0x40] sm:$0xf]
  %v41 = vld [vmem:[%s1 + $0x44] sm:$0xf]
  %v42 = vld [vmem:[%s1 + $0x48] sm:$0xf]
  %v43 = vld [vmem:[%s1 + $0x4c] sm:$0xf]
  %v44 = vld [vmem:[%s1 + $0x50] sm:$0xf]
  %v45 = vld [vmem:[%s1 + $0x54] sm:$0xf]
  %v46 = vld [vmem:[%s1 + $0x58] sm:$0xf]
  %v47 = vld [vmem:[%s1 + $0x5c] sm:$0xf]
  %v48 = vld [vmem:[%s1 + $0x60] sm:$0xf]
  %v49 = vld [vmem:[%s1 + $0x64] sm:$0xf]
  %v50 = vld [vmem:[%s1 + $0x68] sm:$0xf]
  %v51 = vld [vmem:[%s1 + $0x6c] sm:$0xf]
  %v52 = vld [vmem:[%s1 + $0x70] sm:$0xf]
  %v53 = vld [vmem:[%s1 + $0x74] sm:$0xf]
  %v54 = vld [vmem:[%s1 + $0x78] sm:$0xf]
  %v55 = vld [vmem:[%s1 + $0x7c] sm:$0xf]
  %v56 = vld [vmem:[%s2] sm:$0x1]
  %v58 = vlaneseq
  %v59 = vshrl.u32 %v58, 7
  %v60 = vsub.s32 0, %v59
  %v61 = vrot.slane %v56, %v60
  %v69 = vunpack.c.l.b16 %v18
  %v70 = vunpack.c.h.b16 %v18
  %v71 = vunpack.c.l.b16 %v19
  %v72 = vunpack.c.h.b16 %v19
  %v73 = vunpack.c.l.b16 %v20
  %v74 = vunpack.c.h.b16 %v20
  %v75 = vunpack.c.l.b16 %v21
  %v76 = vunpack.c.h.b16 %v21
  %v77 = vunpack.c.l.b16 %v22
  %v78 = vunpack.c.h.b16 %v22
  %v79 = vunpack.c.l.b16 %v23
  %v80 = vunpack.c.h.b16 %v23
  %v81 = vpack.c.b16 %v71, %v69
  %v82 = vpack.c.b16 %v72, %v70
  %v83 = vpack.c.b16 %v75, %v73
  %v84 = vpack.c.b16 %v76, %v74
  %v85 = vpack.c.b16 %v79, %v77
  %v86 = vpack.c.b16 %v80, %v78
  %v125 = vunpack.c.l.b16 %v24
  %v126 = vunpack.c.l.b16 %v25
  %v127 = vunpack.c.l.b16 %v26
  %v128 = vunpack.c.l.b16 %v27
  %v129 = vunpack.c.l.b16 %v28
  %v130 = vunpack.c.l.b16 %v29
  %v131 = vunpack.c.l.b16 %v30
  %v132 = vunpack.c.l.b16 %v31
  %v133 = vunpack.c.l.b16 %v32
  %v134 = vunpack.c.l.b16 %v33
  %v135 = vunpack.c.l.b16 %v34
  %v136 = vunpack.c.l.b16 %v35
  %v137 = vunpack.c.l.b16 %v36
  %v138 = vunpack.c.l.b16 %v37
  %v139 = vunpack.c.l.b16 %v38
  %v140 = vunpack.c.l.b16 %v39
  %v141 = vunpack.c.l.b16 %v40
  %v142 = vunpack.c.l.b16 %v41
  %v143 = vunpack.c.l.b16 %v42
  %v144 = vunpack.c.l.b16 %v43
  %v145 = vunpack.c.l.b16 %v44
  %v146 = vunpack.c.l.b16 %v45
  %v147 = vunpack.c.l.b16 %v46
  %v148 = vunpack.c.l.b16 %v47
  %v149 = vunpack.c.l.b16 %v48
  %v150 = vunpack.c.l.b16 %v49
  %v151 = vunpack.c.l.b16 %v50
  %v152 = vunpack.c.l.b16 %v51
  %v153 = vunpack.c.l.b16 %v52
  %v154 = vunpack.c.l.b16 %v53
  %v155 = vunpack.c.l.b16 %v54
  %v156 = vunpack.c.l.b16 %v55
  %v157 = vpack.c.b16 %v126, %v125
  %v158 = vpack.c.b16 %v128, %v127
  %v159 = vpack.c.b16 %v130, %v129
  %v160 = vpack.c.b16 %v132, %v131
  %v161 = vpack.c.b16 %v134, %v133
  %v162 = vpack.c.b16 %v136, %v135
  %v163 = vpack.c.b16 %v138, %v137
  %v164 = vpack.c.b16 %v140, %v139
  %v165 = vpack.c.b16 %v142, %v141
  %v166 = vpack.c.b16 %v144, %v143
  %v167 = vpack.c.b16 %v146, %v145
  %v168 = vpack.c.b16 %v148, %v147
  %v169 = vpack.c.b16 %v150, %v149
  %v170 = vpack.c.b16 %v152, %v151
  %v171 = vpack.c.b16 %v154, %v153
  %v172 = vpack.c.b16 %v156, %v155
  %189 = vmatprep.subr.bf16.mxu0 0
  %190 = vmatpush1.bf16.msra.mxu0 %v157
  %191 = vmatprep.subr.bf16.mxu0 0
  %192 = vmatpush1.bf16.msra.mxu0 %v158
  %193 = vmatprep.subr.bf16.mxu0 0
  %194 = vmatpush1.bf16.msra.mxu0 %v159
  %195 = vmatprep.subr.bf16.mxu0 0
  %196 = vmatpush1.bf16.msra.mxu0 %v160
  %197 = vmatprep.subr.bf16.mxu0 0
  %198 = vmatpush1.bf16.msra.mxu0 %v161
  %199 = vmatprep.subr.bf16.mxu0 0
  %200 = vmatpush1.bf16.msra.mxu0 %v162
  %201 = vmatprep.subr.bf16.mxu0 0
  %202 = vmatpush1.bf16.msra.mxu0 %v163
  %203 = vmatprep.subr.bf16.mxu0 0
  %204 = vmatpush1.bf16.msra.mxu0 %v164
  %205 = vmatprep.subr.bf16.mxu0 0
  %206 = vmatpush1.bf16.msra.mxu0 %v165
  %207 = vmatprep.subr.bf16.mxu0 0
  %208 = vmatpush1.bf16.msra.mxu0 %v166
  %209 = vmatprep.subr.bf16.mxu0 0
  %210 = vmatpush1.bf16.msra.mxu0 %v167
  %211 = vmatprep.subr.bf16.mxu0 0
  %212 = vmatpush1.bf16.msra.mxu0 %v168
  %213 = vmatprep.subr.bf16.mxu0 0
  %214 = vmatpush1.bf16.msra.mxu0 %v169
  %215 = vmatprep.subr.bf16.mxu0 0
  %216 = vmatpush1.bf16.msra.mxu0 %v170
  %217 = vmatprep.subr.bf16.mxu0 0
  %218 = vmatpush1.bf16.msra.mxu0 %v171
  %219 = vmatprep.subr.bf16.mxu0 0
  %220 = vmatpush1.bf16.msra.mxu0 %v172
  %221 = vmatprep.mubr.bf16.mxu0 %v82
  %222 = vmatmul.mubr.bf16.gmra.mrb[0].mxu0 %v81
  %v223 = vpop.f32.mrb[0].mxu0
  %v224 = vadd.f32 %v61, %v223
  %v225 = vpop.f32.mrb[0].mxu0
  %v226 = vpop.f32.mrb[0].mxu0
  %v227 = vadd.f32 %v61, %v226
  %v228 = vpop.f32.mrb[0].mxu0
  %229 = vmatprep.mubr.bf16.mxu0 %v84
  %230 = vmatmul.mubr.bf16.gmra.mrb[0].mxu0 %v83
  %v231 = vpop.f32.mrb[0].mxu0
  %v232 = vadd.f32 %v61, %v231
  %v233 = vpop.f32.mrb[0].mxu0
  %v234 = vpop.f32.mrb[0].mxu0
  %v235 = vadd.f32 %v61, %v234
  %v236 = vpop.f32.mrb[0].mxu0
  %237 = vmatprep.mubr.bf16.mxu0 %v86
  %238 = vmatmul.mubr.bf16.gmra.mrb[0].mxu0 %v85
  %v239 = vpop.f32.mrb[0].mxu0
  %v240 = vadd.f32 %v61, %v239
  %v241 = vpop.f32.mrb[0].mxu0
  %v242 = vpop.f32.mrb[0].mxu0
  %v243 = vadd.f32 %v61, %v242
  %v244 = vpop.f32.mrb[0].mxu0
  %245 = vdwg.mxu0
  %v246 = vld [vmem:[%s3] sm:$0xff]
  %v247 = vld [vmem:[%s3 + $0x8] sm:$0xff]
  %v248 = vld [vmem:[%s3 + $0x10] sm:$0xff]
  %v249 = vld [vmem:[%s3 + $0x18] sm:$0xff]
  %v250 = vld [vmem:[%s3 + $0x20] sm:$0xff]
  %v251 = vld [vmem:[%s3 + $0x28] sm:$0xff]
  %v252 = vadd.f32 %v224, %v246
  %v253 = vadd.f32 %v227, %v247
  %v254 = vadd.f32 %v232, %v248
  %v255 = vadd.f32 %v235, %v249
  %v256 = vadd.f32 %v240, %v250
  %v257 = vadd.f32 %v243, %v251
  %vm258 = vcmask 523264
  %259 = vst.msk [vmem:[%s4] sm:$0xff] %vm258, %v252
  %260 = vst.msk [vmem:[%s4 + $0x8] sm:$0xff] %vm258, %v253
  %261 = vst.msk [vmem:[%s4 + $0x10] sm:$0xff] %vm258, %v254
  %262 = vst.msk [vmem:[%s4 + $0x18] sm:$0xff] %vm258, %v255
  %263 = vst.msk [vmem:[%s4 + $0x20] sm:$0xff] %vm258, %v256
  %264 = vst.msk [vmem:[%s4 + $0x28] sm:$0xff] %vm258, %v257
  // Predicated region
  $region18: #{vit_forward.17} parent=0 // pred_check
    _
  $region19: #{vit_forward.17} parent=0 // pred_check_branch
    %266 = sbr.rel (0) target = $region21
  $region20: #{vit_forward.17} parent=0 // pred_region
    _
  $region21: #{vit_forward.17} parent=0 // pred_fallthru
    _
  // Predicated region
  $region22: #{vit_forward.17} parent=0 // pred_check
    _
  $region23: #{vit_forward.17} parent=0 // pred_check_branch
    %268 = sbr.rel (0) target = $region25
  $region24: #{vit_forward.17} parent=0 // pred_region
    _
  $region25: #{vit_forward.17} parent=0 // pred_fallthru
    _

// kernel: vit_forward.23
$region0: #{vit_forward.23}
  #allocation0 [shape = 'u32[]', space=smem, size = 0x4, offset = 0x4, fixed_abs, tag = 'smem constant byte address 0x4 - core index']
  #allocation1 [shape = 'u32[144,128]{1,0:T(1,128)}', space=vmem, size = 0x12000, scoped, tag = 'internal scratch']
  #allocation2 [shape = 'bf16[2,64]{1,0:T(2,128)(2,1)}', space=vmem, size = 0x200, scoped, tag = 'scratch operand']
  %s0 = inlined_call_operand.vmem [shape: f32[2,64], index: 0, kind: input, shape index: {}]
  %s1 = inlined_call_operand.vmem [shape: bf16[64,16], index: 1, kind: input, shape index: {}]
  %s2 = inlined_call_operand.vmem [shape: f32[1,16], index: 2, kind: input, shape index: {}]
  %s3 = inlined_call_operand.vmem [shape: f32[1,64], index: 3, kind: input, shape index: {}]
  %s4 = inlined_call_operand.vmem [shape: f32[1,64], index: 4, kind: input, shape index: {}]
  %s5 = inlined_call_operand.hbm [shape: f32[2,16], index: 5, kind: output, shape index: {}]
  %s6 = sld [smem:[#allocation0]]
  $region34: #{vit_forward.23} parent=0
    _
  %s8 = ssub.s32 1, %s6
  %s9 = scalar_select 0, %s8, %s6
  $region1: #{vit_forward.23} parent=0
    #allocation3 [shape = 'u8[1024]{0}', space=vmem, size = 0x400, scoped, tag = 'output window, operand 0, single buffered']
    #allocation4 [shape = 's32[1]{0}', space=sflag, size = 0x4, scoped, tag = 'scoped memory for vit_forward.23']
    %10 = vsyncpa [#allocation4], 0
    // Predicated region
    $region2: #{vit_forward.23} parent=1 // pred_check
      _
    $region3: #{vit_forward.23} parent=1 // pred_check_branch
      %12 = sbr.rel (0) target = $region5
    $region4: #{vit_forward.23} parent=1 // pred_region
      _
    $region5: #{vit_forward.23} parent=1 // pred_fallthru
      _
    // Predicated region
    $region6: #{vit_forward.23} parent=1 // pred_check
      _
    $region7: #{vit_forward.23} parent=1 // pred_check_branch
      %14 = sbr.rel (0) target = $region9
    $region8: #{vit_forward.23} parent=1 // pred_region
      _
    $region9: #{vit_forward.23} parent=1 // pred_fallthru
      _
    // Predicated region
    $region10: #{vit_forward.23} parent=1 // pred_check
      _
    $region11: #{vit_forward.23} parent=1 // pred_check_branch
      %16 = sbr.rel (0) target = $region13
    $region12: #{vit_forward.23} parent=1 // pred_region
      _
    $region13: #{vit_forward.23} parent=1 // pred_fallthru
      _
    // Predicated region
    $region14: #{vit_forward.23} parent=1 // pred_check
      _
    $region15: #{vit_forward.23} parent=1 // pred_check_branch
      %18 = sbr.rel (0) target = $region17
    $region16: #{vit_forward.23} parent=1 // pred_region
      _
    $region17: #{vit_forward.23} parent=1 // pred_fallthru
      _
    // Predicated region
    $region18: #{vit_forward.23} parent=1 // pred_check
      _
    $region19: #{vit_forward.23} parent=1 // pred_check_branch
      %20 = sbr.rel (0) target = $region21
    $region20: #{vit_forward.23} parent=1 // pred_region
      _
    $region21: #{vit_forward.23} parent=1 // pred_fallthru
      _
    %p22 = scmp.eq.s32.totalorder 0, 0
    // Predicated region
    $region22: #{vit_forward.23} parent=1 // pred_check
      %p23 = pneg %p22
    $region23: #{vit_forward.23} parent=1 // pred_check_branch
      %25 = sbr.rel (%p23) target = $region25
    $region24: #{vit_forward.23} parent=1 // pred_region
      %v26 = vld [vmem:[%s0] sm:$0x3]
      %vm27 = vcmask 517120
      %v28 = vsel %vm27, %v26, 0.0
      %29 = vadd.xlane.f32.xlu0 %v28
      %v30 = vpop.xlane.xlu0 %29
      %v31 = vrcp.pop 64.0
      %v32 = vmul.f32 %v30, %v31
      %v33 = vsub.f32 %v26, %v32
      %v34 = vmul.f32 %v33, %v33
      %v35 = vsel %vm27, %v34, 0.0
      %36 = vadd.xlane.f32.xlu0 %v35
      %v37 = vpop.xlane.xlu0 %36
      %v38 = vmul.f32 %v37, %v31
      %v39 = vadd.f32 %v38, 1e-05
      %v40 = vrsqrt.pop %v39
      %v41 = vmul.f32 %v33, %v40
      %v42 = vld [vmem:[%s3] sm:$0x1]
      %v44 = vlaneseq
      %v45 = vshrl.u32 %v44, 7
      %v46 = vsub.s32 0, %v45
      %v47 = vrot.slane %v42, %v46
      %v49 = vmul.f32 %v41, %v47
      %v50 = vld [vmem:[%s4] sm:$0x1]
      %v52 = vlaneseq
      %v53 = vshrl.u32 %v52, 7
      %v54 = vsub.s32 0, %v53
      %v55 = vrot.slane %v50, %v54
      %v57 = vadd.f32 %v49, %v55
      %v58 = vpack.c.bf16 %v57, %v57
      %vm59 = vcmask 516096
      %60 = vst.msk [vmem:[#allocation2] sm:$0x1] %vm59, %v58
    $region25: #{vit_forward.23} parent=1 // pred_fallthru
      _
    %v61 = vld [vmem:[#allocation2] sm:$0x1]
    %v62 = vld [vmem:[%s1] sm:$0xf]
    %v63 = vld [vmem:[%s1 + $0x4] sm:$0xf]
    %v64 = vld [vmem:[%s1 + $0x8] sm:$0xf]
    %v65 = vld [vmem:[%s1 + $0xc] sm:$0xf]
    %v66 = vld [vmem:[%s1 + $0x10] sm:$0xf]
    %v67 = vld [vmem:[%s1 + $0x14] sm:$0xf]
    %v68 = vld [vmem:[%s1 + $0x18] sm:$0xf]
    %v69 = vld [vmem:[%s1 + $0x1c] sm:$0xf]
    %v70 = vld [vmem:[%s2] sm:$0x1]
    %v72 = vlaneseq
    %v73 = vshrl.u32 %v72, 7
    %v74 = vsub.s32 0, %v73
    %v75 = vrot.slane %v70, %v74
    %v85 = vunpack.c.l.b16 %v62
    %v86 = vunpack.c.l.b16 %v63
    %v87 = vunpack.c.l.b16 %v64
    %v88 = vunpack.c.l.b16 %v65
    %v89 = vunpack.c.l.b16 %v66
    %v90 = vunpack.c.l.b16 %v67
    %v91 = vunpack.c.l.b16 %v68
    %v92 = vunpack.c.l.b16 %v69
    %v93 = vpack.c.b16 %v86, %v85
    %v94 = vpack.c.b16 %v88, %v87
    %v95 = vpack.c.b16 %v90, %v89
    %v96 = vpack.c.b16 %v92, %v91
    %vm101 = vcmask 523264
    %v103 = vsel %vm101, %v61, 0
    %105 = vmatprep.subr.bf16.mxu0 0
    %106 = vmatpush1.bf16.msra.mxu0 %v93
    %107 = vmatprep.subr.bf16.mxu0 0
    %108 = vmatpush1.bf16.msra.mxu0 %v94
    %109 = vmatprep.subr.bf16.mxu0 0
    %110 = vmatpush1.bf16.msra.mxu0 %v95
    %111 = vmatprep.subr.bf16.mxu0 0
    %112 = vmatpush1.bf16.msra.mxu0 %v96
    %113 = vmatprep.subr.bf16.mxu0 0
    %114 = vmatpush1.bf16.msra.mxu0 0
    %115 = vmatprep.subr.bf16.mxu0 0
    %116 = vmatpush1.bf16.msra.mxu0 0
    %117 = vmatprep.subr.bf16.mxu0 0
    %118 = vmatpush1.bf16.msra.mxu0 0
    %119 = vmatprep.subr.bf16.mxu0 0
    %120 = vmatpush1.bf16.msra.mxu0 0
    %121 = vmatprep.subr.bf16.mxu0 0
    %122 = vmatpush1.bf16.msra.mxu0 0
    %123 = vmatprep.subr.bf16.mxu0 0
    %124 = vmatpush1.bf16.msra.mxu0 0
    %125 = vmatprep.subr.bf16.mxu0 0
    %126 = vmatpush1.bf16.msra.mxu0 0
    %127 = vmatprep.subr.bf16.mxu0 0
    %128 = vmatpush1.bf16.msra.mxu0 0
    %129 = vmatprep.subr.bf16.mxu0 0
    %130 = vmatpush1.bf16.msra.mxu0 0
    %131 = vmatprep.subr.bf16.mxu0 0
    %132 = vmatpush1.bf16.msra.mxu0 0
    %133 = vmatprep.subr.bf16.mxu0 0
    %134 = vmatpush1.bf16.msra.mxu0 0
    %135 = vmatprep.subr.bf16.mxu0 0
    %136 = vmatpush1.bf16.msra.mxu0 0
    %137 = vmatprep.mubr.bf16.mxu0 0
    %138 = vmatmul.mubr.bf16.gmra.mrb[0].mxu0 %v103
    %v139 = vpop.f32.mrb[0].mxu0
    %v140 = vadd.f32 %v75, %v139
    %v141 = vpop.f32.mrb[0].mxu0
    %v142 = vpop.f32.mrb[0].mxu0
    %v143 = vpop.f32.mrb[0].mxu0
    %144 = vdwg.mxu0
    %vm145 = vcmask 123904
    %146 = vst.msk [vmem:[#allocation3] sm:$0x3] %vm145, %v140
    // Predicated region
    $region26: #{vit_forward.23} parent=1 // pred_check
      _
    $region27: #{vit_forward.23} parent=1 // pred_check_branch
      %148 = sbr.rel (0) target = $region29
    $region28: #{vit_forward.23} parent=1 // pred_region
      %s150 = ssub.s32 32, 32
      %151 = vsyncadd [#allocation4], %s150
      %s153 = sshll.u32 [#allocation3], 4
      %s154 = int_to_ptr.vmem [resolvable:$true] %s153
      %156 = dma.vmem_to_hbm [thread:$0]  %s154, 32, %s5, [#allocation4]
    $region29: #{vit_forward.23} parent=1 // pred_fallthru
      _
    // Predicated region
    $region30: #{vit_forward.23} parent=1 // pred_check
      _
    $region31: #{vit_forward.23} parent=1 // pred_check_branch
      %158 = sbr.rel (0) target = $region33
    $region32: #{vit_forward.23} parent=1 // pred_region
      %159 = dma.done [#allocation4], 32
    $region33: #{vit_forward.23} parent=1 // pred_fallthru
      _
    %160 = vsyncpa [#allocation4], 1

</llo_original>
